<compile_context>
chip_gen: v7x
topology: tpu7x:2x2x1
jax: 0.10.0
libtpu: 0.0.40
codegen_flags: <defaults>
</compile_context>

<pallas_src>
import jax
import jax.numpy as jnp
from jax.experimental import pallas as pl
from jax.experimental.pallas import tpu as pltpu

LN_EPS = 1e-5  # PyTorch nn.LayerNorm default


def _layer_norm_relu(h, gamma, beta):
    # One-pass statistics: var = E[h^2] - mean^2; gamma folded into the scale.
    inv_n = 1.0 / h.shape[-1]
    mean = jnp.sum(h, axis=-1, keepdims=True) * inv_n
    mean_sq = jnp.sum(h * h, axis=-1, keepdims=True) * inv_n
    var = mean_sq - mean * mean
    scale = jax.lax.rsqrt(var + LN_EPS) * gamma          # EUP rsqrt, VPU mul
    return jnp.maximum((h - mean) * scale + beta, 0.0)   # ReLU


def irb_kernel(x_ref, w1_ref, b1_ref, g1_ref, be1_ref,
               w2_ref, b2_ref, g2_ref, be2_ref, o_ref):
    x_f32 = x_ref[...].astype(jnp.float32)

    # Linear(dim -> dim*factor): bf16 MXU matmul, f32 accumulation.
    h = jnp.dot(x_f32.astype(jnp.bfloat16), w1_ref[...],
                preferred_element_type=jnp.float32) + b1_ref[...]
    h = _layer_norm_relu(h, g1_ref[...], be1_ref[...])

    # Linear(dim*factor -> dim): bf16 MXU matmul, f32 accumulation.
    y = jnp.dot(h.astype(jnp.bfloat16), w2_ref[...],
                preferred_element_type=jnp.float32) + b2_ref[...]
    y = _layer_norm_relu(y, g2_ref[...], be2_ref[...])

    # Residual add, cast back to output dtype.
    o_ref[...] = (x_f32 + y).astype(o_ref.dtype)


def _const_spec(shape):
    """BlockSpec for parameter blocks whose index_map is constant across the grid.

    Single-buffer them (pl.Buffered(1)) so resident weights don't pay the default
    double-buffering VMEM cost. Falls back cleanly if pipeline_mode is unavailable.
    """
    try:
        return pl.BlockSpec(shape, lambda i: (0, 0), pipeline_mode=pl.Buffered(1))
    except TypeError:
        return pl.BlockSpec(shape, lambda i: (0, 0))


def inverted_residual_block(x, params, *, tm=256):
    """x: [N, dim] float32. params: dict (w1/w2 bf16, rest f32). Returns [N, dim] float32."""
    N, dim = x.shape
    hidden = params["w1"].shape[1]

    # Pick a row tile that divides N (keeps index math static and stores unmasked).
    tm = min(tm, N)
    while N % tm:
        tm //= 2
    tm = max(tm, 1)

    # Advisory cost estimate: two matmuls (2*M*K*N flops each), two rsqrt per row,
    # bytes = x + out + all parameter tensors (weights are resident, read once).
    flops = 4 * N * dim * hidden
    bytes_accessed = (2 * x.size * x.dtype.itemsize
                      + sum(int(p.size) * p.dtype.itemsize for p in params.values()))
    cost = pl.CostEstimate(flops=flops, transcendentals=2 * N,
                           bytes_accessed=bytes_accessed)

    grid_spec = pltpu.PrefetchScalarGridSpec(
        num_scalar_prefetch=0,
        grid=(N // tm,),
        in_specs=[
            pl.BlockSpec((tm, dim), lambda i: (i, 0)),   # x tile (double-buffered pipeline)
            _const_spec((dim, hidden)),                  # w1 (bf16, resident)
            _const_spec((1, hidden)),                    # b1
            _const_spec((1, hidden)),                    # ln1 gamma
            _const_spec((1, hidden)),                    # ln1 beta
            _const_spec((hidden, dim)),                  # w2 (bf16, resident)
            _const_spec((1, dim)),                       # b2
            _const_spec((1, dim)),                       # ln2 gamma
            _const_spec((1, dim)),                       # ln2 beta
        ],
        out_specs=pl.BlockSpec((tm, dim), lambda i: (i, 0)),
    )

    return pl.pallas_call(
        irb_kernel,
        out_shape=jax.ShapeDtypeStruct((N, dim), x.dtype),
        grid_spec=grid_spec,
        compiler_params=pltpu.CompilerParams(
            dimension_semantics=("parallel",),
            vmem_limit_bytes=48 << 20,   # well under v7x's 64 MiB physical VMEM, with headroom
        ),
        cost_estimate=cost,
    )(x, params["w1"], params["b1"], params["g1"], params["be1"],
      params["w2"], params["b2"], params["g2"], params["be2"])


def init_params(key, dim, factor=4):
    hidden = dim * factor
    k1, k2, k3, k4 = jax.random.split(key, 4)
    # Mimic nn.Linear uniform(-1/sqrt(fan_in), 1/sqrt(fan_in)); LN affine gamma=1, beta=0.
    lim1 = 1.0 / jnp.sqrt(dim)
    lim2 = 1.0 / jnp.sqrt(hidden)
    return {
        "w1": jax.random.uniform(k1, (dim, hidden), jnp.float32, -lim1, lim1).astype(jnp.bfloat16),
        "b1": jax.random.uniform(k2, (1, hidden), jnp.float32, -lim1, lim1),
        "g1": jnp.ones((1, hidden), jnp.float32),
        "be1": jnp.zeros((1, hidden), jnp.float32),
        "w2": jax.random.uniform(k3, (hidden, dim), jnp.float32, -lim2, lim2).astype(jnp.bfloat16),
        "b2": jax.random.uniform(k4, (1, dim), jnp.float32, -lim2, lim2),
        "g2": jnp.ones((1, dim), jnp.float32),
        "be2": jnp.zeros((1, dim), jnp.float32),
    }


def reference(x, p):
    """Pure-JAX reference with the same bf16-matmul / f32-accumulate numerics."""
    def ln_relu(h, g, b):
        mu = h.mean(-1, keepdims=True)
        var = ((h - mu) ** 2).mean(-1, keepdims=True)
        return jnp.maximum((h - mu) / jnp.sqrt(var + LN_EPS) * g + b, 0.0)

    h = jnp.dot(x.astype(jnp.bfloat16), p["w1"], preferred_element_type=jnp.float32) + p["b1"]
    h = ln_relu(h, p["g1"], p["be1"])
    y = jnp.dot(h.astype(jnp.bfloat16), p["w2"], preferred_element_type=jnp.float32) + p["b2"]
    y = ln_relu(y, p["g2"], p["be2"])
    return x + y


if __name__ == "__main__":
    # Small but lane-dense: dim=128, hidden=512 (multiples of 128); grid has 2 parallel steps.
    dim, factor = 128, 4
    N = 512

    key = jax.random.PRNGKey(0)
    kx, kp = jax.random.split(key)
    x = jax.random.normal(kx, (N, dim), jnp.float32)
    params = init_params(kp, dim, factor)

    out = inverted_residual_block(x, params, tm=256)
    out = jax.block_until_ready(out)

    ref = reference(x, params)
    assert out.shape == (N, dim)
    max_err = float(jnp.abs(out - ref).max())
    assert jnp.allclose(out, ref, atol=2e-3, rtol=2e-3), max_err

    print("KERNEL_OK")
</pallas_src>

<mosaic_0001>
module attributes {stable_mosaic.version = 11 : i64} {
  func.func @irb_kernel(%arg0: i32, %arg1: memref<256x128xf32, #tpu.memory_space<vmem>>, %arg2: memref<128x512xbf16, #tpu.memory_space<vmem>>, %arg3: memref<1x512xf32, #tpu.memory_space<vmem>>, %arg4: memref<1x512xf32, #tpu.memory_space<vmem>>, %arg5: memref<1x512xf32, #tpu.memory_space<vmem>>, %arg6: memref<512x128xbf16, #tpu.memory_space<vmem>>, %arg7: memref<1x128xf32, #tpu.memory_space<vmem>>, %arg8: memref<1x128xf32, #tpu.memory_space<vmem>>, %arg9: memref<1x128xf32, #tpu.memory_space<vmem>>, %arg10: memref<256x128xf32, #tpu.memory_space<vmem>>) attributes {dimension_semantics = [#tpu.dimension_semantics<parallel>], iteration_bounds = array<i64: 2>, scalar_prefetch = 0 : i64, scratch_operands = 0 : i64, tpu.core_type = #tpu.core_type<tc>, window_params = [{transform_indices = @transform_0, window_bounds = array<i64: 256, 128>}, {pipeline_mode = #tpu.pipeline_mode<synchronous>, transform_indices = @transform_1, window_bounds = array<i64: 128, 512>}, {pipeline_mode = #tpu.pipeline_mode<synchronous>, transform_indices = @transform_2, window_bounds = array<i64: 1, 512>}, {pipeline_mode = #tpu.pipeline_mode<synchronous>, transform_indices = @transform_3, window_bounds = array<i64: 1, 512>}, {pipeline_mode = #tpu.pipeline_mode<synchronous>, transform_indices = @transform_4, window_bounds = array<i64: 1, 512>}, {pipeline_mode = #tpu.pipeline_mode<synchronous>, transform_indices = @transform_5, window_bounds = array<i64: 512, 128>}, {pipeline_mode = #tpu.pipeline_mode<synchronous>, transform_indices = @transform_6, window_bounds = array<i64: 1, 128>}, {pipeline_mode = #tpu.pipeline_mode<synchronous>, transform_indices = @transform_7, window_bounds = array<i64: 1, 128>}, {pipeline_mode = #tpu.pipeline_mode<synchronous>, transform_indices = @transform_8, window_bounds = array<i64: 1, 128>}, {transform_indices = @transform_9, window_bounds = array<i64: 256, 128>}]} {
    %c0 = arith.constant 0 : index
    %c0_0 = arith.constant 0 : index
    %0 = vector.load %arg1[%c0, %c0_0] : memref<256x128xf32, #tpu.memory_space<vmem>>, vector<256x128xf32>
    %1 = arith.truncf %0 : vector<256x128xf32> to vector<256x128xbf16>
    %c0_1 = arith.constant 0 : index
    %c0_2 = arith.constant 0 : index
    %2 = vector.load %arg2[%c0_1, %c0_2] : memref<128x512xbf16, #tpu.memory_space<vmem>>, vector<128x512xbf16>
    %cst = arith.constant dense<0.000000e+00> : vector<256x512xf32>
    %3 = tpu.matmul %1, %2, %cst {dimension_numbers = #tpu.dot_dimension_numbers<[1], [0], [0], [1], [0, 0, 1, 1], [], []>} : vector<256x128xbf16>, vector<128x512xbf16>, vector<256x512xf32> -> vector<256x512xf32>
    %c0_3 = arith.constant 0 : index
    %c0_4 = arith.constant 0 : index
    %4 = vector.load %arg3[%c0_3, %c0_4] : memref<1x512xf32, #tpu.memory_space<vmem>>, vector<1x512xf32>
    %5 = vector.broadcast %4 : vector<1x512xf32> to vector<256x512xf32>
    %6 = arith.addf %3, %5 : vector<256x512xf32>
    %c0_5 = arith.constant 0 : index
    %c0_6 = arith.constant 0 : index
    %7 = vector.load %arg4[%c0_5, %c0_6] : memref<1x512xf32, #tpu.memory_space<vmem>>, vector<1x512xf32>
    %c0_7 = arith.constant 0 : index
    %c0_8 = arith.constant 0 : index
    %8 = vector.load %arg5[%c0_7, %c0_8] : memref<1x512xf32, #tpu.memory_space<vmem>>, vector<1x512xf32>
    %cst_9 = arith.constant dense<0.000000e+00> : vector<256xf32>
    %9 = vector.multi_reduction <add>, %6, %cst_9 [1] : vector<256x512xf32> to vector<256xf32>
    %10 = vector.shape_cast %9 : vector<256xf32> to vector<256x1xf32>
    %cst_10 = arith.constant 0.001953125 : f32
    %11 = vector.broadcast %cst_10 : f32 to vector<256x1xf32>
    %12 = arith.mulf %10, %11 : vector<256x1xf32>
    %13 = arith.mulf %6, %6 : vector<256x512xf32>
    %cst_11 = arith.constant dense<0.000000e+00> : vector<256xf32>
    %14 = vector.multi_reduction <add>, %13, %cst_11 [1] : vector<256x512xf32> to vector<256xf32>
    %15 = vector.shape_cast %14 : vector<256xf32> to vector<256x1xf32>
    %cst_12 = arith.constant 0.001953125 : f32
    %16 = vector.broadcast %cst_12 : f32 to vector<256x1xf32>
    %17 = arith.mulf %15, %16 : vector<256x1xf32>
    %18 = arith.mulf %12, %12 : vector<256x1xf32>
    %19 = arith.subf %17, %18 : vector<256x1xf32>
    %cst_13 = arith.constant 9.99999974E-6 : f32
    %20 = vector.broadcast %cst_13 : f32 to vector<256x1xf32>
    %21 = arith.addf %19, %20 : vector<256x1xf32>
    %22 = math.rsqrt %21 : vector<256x1xf32>
    %23 = vector.broadcast %22 : vector<256x1xf32> to vector<256x512xf32>
    %24 = vector.broadcast %7 : vector<1x512xf32> to vector<256x512xf32>
    %25 = arith.mulf %23, %24 : vector<256x512xf32>
    %26 = vector.broadcast %12 : vector<256x1xf32> to vector<256x512xf32>
    %27 = arith.subf %6, %26 : vector<256x512xf32>
    %28 = arith.mulf %27, %25 : vector<256x512xf32>
    %29 = vector.broadcast %8 : vector<1x512xf32> to vector<256x512xf32>
    %30 = arith.addf %28, %29 : vector<256x512xf32>
    %cst_14 = arith.constant 0.000000e+00 : f32
    %31 = vector.broadcast %cst_14 : f32 to vector<256x512xf32>
    %32 = arith.maximumf %30, %31 : vector<256x512xf32>
    %33 = arith.truncf %32 : vector<256x512xf32> to vector<256x512xbf16>
    %c0_15 = arith.constant 0 : index
    %c0_16 = arith.constant 0 : index
    %34 = vector.load %arg6[%c0_15, %c0_16] : memref<512x128xbf16, #tpu.memory_space<vmem>>, vector<512x128xbf16>
    %cst_17 = arith.constant dense<0.000000e+00> : vector<256x128xf32>
    %35 = tpu.matmul %33, %34, %cst_17 {dimension_numbers = #tpu.dot_dimension_numbers<[1], [0], [0], [1], [0, 0, 1, 1], [], []>} : vector<256x512xbf16>, vector<512x128xbf16>, vector<256x128xf32> -> vector<256x128xf32>
    %c0_18 = arith.constant 0 : index
    %c0_19 = arith.constant 0 : index
    %36 = vector.load %arg7[%c0_18, %c0_19] : memref<1x128xf32, #tpu.memory_space<vmem>>, vector<1x128xf32>
    %37 = vector.broadcast %36 : vector<1x128xf32> to vector<256x128xf32>
    %38 = arith.addf %35, %37 : vector<256x128xf32>
    %c0_20 = arith.constant 0 : index
    %c0_21 = arith.constant 0 : index
    %39 = vector.load %arg8[%c0_20, %c0_21] : memref<1x128xf32, #tpu.memory_space<vmem>>, vector<1x128xf32>
    %c0_22 = arith.constant 0 : index
    %c0_23 = arith.constant 0 : index
    %40 = vector.load %arg9[%c0_22, %c0_23] : memref<1x128xf32, #tpu.memory_space<vmem>>, vector<1x128xf32>
    %cst_24 = arith.constant dense<0.000000e+00> : vector<256xf32>
    %41 = vector.multi_reduction <add>, %38, %cst_24 [1] : vector<256x128xf32> to vector<256xf32>
    %42 = vector.shape_cast %41 : vector<256xf32> to vector<256x1xf32>
    %cst_25 = arith.constant 7.812500e-03 : f32
    %43 = vector.broadcast %cst_25 : f32 to vector<256x1xf32>
    %44 = arith.mulf %42, %43 : vector<256x1xf32>
    %45 = arith.mulf %38, %38 : vector<256x128xf32>
    %cst_26 = arith.constant dense<0.000000e+00> : vector<256xf32>
    %46 = vector.multi_reduction <add>, %45, %cst_26 [1] : vector<256x128xf32> to vector<256xf32>
    %47 = vector.shape_cast %46 : vector<256xf32> to vector<256x1xf32>
    %cst_27 = arith.constant 7.812500e-03 : f32
    %48 = vector.broadcast %cst_27 : f32 to vector<256x1xf32>
    %49 = arith.mulf %47, %48 : vector<256x1xf32>
    %50 = arith.mulf %44, %44 : vector<256x1xf32>
    %51 = arith.subf %49, %50 : vector<256x1xf32>
    %cst_28 = arith.constant 9.99999974E-6 : f32
    %52 = vector.broadcast %cst_28 : f32 to vector<256x1xf32>
    %53 = arith.addf %51, %52 : vector<256x1xf32>
    %54 = math.rsqrt %53 : vector<256x1xf32>
    %55 = vector.broadcast %54 : vector<256x1xf32> to vector<256x128xf32>
    %56 = vector.broadcast %39 : vector<1x128xf32> to vector<256x128xf32>
    %57 = arith.mulf %55, %56 : vector<256x128xf32>
    %58 = vector.broadcast %44 : vector<256x1xf32> to vector<256x128xf32>
    %59 = arith.subf %38, %58 : vector<256x128xf32>
    %60 = arith.mulf %59, %57 : vector<256x128xf32>
    %61 = vector.broadcast %40 : vector<1x128xf32> to vector<256x128xf32>
    %62 = arith.addf %60, %61 : vector<256x128xf32>
    %cst_29 = arith.constant 0.000000e+00 : f32
    %63 = vector.broadcast %cst_29 : f32 to vector<256x128xf32>
    %64 = arith.maximumf %62, %63 : vector<256x128xf32>
    %65 = arith.addf %0, %64 : vector<256x128xf32>
    %c0_30 = arith.constant 0 : index
    %c0_31 = arith.constant 0 : index
    %66 = vector.load %arg10[%c0_30, %c0_31] : memref<256x128xf32, #tpu.memory_space<vmem>>, vector<256x128xf32>
    tpu.vector_store %arg10[%c0_30, %c0_31], %65 {strides = array<i32>} : memref<256x128xf32, #tpu.memory_space<vmem>>, vector<256x128xf32>,
    return
  }
  func.func @transform_0(%arg0: i32) -> (i32, i32) {
    %c0_i32 = arith.constant 0 : i32
    %c0_i32_0 = arith.constant 0 : i32
    return %arg0, %c0_i32 : i32, i32
  }
  func.func @transform_1(%arg0: i32) -> (i32, i32) {
    %c0_i32 = arith.constant 0 : i32
    %c0_i32_0 = arith.constant 0 : i32
    %c0_i32_1 = arith.constant 0 : i32
    return %c0_i32, %c0_i32_0 : i32, i32
  }
  func.func @transform_2(%arg0: i32) -> (i32, i32) {
    %c0_i32 = arith.constant 0 : i32
    %c0_i32_0 = arith.constant 0 : i32
    %c0_i32_1 = arith.constant 0 : i32
    return %c0_i32, %c0_i32_0 : i32, i32
  }
  func.func @transform_3(%arg0: i32) -> (i32, i32) {
    %c0_i32 = arith.constant 0 : i32
    %c0_i32_0 = arith.constant 0 : i32
    %c0_i32_1 = arith.constant 0 : i32
    return %c0_i32, %c0_i32_0 : i32, i32
  }
  func.func @transform_4(%arg0: i32) -> (i32, i32) {
    %c0_i32 = arith.constant 0 : i32
    %c0_i32_0 = arith.constant 0 : i32
    %c0_i32_1 = arith.constant 0 : i32
    return %c0_i32, %c0_i32_0 : i32, i32
  }
  func.func @transform_5(%arg0: i32) -> (i32, i32) {
    %c0_i32 = arith.constant 0 : i32
    %c0_i32_0 = arith.constant 0 : i32
    %c0_i32_1 = arith.constant 0 : i32
    return %c0_i32, %c0_i32_0 : i32, i32
  }
  func.func @transform_6(%arg0: i32) -> (i32, i32) {
    %c0_i32 = arith.constant 0 : i32
    %c0_i32_0 = arith.constant 0 : i32
    %c0_i32_1 = arith.constant 0 : i32
    return %c0_i32, %c0_i32_0 : i32, i32
  }
  func.func @transform_7(%arg0: i32) -> (i32, i32) {
    %c0_i32 = arith.constant 0 : i32
    %c0_i32_0 = arith.constant 0 : i32
    %c0_i32_1 = arith.constant 0 : i32
    return %c0_i32, %c0_i32_0 : i32, i32
  }
  func.func @transform_8(%arg0: i32) -> (i32, i32) {
    %c0_i32 = arith.constant 0 : i32
    %c0_i32_0 = arith.constant 0 : i32
    %c0_i32_1 = arith.constant 0 : i32
    return %c0_i32, %c0_i32_0 : i32, i32
  }
  func.func @transform_9(%arg0: i32) -> (i32, i32) {
    %c0_i32 = arith.constant 0 : i32
    %c0_i32_0 = arith.constant 0 : i32
    return %arg0, %c0_i32 : i32, i32
  }
}

</mosaic_0001>

<llo_original>
// kernel: tpu_custom_call.1
$region0: #{tpu_custom_call.1}
  #allocation0 [shape = 'u32[]', space=smem, size = 0x4, offset = 0x4, fixed_abs, tag = 'smem constant byte address 0x4 - core index']
  #allocation1 [shape = 'u32[144,128]{1,0:T(1,128)}', space=vmem, size = 0x12000, scoped, tag = 'internal scratch']
  %s0 = inlined_call_operand.hbm [shape: f32[512,128], index: 0, kind: input, shape index: {}]
  %s1 = inlined_call_operand.hbm [shape: bf16[128,512], index: 1, kind: input, shape index: {}]
  %s2 = inlined_call_operand.vmem [shape: f32[1,512], index: 2, kind: input, shape index: {}]
  %s3 = inlined_call_operand.vmem [shape: f32[1,512], index: 3, kind: input, shape index: {}]
  %s4 = inlined_call_operand.vmem [shape: f32[1,512], index: 4, kind: input, shape index: {}]
  %s5 = inlined_call_operand.hbm [shape: bf16[512,128], index: 5, kind: input, shape index: {}]
  %s6 = inlined_call_operand.vmem [shape: f32[1,128], index: 6, kind: input, shape index: {}]
  %s7 = inlined_call_operand.vmem [shape: f32[1,128], index: 7, kind: input, shape index: {}]
  %s8 = inlined_call_operand.vmem [shape: f32[1,128], index: 8, kind: input, shape index: {}]
  %s9 = inlined_call_operand.hbm [shape: f32[512,128], index: 9, kind: output, shape index: {}]
  %s10 = sld [smem:[#allocation0]]
  $region81: #{tpu_custom_call.1} parent=0
    _
  %s12 = ssub.s32 1, %s10
  %s13 = scalar_select 0, %s12, %s10
  $region1: #{tpu_custom_call.1} parent=0
    #allocation2 [shape = 'u8[262144]{0}', space=vmem, size = 0x40000, scoped, tag = 'input window, operand 0']
    #allocation3 [shape = 's32[2]{0}', space=sflag, size = 0x8, scoped, tag = 'scoped memory for tpu_custom_call.1']
    #allocation4 [shape = 's32[2]{0}', space=sflag, size = 0x8, scoped, tag = 'scoped memory for tpu_custom_call.1']
    #allocation5 [shape = 'u8[131072]{0}', space=vmem, size = 0x20000, scoped, tag = 'input window, operand 1, single buffered']
    #allocation6 [shape = 's32[1]{0}', space=sflag, size = 0x4, scoped, tag = 'scoped memory for tpu_custom_call.1']
    #allocation7 [shape = 'u8[131072]{0}', space=vmem, size = 0x20000, scoped, tag = 'input window, operand 5, single buffered']
    #allocation8 [shape = 'u8[262144]{0}', space=vmem, size = 0x40000, scoped, tag = 'output window, operand 0']
    %14 = vsyncpa [#allocation3], 0
    %s15 = scalar_lea.sflag [#allocation3], 1
    %16 = vsyncpa %s15, 0
    %17 = vsyncpa [#allocation6], 0
    %18 = vsyncpa [#allocation4], 0
    %s19 = scalar_lea.sflag [#allocation4], 1
    %20 = vsyncpa %s19, 0
    loop: start=0, step=1, limit=4
    $region2: #{tpu_custom_call.1} parent=1 // loop_pre_header
      _
    $region3: #{tpu_custom_call.1} parent=1 // loop_header
      %s22 = sphi 0, %s26
      %p23 = scmp.ge.s32.totalorder %s22, 4
      %s32 = sphi 0, %s34
      %s35 = sphi 0, %s32
      %s36 = sphi 0, %s35
      %s52 = sphi 0, %s36
      %s56 = sphi 0, %s56
      %s58 = sphi 0, %s56
      %s59 = sphi 0, %s58
      %s73 = sphi 0, %s59
      %s77 = sphi 0, %s77
      %s79 = sphi 0, %s77
      %s80 = sphi 0, %s79
      %s94 = sphi 0, %s80
      %s98 = sphi 0, %s98
      %s100 = sphi 0, %s98
      %s101 = sphi 0, %s100
      %s115 = sphi 0, %s101
      %s119 = sphi 0, %s119
      %s121 = sphi 0, %s119
      %s122 = sphi 0, %s121
      %s136 = sphi 0, %s122
      %s140 = sphi 0, %s140
      %s142 = sphi 0, %s140
      %s143 = sphi 0, %s142
      %s157 = sphi 0, %s143
      %s161 = sphi 0, %s161
      %s163 = sphi 0, %s161
      %s164 = sphi 0, %s163
      %s178 = sphi 0, %s164
      %s182 = sphi 0, %s182
      %s184 = sphi 0, %s182
      %s185 = sphi 0, %s184
      %s199 = sphi 0, %s185
      %s203 = sphi 0, %s203
      %s205 = sphi 0, %s203
      %s206 = sphi 0, %s205
      %s220 = sphi 0, %s206
      %s226 = sphi 0, %s228
      %s229 = sphi 0, %s226
      %s230 = sphi 0, %s229
      %s246 = sphi 0, %s230
    $region4: #{tpu_custom_call.1} parent=1 // loop_header_branch
      %25 = sbr.rel (%p23) target = $region8
    $region5: #{tpu_custom_call.1} parent=1 // loop_body
      %s27 = ssub.s32 %s22, 1
      %s28 = ssub.s32 %s22, 2
      %s29 = sadd.s32 %s22, 1
      %s30 = ssub.s32 %s22, %s29
      %p31 = scmp.eq.s32.totalorder %s30, 0
      %s33 = sadd.s32 %s32, 1
      %s34 = scalar_select %p31, %s32, %s33
      %p37 = pneg %p31
      %p38 = scmp.eq.s32.totalorder %s22, 1
      %p39 = por %p37, %p38
      %p40 = scmp.ne.s32.totalorder %s32, %s35
      %p41 = scmp.eq.s32.totalorder %s22, 0
      %p42 = por %p40, %p41
      %p43 = scmp.ne.s32.totalorder %s32, %s35
      %p44 = scmp.eq.s32.totalorder %s27, 1
      %p45 = por %p43, %p44
      %p46 = scmp.ne.s32.totalorder %s35, %s36
      %p47 = scmp.eq.s32.totalorder %s27, 0
      %p48 = por %p46, %p47
      %p49 = scmp.ne.s32.totalorder %s35, %s36
      %p50 = scmp.eq.s32.totalorder %s28, 1
      %p51 = por %p49, %p50
      %p53 = scmp.ne.s32.totalorder %s36, %s52
      %p54 = scmp.eq.s32.totalorder %s28, 0
      %p55 = por %p53, %p54
      %s57 = sadd.s32 %s56, 1
      %p60 = scmp.eq.s32.totalorder %s22, 1
      %p61 = scmp.ne.s32.totalorder %s56, %s58
      %p62 = scmp.eq.s32.totalorder %s22, 0
      %p63 = por %p61, %p62
      %p64 = scmp.ne.s32.totalorder %s56, %s58
      %p65 = scmp.eq.s32.totalorder %s27, 1
      %p66 = por %p64, %p65
      %p67 = scmp.ne.s32.totalorder %s58, %s59
      %p68 = scmp.eq.s32.totalorder %s27, 0
      %p69 = por %p67, %p68
      %p70 = scmp.ne.s32.totalorder %s58, %s59
      %p71 = scmp.eq.s32.totalorder %s28, 1
      %p72 = por %p70, %p71
      %p74 = scmp.ne.s32.totalorder %s59, %s73
      %p75 = scmp.eq.s32.totalorder %s28, 0
      %p76 = por %p74, %p75
      %s78 = sadd.s32 %s77, 1
      %p81 = scmp.eq.s32.totalorder %s22, 1
      %p82 = scmp.ne.s32.totalorder %s77, %s79
      %p83 = scmp.eq.s32.totalorder %s22, 0
      %p84 = por %p82, %p83
      %p85 = scmp.ne.s32.totalorder %s77, %s79
      %p86 = scmp.eq.s32.totalorder %s27, 1
      %p87 = por %p85, %p86
      %p88 = scmp.ne.s32.totalorder %s79, %s80
      %p89 = scmp.eq.s32.totalorder %s27, 0
      %p90 = por %p88, %p89
      %p91 = scmp.ne.s32.totalorder %s79, %s80
      %p92 = scmp.eq.s32.totalorder %s28, 1
      %p93 = por %p91, %p92
      %p95 = scmp.ne.s32.totalorder %s80, %s94
      %p96 = scmp.eq.s32.totalorder %s28, 0
      %p97 = por %p95, %p96
      %s99 = sadd.s32 %s98, 1
      %p102 = scmp.eq.s32.totalorder %s22, 1
      %p103 = scmp.ne.s32.totalorder %s98, %s100
      %p104 = scmp.eq.s32.totalorder %s22, 0
      %p105 = por %p103, %p104
      %p106 = scmp.ne.s32.totalorder %s98, %s100
      %p107 = scmp.eq.s32.totalorder %s27, 1
      %p108 = por %p106, %p107
      %p109 = scmp.ne.s32.totalorder %s100, %s101
      %p110 = scmp.eq.s32.totalorder %s27, 0
      %p111 = por %p109, %p110
      %p112 = scmp.ne.s32.totalorder %s100, %s101
      %p113 = scmp.eq.s32.totalorder %s28, 1
      %p114 = por %p112, %p113
      %p116 = scmp.ne.s32.totalorder %s101, %s115
      %p117 = scmp.eq.s32.totalorder %s28, 0
      %p118 = por %p116, %p117
      %s120 = sadd.s32 %s119, 1
      %p123 = scmp.eq.s32.totalorder %s22, 1
      %p124 = scmp.ne.s32.totalorder %s119, %s121
      %p125 = scmp.eq.s32.totalorder %s22, 0
      %p126 = por %p124, %p125
      %p127 = scmp.ne.s32.totalorder %s119, %s121
      %p128 = scmp.eq.s32.totalorder %s27, 1
      %p129 = por %p127, %p128
      %p130 = scmp.ne.s32.totalorder %s121, %s122
      %p131 = scmp.eq.s32.totalorder %s27, 0
      %p132 = por %p130, %p131
      %p133 = scmp.ne.s32.totalorder %s121, %s122
      %p134 = scmp.eq.s32.totalorder %s28, 1
      %p135 = por %p133, %p134
      %p137 = scmp.ne.s32.totalorder %s122, %s136
      %p138 = scmp.eq.s32.totalorder %s28, 0
      %p139 = por %p137, %p138
      %s141 = sadd.s32 %s140, 1
      %p144 = scmp.eq.s32.totalorder %s22, 1
      %p145 = scmp.ne.s32.totalorder %s140, %s142
      %p146 = scmp.eq.s32.totalorder %s22, 0
      %p147 = por %p145, %p146
      %p148 = scmp.ne.s32.totalorder %s140, %s142
      %p149 = scmp.eq.s32.totalorder %s27, 1
      %p150 = por %p148, %p149
      %p151 = scmp.ne.s32.totalorder %s142, %s143
      %p152 = scmp.eq.s32.totalorder %s27, 0
      %p153 = por %p151, %p152
      %p154 = scmp.ne.s32.totalorder %s142, %s143
      %p155 = scmp.eq.s32.totalorder %s28, 1
      %p156 = por %p154, %p155
      %p158 = scmp.ne.s32.totalorder %s143, %s157
      %p159 = scmp.eq.s32.totalorder %s28, 0
      %p160 = por %p158, %p159
      %s162 = sadd.s32 %s161, 1
      %p165 = scmp.eq.s32.totalorder %s22, 1
      %p166 = scmp.ne.s32.totalorder %s161, %s163
      %p167 = scmp.eq.s32.totalorder %s22, 0
      %p168 = por %p166, %p167
      %p169 = scmp.ne.s32.totalorder %s161, %s163
      %p170 = scmp.eq.s32.totalorder %s27, 1
      %p171 = por %p169, %p170
      %p172 = scmp.ne.s32.totalorder %s163, %s164
      %p173 = scmp.eq.s32.totalorder %s27, 0
      %p174 = por %p172, %p173
      %p175 = scmp.ne.s32.totalorder %s163, %s164
      %p176 = scmp.eq.s32.totalorder %s28, 1
      %p177 = por %p175, %p176
      %p179 = scmp.ne.s32.totalorder %s164, %s178
      %p180 = scmp.eq.s32.totalorder %s28, 0
      %p181 = por %p179, %p180
      %s183 = sadd.s32 %s182, 1
      %p186 = scmp.eq.s32.totalorder %s22, 1
      %p187 = scmp.ne.s32.totalorder %s182, %s184
      %p188 = scmp.eq.s32.totalorder %s22, 0
      %p189 = por %p187, %p188
      %p190 = scmp.ne.s32.totalorder %s182, %s184
      %p191 = scmp.eq.s32.totalorder %s27, 1
      %p192 = por %p190, %p191
      %p193 = scmp.ne.s32.totalorder %s184, %s185
      %p194 = scmp.eq.s32.totalorder %s27, 0
      %p195 = por %p193, %p194
      %p196 = scmp.ne.s32.totalorder %s184, %s185
      %p197 = scmp.eq.s32.totalorder %s28, 1
      %p198 = por %p196, %p197
      %p200 = scmp.ne.s32.totalorder %s185, %s199
      %p201 = scmp.eq.s32.totalorder %s28, 0
      %p202 = por %p200, %p201
      %s204 = sadd.s32 %s203, 1
      %p207 = scmp.eq.s32.totalorder %s22, 1
      %p208 = scmp.ne.s32.totalorder %s203, %s205
      %p209 = scmp.eq.s32.totalorder %s22, 0
      %p210 = por %p208, %p209
      %p211 = scmp.ne.s32.totalorder %s203, %s205
      %p212 = scmp.eq.s32.totalorder %s27, 1
      %p213 = por %p211, %p212
      %p214 = scmp.ne.s32.totalorder %s205, %s206
      %p215 = scmp.eq.s32.totalorder %s27, 0
      %p216 = por %p214, %p215
      %p217 = scmp.ne.s32.totalorder %s205, %s206
      %p218 = scmp.eq.s32.totalorder %s28, 1
      %p219 = por %p217, %p218
      %p221 = scmp.ne.s32.totalorder %s206, %s220
      %p222 = scmp.eq.s32.totalorder %s28, 0
      %p223 = por %p221, %p222
      %s224 = ssub.s32 %s22, %s29
      %p225 = scmp.eq.s32.totalorder %s224, 0
      %s227 = sadd.s32 %s226, 1
      %s228 = scalar_select %p225, %s226, %s227
      %p231 = pneg %p225
      %p232 = scmp.eq.s32.totalorder %s22, 1
      %p233 = por %p231, %p232
      %p234 = scmp.ne.s32.totalorder %s226, %s229
      %p235 = scmp.eq.s32.totalorder %s22, 0
      %p236 = por %p234, %p235
      %p237 = scmp.ne.s32.totalorder %s226, %s229
      %p238 = scmp.eq.s32.totalorder %s27, 1
      %p239 = por %p237, %p238
      %p240 = scmp.ne.s32.totalorder %s229, %s230
      %p241 = scmp.eq.s32.totalorder %s27, 0
      %p242 = por %p240, %p241
      %p243 = scmp.ne.s32.totalorder %s229, %s230
      %p244 = scmp.eq.s32.totalorder %s28, 1
      %p245 = por %p243, %p244
      %p247 = scmp.ne.s32.totalorder %s230, %s246
      %p248 = scmp.eq.s32.totalorder %s28, 0
      %p249 = por %p247, %p248
      %p250 = scmp.le.s32.totalorder 1, %s22
      %p251 = scmp.lt.s32.totalorder %s22, 3
      %p252 = pnand %p250, %p251
      %p253 = pneg %p252
      // Predicated region
      $region9: #{tpu_custom_call.1} parent=5 // pred_check
        _
      $region10: #{tpu_custom_call.1} parent=5 // pred_check_branch
        %255 = sbr.rel (%p252) target = $region12
      $region11: #{tpu_custom_call.1} parent=5 // pred_region
        %s256 = ssub.s32 %s22, 1
        // Predicated region
        $region13: #{tpu_custom_call.1} parent=11 // pred_check
          %p257 = pneg %p69
        $region14: #{tpu_custom_call.1} parent=11 // pred_check_branch
          %259 = sbr.rel (%p257) target = $region16
        $region15: #{tpu_custom_call.1} parent=11 // pred_region
          %s261 = ssub.s32 4096, 4096
          %262 = vsyncadd [#allocation6], %s261
          %s263 = sshll.u32 [#allocation5], 4
          %s264 = int_to_ptr.vmem [resolvable:$true] %s263
          %269 = dma.hbm_to_vmem [thread:$0]  %s1, 4096, %s264, [#allocation6], 256, 256, 16
        $region16: #{tpu_custom_call.1} parent=11 // pred_fallthru
          _
        // Predicated region
        $region17: #{tpu_custom_call.1} parent=11 // pred_check
          %p270 = pneg %p90
        $region18: #{tpu_custom_call.1} parent=11 // pred_check_branch
          %272 = sbr.rel (%p270) target = $region20
        $region19: #{tpu_custom_call.1} parent=11 // pred_region
          _
        $region20: #{tpu_custom_call.1} parent=11 // pred_fallthru
          _
        // Predicated region
        $region21: #{tpu_custom_call.1} parent=11 // pred_check
          %p273 = pneg %p111
        $region22: #{tpu_custom_call.1} parent=11 // pred_check_branch
          %275 = sbr.rel (%p273) target = $region24
        $region23: #{tpu_custom_call.1} parent=11 // pred_region
          _
        $region24: #{tpu_custom_call.1} parent=11 // pred_fallthru
          _
        // Predicated region
        $region25: #{tpu_custom_call.1} parent=11 // pred_check
          %p276 = pneg %p132
        $region26: #{tpu_custom_call.1} parent=11 // pred_check_branch
          %278 = sbr.rel (%p276) target = $region28
        $region27: #{tpu_custom_call.1} parent=11 // pred_region
          _
        $region28: #{tpu_custom_call.1} parent=11 // pred_fallthru
          _
        // Predicated region
        $region29: #{tpu_custom_call.1} parent=11 // pred_check
          %p279 = pneg %p153
        $region30: #{tpu_custom_call.1} parent=11 // pred_check_branch
          %281 = sbr.rel (%p279) target = $region32
        $region31: #{tpu_custom_call.1} parent=11 // pred_region
          %s283 = ssub.s32 4096, 4096
          %284 = vsyncadd [#allocation6], %s283
          %s285 = sshll.u32 [#allocation7], 4
          %s286 = int_to_ptr.vmem [resolvable:$true] %s285
          %291 = dma.hbm_to_vmem [thread:$0]  %s5, 4096, %s286, [#allocation6], 64, 64, 4
        $region32: #{tpu_custom_call.1} parent=11 // pred_fallthru
          _
        // Predicated region
        $region33: #{tpu_custom_call.1} parent=11 // pred_check
          %p292 = pneg %p174
        $region34: #{tpu_custom_call.1} parent=11 // pred_check_branch
          %294 = sbr.rel (%p292) target = $region36
        $region35: #{tpu_custom_call.1} parent=11 // pred_region
          _
        $region36: #{tpu_custom_call.1} parent=11 // pred_fallthru
          _
        // Predicated region
        $region37: #{tpu_custom_call.1} parent=11 // pred_check
          %p295 = pneg %p195
        $region38: #{tpu_custom_call.1} parent=11 // pred_check_branch
          %297 = sbr.rel (%p295) target = $region40
        $region39: #{tpu_custom_call.1} parent=11 // pred_region
          _
        $region40: #{tpu_custom_call.1} parent=11 // pred_fallthru
          _
        // Predicated region
        $region41: #{tpu_custom_call.1} parent=11 // pred_check
          %p298 = pneg %p216
        $region42: #{tpu_custom_call.1} parent=11 // pred_check_branch
          %300 = sbr.rel (%p298) target = $region44
        $region43: #{tpu_custom_call.1} parent=11 // pred_region
          _
        $region44: #{tpu_custom_call.1} parent=11 // pred_fallthru
          _
      $region12: #{tpu_custom_call.1} parent=5 // pred_fallthru
        _
      %p301 = scmp.lt.s32.totalorder %s22, 2
      // Predicated region
      $region45: #{tpu_custom_call.1} parent=5 // pred_check
        %p302 = pneg %p301
      $region46: #{tpu_custom_call.1} parent=5 // pred_check_branch
        %304 = sbr.rel (%p302) target = $region48
      $region47: #{tpu_custom_call.1} parent=5 // pred_region
        // Predicated region
        $region49: #{tpu_custom_call.1} parent=47 // pred_check
          %p305 = pneg %p42
        $region50: #{tpu_custom_call.1} parent=47 // pred_check_branch
          %307 = sbr.rel (%p305) target = $region52
        $region51: #{tpu_custom_call.1} parent=47 // pred_region
          %s308 = sand.u32 %s32, 1
          %s309 = scalar_lea.sflag [#allocation3], %s308
          %s310 = sand.u32 %s32, 1
          %s311 = smul.addr %s310, 256
          %s312 = scalar_lea.vmem [#allocation2], %s311
          %s313 = smul.u32 32, %s22
          %s315 = ssub.s32 4096, 4096
          %316 = vsyncadd %s309, %s315
          %s317 = smul.addr %s313, 128
          %s318 = scalar_lea.hbm %s0, %s317
          %s319 = sshll.u32 %s312, 4
          %s320 = int_to_ptr.vmem [resolvable:$true] %s319
          %325 = dma.hbm_to_vmem [thread:$0]  %s318, 4096, %s320, %s309, 128, 128, 8
        $region52: #{tpu_custom_call.1} parent=47 // pred_fallthru
          _
      $region48: #{tpu_custom_call.1} parent=5 // pred_fallthru
        _
      %p326 = scmp.le.s32.totalorder 1, %s22
      %p327 = scmp.lt.s32.totalorder %s22, 3
      %p328 = pnand %p326, %p327
      %p329 = pneg %p328
      // Predicated region
      $region53: #{tpu_custom_call.1} parent=5 // pred_check
        _
      $region54: #{tpu_custom_call.1} parent=5 // pred_check_branch
        %331 = sbr.rel (%p328) target = $region56
      $region55: #{tpu_custom_call.1} parent=5 // pred_region
        %s332 = ssub.s32 %s22, 1
        %s333 = sand.u32 %s35, 1
        %s334 = scalar_lea.sflag [#allocation3], %s333
        %s335 = sand.u32 %s35, 1
        %s336 = smul.addr %s335, 256
        %s337 = scalar_lea.vmem [#allocation2], %s336
        // Predicated region
        $region57: #{tpu_custom_call.1} parent=55 // pred_check
          %p338 = pneg %p48
        $region58: #{tpu_custom_call.1} parent=55 // pred_check_branch
          %340 = sbr.rel (%p338) target = $region60
        $region59: #{tpu_custom_call.1} parent=55 // pred_region
          %341 = dma.done %s334, 4096
        $region60: #{tpu_custom_call.1} parent=55 // pred_fallthru
          _
        // Predicated region
        $region61: #{tpu_custom_call.1} parent=55 // pred_check
          %p342 = pneg %p69
        $region62: #{tpu_custom_call.1} parent=55 // pred_check_branch
          %344 = sbr.rel (%p342) target = $region64
        $region63: #{tpu_custom_call.1} parent=55 // pred_region
          %345 = dma.done [#allocation6], 4096
        $region64: #{tpu_custom_call.1} parent=55 // pred_fallthru
          _
        // Predicated region
        $region65: #{tpu_custom_call.1} parent=55 // pred_check
          %p346 = pneg %p153
        $region66: #{tpu_custom_call.1} parent=55 // pred_check_branch
          %348 = sbr.rel (%p346) target = $region68
        $region67: #{tpu_custom_call.1} parent=55 // pred_region
          %349 = dma.done [#allocation6], 4096
        $region68: #{tpu_custom_call.1} parent=55 // pred_fallthru
          _
        %s350 = sand.u32 %s35, 1
        %s351 = scalar_lea.sflag [#allocation3], %s350
        %s352 = sand.u32 %s35, 1
        %s353 = smul.addr %s352, 256
        %s354 = scalar_lea.vmem [#allocation2], %s353
        %p355 = pneg %p48
        %p356 = pneg %p45
        %p357 = pneg %p69
        %p358 = pneg %p66
        %p359 = pneg %p90
        %p360 = pneg %p87
        %p361 = pneg %p111
        %p362 = pneg %p108
        %p363 = pneg %p132
        %p364 = pneg %p129
        %p365 = pneg %p153
        %p366 = pneg %p150
        %p367 = pneg %p174
        %p368 = pneg %p171
        %p369 = pneg %p195
        %p370 = pneg %p192
        %p371 = pneg %p216
        %p372 = pneg %p213
        %p373 = pneg %p242
        %p374 = pneg %p239
        %s375 = sand.u32 %s229, 1
        %s376 = scalar_lea.sflag [#allocation4], %s375
        %s377 = sand.u32 %s229, 1
        %s378 = smul.addr %s377, 256
        %s379 = scalar_lea.vmem [#allocation8], %s378
        %s380 = smul.u32 32, %s27
        %s381 = smul.u32 32, %s27
        %v383 = vld [vmem:[%s337] sm:$0xff]
        %v384 = vld [vmem:[%s337 + $0x8] sm:$0xff]
        %v385 = vld [vmem:[%s337 + $0x10] sm:$0xff]
        %v386 = vld [vmem:[%s337 + $0x18] sm:$0xff]
        %v387 = vld [vmem:[%s337 + $0x20] sm:$0xff]
        %v388 = vld [vmem:[%s337 + $0x28] sm:$0xff]
        %v389 = vld [vmem:[%s337 + $0x30] sm:$0xff]
        %v390 = vld [vmem:[%s337 + $0x38] sm:$0xff]
        %v391 = vld [vmem:[%s337 + $0x40] sm:$0xff]
        %v392 = vld [vmem:[%s337 + $0x48] sm:$0xff]
        %v393 = vld [vmem:[%s337 + $0x50] sm:$0xff]
        %v394 = vld [vmem:[%s337 + $0x58] sm:$0xff]
        %v395 = vld [vmem:[%s337 + $0x60] sm:$0xff]
        %v396 = vld [vmem:[%s337 + $0x68] sm:$0xff]
        %v397 = vld [vmem:[%s337 + $0x70] sm:$0xff]
        %v398 = vld [vmem:[%s337 + $0x78] sm:$0xff]
        %v399 = vld [vmem:[%s337 + $0x80] sm:$0xff]
        %v400 = vld [vmem:[%s337 + $0x88] sm:$0xff]
        %v401 = vld [vmem:[%s337 + $0x90] sm:$0xff]
        %v402 = vld [vmem:[%s337 + $0x98] sm:$0xff]
        %v403 = vld [vmem:[%s337 + $0xa0] sm:$0xff]
        %v404 = vld [vmem:[%s337 + $0xa8] sm:$0xff]
        %v405 = vld [vmem:[%s337 + $0xb0] sm:$0xff]
        %v406 = vld [vmem:[%s337 + $0xb8] sm:$0xff]
        %v407 = vld [vmem:[%s337 + $0xc0] sm:$0xff]
        %v408 = vld [vmem:[%s337 + $0xc8] sm:$0xff]
        %v409 = vld [vmem:[%s337 + $0xd0] sm:$0xff]
        %v410 = vld [vmem:[%s337 + $0xd8] sm:$0xff]
        %v411 = vld [vmem:[%s337 + $0xe0] sm:$0xff]
        %v412 = vld [vmem:[%s337 + $0xe8] sm:$0xff]
        %v413 = vld [vmem:[%s337 + $0xf0] sm:$0xff]
        %v414 = vld [vmem:[%s337 + $0xf8] sm:$0xff]
        %v415 = vpack.c.bf16 %v384, %v383
        %v416 = vpack.c.bf16 %v386, %v385
        %v417 = vpack.c.bf16 %v388, %v387
        %v418 = vpack.c.bf16 %v390, %v389
        %v419 = vpack.c.bf16 %v392, %v391
        %v420 = vpack.c.bf16 %v394, %v393
        %v421 = vpack.c.bf16 %v396, %v395
        %v422 = vpack.c.bf16 %v398, %v397
        %v423 = vpack.c.bf16 %v400, %v399
        %v424 = vpack.c.bf16 %v402, %v401
        %v425 = vpack.c.bf16 %v404, %v403
        %v426 = vpack.c.bf16 %v406, %v405
        %v427 = vpack.c.bf16 %v408, %v407
        %v428 = vpack.c.bf16 %v410, %v409
        %v429 = vpack.c.bf16 %v412, %v411
        %v430 = vpack.c.bf16 %v414, %v413
        %v431 = vld [vmem:[#allocation5] sm:$0xff]
        %v432 = vld [vmem:[#allocation5 + $0x8] sm:$0xff]
        %v433 = vld [vmem:[#allocation5 + $0x10] sm:$0xff]
        %v434 = vld [vmem:[#allocation5 + $0x18] sm:$0xff]
        %v435 = vld [vmem:[#allocation5 + $0x20] sm:$0xff]
        %v436 = vld [vmem:[#allocation5 + $0x28] sm:$0xff]
        %v437 = vld [vmem:[#allocation5 + $0x30] sm:$0xff]
        %v438 = vld [vmem:[#allocation5 + $0x38] sm:$0xff]
        %v439 = vld [vmem:[#allocation5 + $0x40] sm:$0xff]
        %v440 = vld [vmem:[#allocation5 + $0x48] sm:$0xff]
        %v441 = vld [vmem:[#allocation5 + $0x50] sm:$0xff]
        %v442 = vld [vmem:[#allocation5 + $0x58] sm:$0xff]
        %v443 = vld [vmem:[#allocation5 + $0x60] sm:$0xff]
        %v444 = vld [vmem:[#allocation5 + $0x68] sm:$0xff]
        %v445 = vld [vmem:[#allocation5 + $0x70] sm:$0xff]
        %v446 = vld [vmem:[#allocation5 + $0x78] sm:$0xff]
        %v447 = vld [vmem:[#allocation5 + $0x80] sm:$0xff]
        %v448 = vld [vmem:[#allocation5 + $0x88] sm:$0xff]
        %v449 = vld [vmem:[#allocation5 + $0x90] sm:$0xff]
        %v450 = vld [vmem:[#allocation5 + $0x98] sm:$0xff]
        %v451 = vld [vmem:[#allocation5 + $0xa0] sm:$0xff]
        %v452 = vld [vmem:[#allocation5 + $0xa8] sm:$0xff]
        %v453 = vld [vmem:[#allocation5 + $0xb0] sm:$0xff]
        %v454 = vld [vmem:[#allocation5 + $0xb8] sm:$0xff]
        %v455 = vld [vmem:[#allocation5 + $0xc0] sm:$0xff]
        %v456 = vld [vmem:[#allocation5 + $0xc8] sm:$0xff]
        %v457 = vld [vmem:[#allocation5 + $0xd0] sm:$0xff]
        %v458 = vld [vmem:[#allocation5 + $0xd8] sm:$0xff]
        %v459 = vld [vmem:[#allocation5 + $0xe0] sm:$0xff]
        %v460 = vld [vmem:[#allocation5 + $0xe8] sm:$0xff]
        %v461 = vld [vmem:[#allocation5 + $0xf0] sm:$0xff]
        %v462 = vld [vmem:[#allocation5 + $0xf8] sm:$0xff]
        %v463 = vld [vmem:[%s2] sm:$0xf]
        %v465 = vlaneseq
        %v466 = vshrl.u32 %v465, 7
        %v467 = vsub.s32 0, %v466
        %v468 = vrot.slane %v463, %v467
        %v469 = vlaneseq
        %v470 = vshrl.u32 %v469, 7
        %v471 = vsub.s32 1, %v470
        %v472 = vrot.slane %v463, %v471
        %v473 = vlaneseq
        %v474 = vshrl.u32 %v473, 7
        %v475 = vsub.s32 2, %v474
        %v476 = vrot.slane %v463, %v475
        %v477 = vlaneseq
        %v478 = vshrl.u32 %v477, 7
        %v479 = vsub.s32 3, %v478
        %v480 = vrot.slane %v463, %v479
        %v517 = vunpack.c.l.b16 %v431
        %v518 = vunpack.c.h.b16 %v431
        %v519 = vunpack.c.l.b16 %v432
        %v520 = vunpack.c.h.b16 %v432
        %v521 = vunpack.c.l.b16 %v433
        %v522 = vunpack.c.h.b16 %v433
        %v523 = vunpack.c.l.b16 %v434
        %v524 = vunpack.c.h.b16 %v434
        %v525 = vunpack.c.l.b16 %v435
        %v526 = vunpack.c.h.b16 %v435
        %v527 = vunpack.c.l.b16 %v436
        %v528 = vunpack.c.h.b16 %v436
        %v529 = vunpack.c.l.b16 %v437
        %v530 = vunpack.c.h.b16 %v437
        %v531 = vunpack.c.l.b16 %v438
        %v532 = vunpack.c.h.b16 %v438
        %v533 = vunpack.c.l.b16 %v439
        %v534 = vunpack.c.h.b16 %v439
        %v535 = vunpack.c.l.b16 %v440
        %v536 = vunpack.c.h.b16 %v440
        %v537 = vunpack.c.l.b16 %v441
        %v538 = vunpack.c.h.b16 %v441
        %v539 = vunpack.c.l.b16 %v442
        %v540 = vunpack.c.h.b16 %v442
        %v541 = vunpack.c.l.b16 %v443
        %v542 = vunpack.c.h.b16 %v443
        %v543 = vunpack.c.l.b16 %v444
        %v544 = vunpack.c.h.b16 %v444
        %v545 = vunpack.c.l.b16 %v445
        %v546 = vunpack.c.h.b16 %v445
        %v547 = vunpack.c.l.b16 %v446
        %v548 = vunpack.c.h.b16 %v446
        %v549 = vunpack.c.l.b16 %v447
        %v550 = vunpack.c.h.b16 %v447
        %v551 = vunpack.c.l.b16 %v448
        %v552 = vunpack.c.h.b16 %v448
        %v553 = vunpack.c.l.b16 %v449
        %v554 = vunpack.c.h.b16 %v449
        %v555 = vunpack.c.l.b16 %v450
        %v556 = vunpack.c.h.b16 %v450
        %v557 = vunpack.c.l.b16 %v451
        %v558 = vunpack.c.h.b16 %v451
        %v559 = vunpack.c.l.b16 %v452
        %v560 = vunpack.c.h.b16 %v452
        %v561 = vunpack.c.l.b16 %v453
        %v562 = vunpack.c.h.b16 %v453
        %v563 = vunpack.c.l.b16 %v454
        %v564 = vunpack.c.h.b16 %v454
        %v565 = vunpack.c.l.b16 %v455
        %v566 = vunpack.c.h.b16 %v455
        %v567 = vunpack.c.l.b16 %v456
        %v568 = vunpack.c.h.b16 %v456
        %v569 = vunpack.c.l.b16 %v457
        %v570 = vunpack.c.h.b16 %v457
        %v571 = vunpack.c.l.b16 %v458
        %v572 = vunpack.c.h.b16 %v458
        %v573 = vunpack.c.l.b16 %v459
        %v574 = vunpack.c.h.b16 %v459
        %v575 = vunpack.c.l.b16 %v460
        %v576 = vunpack.c.h.b16 %v460
        %v577 = vunpack.c.l.b16 %v461
        %v578 = vunpack.c.h.b16 %v461
        %v579 = vunpack.c.l.b16 %v462
        %v580 = vunpack.c.h.b16 %v462
        %v581 = vpack.c.b16 %v521, %v517
        %v582 = vpack.c.b16 %v522, %v518
        %v583 = vpack.c.b16 %v523, %v519
        %v584 = vpack.c.b16 %v524, %v520
        %v585 = vpack.c.b16 %v529, %v525
        %v586 = vpack.c.b16 %v530, %v526
        %v587 = vpack.c.b16 %v531, %v527
        %v588 = vpack.c.b16 %v532, %v528
        %v589 = vpack.c.b16 %v537, %v533
        %v590 = vpack.c.b16 %v538, %v534
        %v591 = vpack.c.b16 %v539, %v535
        %v592 = vpack.c.b16 %v540, %v536
        %v593 = vpack.c.b16 %v545, %v541
        %v594 = vpack.c.b16 %v546, %v542
        %v595 = vpack.c.b16 %v547, %v543
        %v596 = vpack.c.b16 %v548, %v544
        %v597 = vpack.c.b16 %v553, %v549
        %v598 = vpack.c.b16 %v554, %v550
        %v599 = vpack.c.b16 %v555, %v551
        %v600 = vpack.c.b16 %v556, %v552
        %v601 = vpack.c.b16 %v561, %v557
        %v602 = vpack.c.b16 %v562, %v558
        %v603 = vpack.c.b16 %v563, %v559
        %v604 = vpack.c.b16 %v564, %v560
        %v605 = vpack.c.b16 %v569, %v565
        %v606 = vpack.c.b16 %v570, %v566
        %v607 = vpack.c.b16 %v571, %v567
        %v608 = vpack.c.b16 %v572, %v568
        %v609 = vpack.c.b16 %v577, %v573
        %v610 = vpack.c.b16 %v578, %v574
        %v611 = vpack.c.b16 %v579, %v575
        %v612 = vpack.c.b16 %v580, %v576
        %645 = vmatprep.subr.bf16.mxu0 %v582
        %646 = vmatpush1.bf16.msra.mxu0 %v581
        %647 = vmatprep.subr.bf16.mxu0 %v586
        %648 = vmatpush1.bf16.msra.mxu0 %v585
        %649 = vmatprep.subr.bf16.mxu0 %v590
        %650 = vmatpush1.bf16.msra.mxu0 %v589
        %651 = vmatprep.subr.bf16.mxu0 %v594
        %652 = vmatpush1.bf16.msra.mxu0 %v593
        %653 = vmatprep.subr.bf16.mxu0 %v598
        %654 = vmatpush1.bf16.msra.mxu0 %v597
        %655 = vmatprep.subr.bf16.mxu0 %v602
        %656 = vmatpush1.bf16.msra.mxu0 %v601
        %657 = vmatprep.subr.bf16.mxu0 %v606
        %658 = vmatpush1.bf16.msra.mxu0 %v605
        %659 = vmatprep.subr.bf16.mxu0 %v610
        %660 = vmatpush1.bf16.msra.mxu0 %v609
        %661 = vmatprep.subr.bf16.mxu0 0
        %662 = vmatpush1.bf16.msra.mxu0 0
        %663 = vmatprep.subr.bf16.mxu0 0
        %664 = vmatpush1.bf16.msra.mxu0 0
        %665 = vmatprep.subr.bf16.mxu0 0
        %666 = vmatpush1.bf16.msra.mxu0 0
        %667 = vmatprep.subr.bf16.mxu0 0
        %668 = vmatpush1.bf16.msra.mxu0 0
        %669 = vmatprep.subr.bf16.mxu0 0
        %670 = vmatpush1.bf16.msra.mxu0 0
        %671 = vmatprep.subr.bf16.mxu0 0
        %672 = vmatpush1.bf16.msra.mxu0 0
        %673 = vmatprep.subr.bf16.mxu0 0
        %674 = vmatpush1.bf16.msra.mxu0 0
        %675 = vmatprep.subr.bf16.mxu0 0
        %676 = vmatpush1.bf16.msra.mxu0 0
        %677 = vmatprep.mubr.bf16.mxu0 0
        %678 = vmatmul.mubr.bf16.gmra.mrb[0].mxu0 %v415
        %v679 = vpop.f32.mrb[0].mxu0
        %v680 = vadd.f32 %v468, %v679
        %v681 = vpop.f32.mrb[0].mxu0
        %v682 = vadd.f32 %v472, %v681
        %v683 = vpop.f32.mrb[0].mxu0
        %v684 = vadd.f32 %v468, %v683
        %v685 = vpop.f32.mrb[0].mxu0
        %v686 = vadd.f32 %v472, %v685
        %687 = vmatprep.mubr.bf16.mxu0 0
        %688 = vmatmul.mubr.bf16.gmra.mrb[0].mxu0 %v416
        %v689 = vpop.f32.mrb[0].mxu0
        %v690 = vadd.f32 %v468, %v689
        %v691 = vpop.f32.mrb[0].mxu0
        %v692 = vadd.f32 %v472, %v691
        %v693 = vpop.f32.mrb[0].mxu0
        %v694 = vadd.f32 %v468, %v693
        %v695 = vpop.f32.mrb[0].mxu0
        %v696 = vadd.f32 %v472, %v695
        %697 = vmatprep.mubr.bf16.mxu0 0
        %698 = vmatmul.mubr.bf16.gmra.mrb[0].mxu0 %v417
        %v699 = vpop.f32.mrb[0].mxu0
        %v700 = vadd.f32 %v468, %v699
        %v701 = vpop.f32.mrb[0].mxu0
        %v702 = vadd.f32 %v472, %v701
        %v703 = vpop.f32.mrb[0].mxu0
        %v704 = vadd.f32 %v468, %v703
        %v705 = vpop.f32.mrb[0].mxu0
        %v706 = vadd.f32 %v472, %v705
        %707 = vmatprep.mubr.bf16.mxu0 0
        %708 = vmatmul.mubr.bf16.gmra.mrb[0].mxu0 %v418
        %v709 = vpop.f32.mrb[0].mxu0
        %v710 = vadd.f32 %v468, %v709
        %v711 = vpop.f32.mrb[0].mxu0
        %v712 = vadd.f32 %v472, %v711
        %v713 = vpop.f32.mrb[0].mxu0
        %v714 = vadd.f32 %v468, %v713
        %v715 = vpop.f32.mrb[0].mxu0
        %v716 = vadd.f32 %v472, %v715
        %717 = vmatprep.mubr.bf16.mxu0 0
        %718 = vmatmul.mubr.bf16.gmra.mrb[0].mxu0 %v419
        %v719 = vpop.f32.mrb[0].mxu0
        %v720 = vadd.f32 %v468, %v719
        %v721 = vpop.f32.mrb[0].mxu0
        %v722 = vadd.f32 %v472, %v721
        %v723 = vpop.f32.mrb[0].mxu0
        %v724 = vadd.f32 %v468, %v723
        %v725 = vpop.f32.mrb[0].mxu0
        %v726 = vadd.f32 %v472, %v725
        %727 = vmatprep.mubr.bf16.mxu0 0
        %728 = vmatmul.mubr.bf16.gmra.mrb[0].mxu0 %v420
        %v729 = vpop.f32.mrb[0].mxu0
        %v730 = vadd.f32 %v468, %v729
        %v731 = vpop.f32.mrb[0].mxu0
        %v732 = vadd.f32 %v472, %v731
        %v733 = vpop.f32.mrb[0].mxu0
        %v734 = vadd.f32 %v468, %v733
        %v735 = vpop.f32.mrb[0].mxu0
        %v736 = vadd.f32 %v472, %v735
        %737 = vmatprep.mubr.bf16.mxu0 0
        %738 = vmatmul.mubr.bf16.gmra.mrb[0].mxu0 %v421
        %v739 = vpop.f32.mrb[0].mxu0
        %v740 = vadd.f32 %v468, %v739
        %v741 = vpop.f32.mrb[0].mxu0
        %v742 = vadd.f32 %v472, %v741
        %v743 = vpop.f32.mrb[0].mxu0
        %v744 = vadd.f32 %v468, %v743
        %v745 = vpop.f32.mrb[0].mxu0
        %v746 = vadd.f32 %v472, %v745
        %747 = vmatprep.mubr.bf16.mxu0 0
        %748 = vmatmul.mubr.bf16.gmra.mrb[0].mxu0 %v422
        %v749 = vpop.f32.mrb[0].mxu0
        %v750 = vadd.f32 %v468, %v749
        %v751 = vpop.f32.mrb[0].mxu0
        %v752 = vadd.f32 %v472, %v751
        %v753 = vpop.f32.mrb[0].mxu0
        %v754 = vadd.f32 %v468, %v753
        %v755 = vpop.f32.mrb[0].mxu0
        %v756 = vadd.f32 %v472, %v755
        %757 = vmatprep.mubr.bf16.mxu0 0
        %758 = vmatmul.mubr.bf16.gmra.mrb[0].mxu0 %v423
        %v759 = vpop.f32.mrb[0].mxu0
        %v760 = vadd.f32 %v468, %v759
        %v761 = vpop.f32.mrb[0].mxu0
        %v762 = vadd.f32 %v472, %v761
        %v763 = vpop.f32.mrb[0].mxu0
        %v764 = vadd.f32 %v468, %v763
        %v765 = vpop.f32.mrb[0].mxu0
        %v766 = vadd.f32 %v472, %v765
        %767 = vmatprep.mubr.bf16.mxu0 0
        %768 = vmatmul.mubr.bf16.gmra.mrb[0].mxu0 %v424
        %v769 = vpop.f32.mrb[0].mxu0
        %v770 = vadd.f32 %v468, %v769
        %v771 = vpop.f32.mrb[0].mxu0
        %v772 = vadd.f32 %v472, %v771
        %v773 = vpop.f32.mrb[0].mxu0
        %v774 = vadd.f32 %v468, %v773
        %v775 = vpop.f32.mrb[0].mxu0
        %v776 = vadd.f32 %v472, %v775
        %777 = vmatprep.mubr.bf16.mxu0 0
        %778 = vmatmul.mubr.bf16.gmra.mrb[0].mxu0 %v425
        %v779 = vpop.f32.mrb[0].mxu0
        %v780 = vadd.f32 %v468, %v779
        %v781 = vpop.f32.mrb[0].mxu0
        %v782 = vadd.f32 %v472, %v781
        %v783 = vpop.f32.mrb[0].mxu0
        %v784 = vadd.f32 %v468, %v783
        %v785 = vpop.f32.mrb[0].mxu0
        %v786 = vadd.f32 %v472, %v785
        %787 = vmatprep.mubr.bf16.mxu0 0
        %788 = vmatmul.mubr.bf16.gmra.mrb[0].mxu0 %v426
        %v789 = vpop.f32.mrb[0].mxu0
        %v790 = vadd.f32 %v468, %v789
        %v791 = vpop.f32.mrb[0].mxu0
        %v792 = vadd.f32 %v472, %v791
        %v793 = vpop.f32.mrb[0].mxu0
        %v794 = vadd.f32 %v468, %v793
        %v795 = vpop.f32.mrb[0].mxu0
        %v796 = vadd.f32 %v472, %v795
        %797 = vmatprep.mubr.bf16.mxu0 0
        %798 = vmatmul.mubr.bf16.gmra.mrb[0].mxu0 %v427
        %v799 = vpop.f32.mrb[0].mxu0
        %v800 = vadd.f32 %v468, %v799
        %v801 = vpop.f32.mrb[0].mxu0
        %v802 = vadd.f32 %v472, %v801
        %v803 = vpop.f32.mrb[0].mxu0
        %v804 = vadd.f32 %v468, %v803
        %v805 = vpop.f32.mrb[0].mxu0
        %v806 = vadd.f32 %v472, %v805
        %807 = vmatprep.mubr.bf16.mxu0 0
        %808 = vmatmul.mubr.bf16.gmra.mrb[0].mxu0 %v428
        %v809 = vpop.f32.mrb[0].mxu0
        %v810 = vadd.f32 %v468, %v809
        %v811 = vpop.f32.mrb[0].mxu0
        %v812 = vadd.f32 %v472, %v811
        %v813 = vpop.f32.mrb[0].mxu0
        %v814 = vadd.f32 %v468, %v813
        %v815 = vpop.f32.mrb[0].mxu0
        %v816 = vadd.f32 %v472, %v815
        %817 = vmatprep.mubr.bf16.mxu0 0
        %818 = vmatmul.mubr.bf16.gmra.mrb[0].mxu0 %v429
        %v819 = vpop.f32.mrb[0].mxu0
        %v820 = vadd.f32 %v468, %v819
        %v821 = vpop.f32.mrb[0].mxu0
        %v822 = vadd.f32 %v472, %v821
        %v823 = vpop.f32.mrb[0].mxu0
        %v824 = vadd.f32 %v468, %v823
        %v825 = vpop.f32.mrb[0].mxu0
        %v826 = vadd.f32 %v472, %v825
        %827 = vmatprep.mubr.bf16.mxu0 0
        %828 = vmatmul.mubr.bf16.gmra.mrb[0].mxu0 %v430
        %v829 = vpop.f32.mrb[0].mxu0
        %v830 = vadd.f32 %v468, %v829
        %v831 = vpop.f32.mrb[0].mxu0
        %v832 = vadd.f32 %v472, %v831
        %v833 = vpop.f32.mrb[0].mxu0
        %v834 = vadd.f32 %v468, %v833
        %v835 = vpop.f32.mrb[0].mxu0
        %v836 = vadd.f32 %v472, %v835
        %837 = vdwg.mxu0
        %838 = vmatprep.subr.bf16.mxu0 %v584
        %839 = vmatpush1.bf16.msra.mxu0 %v583
        %840 = vmatprep.subr.bf16.mxu0 %v588
        %841 = vmatpush1.bf16.msra.mxu0 %v587
        %842 = vmatprep.subr.bf16.mxu0 %v592
        %843 = vmatpush1.bf16.msra.mxu0 %v591
        %844 = vmatprep.subr.bf16.mxu0 %v596
        %845 = vmatpush1.bf16.msra.mxu0 %v595
        %846 = vmatprep.subr.bf16.mxu0 %v600
        %847 = vmatpush1.bf16.msra.mxu0 %v599
        %848 = vmatprep.subr.bf16.mxu0 %v604
        %849 = vmatpush1.bf16.msra.mxu0 %v603
        %850 = vmatprep.subr.bf16.mxu0 %v608
        %851 = vmatpush1.bf16.msra.mxu0 %v607
        %852 = vmatprep.subr.bf16.mxu0 %v612
        %853 = vmatpush1.bf16.msra.mxu0 %v611
        %854 = vmatprep.subr.bf16.mxu0 0
        %855 = vmatpush1.bf16.msra.mxu0 0
        %856 = vmatprep.subr.bf16.mxu0 0
        %857 = vmatpush1.bf16.msra.mxu0 0
        %858 = vmatprep.subr.bf16.mxu0 0
        %859 = vmatpush1.bf16.msra.mxu0 0
        %860 = vmatprep.subr.bf16.mxu0 0
        %861 = vmatpush1.bf16.msra.mxu0 0
        %862 = vmatprep.subr.bf16.mxu0 0
        %863 = vmatpush1.bf16.msra.mxu0 0
        %864 = vmatprep.subr.bf16.mxu0 0
        %865 = vmatpush1.bf16.msra.mxu0 0
        %866 = vmatprep.subr.bf16.mxu0 0
        %867 = vmatpush1.bf16.msra.mxu0 0
        %868 = vmatprep.subr.bf16.mxu0 0
        %869 = vmatpush1.bf16.msra.mxu0 0
        %870 = vmatprep.mubr.bf16.mxu0 0
        %871 = vmatmul.mubr.bf16.gmra.mrb[0].mxu0 %v415
        %v872 = vpop.f32.mrb[0].mxu0
        %v873 = vadd.f32 %v476, %v872
        %v874 = vpop.f32.mrb[0].mxu0
        %v875 = vadd.f32 %v480, %v874
        %v876 = vpop.f32.mrb[0].mxu0
        %v877 = vadd.f32 %v476, %v876
        %v878 = vpop.f32.mrb[0].mxu0
        %v879 = vadd.f32 %v480, %v878
        %880 = vmatprep.mubr.bf16.mxu0 0
        %881 = vmatmul.mubr.bf16.gmra.mrb[0].mxu0 %v416
        %v882 = vpop.f32.mrb[0].mxu0
        %v883 = vadd.f32 %v476, %v882
        %v884 = vpop.f32.mrb[0].mxu0
        %v885 = vadd.f32 %v480, %v884
        %v886 = vpop.f32.mrb[0].mxu0
        %v887 = vadd.f32 %v476, %v886
        %v888 = vpop.f32.mrb[0].mxu0
        %v889 = vadd.f32 %v480, %v888
        %890 = vmatprep.mubr.bf16.mxu0 0
        %891 = vmatmul.mubr.bf16.gmra.mrb[0].mxu0 %v417
        %v892 = vpop.f32.mrb[0].mxu0
        %v893 = vadd.f32 %v476, %v892
        %v894 = vpop.f32.mrb[0].mxu0
        %v895 = vadd.f32 %v480, %v894
        %v896 = vpop.f32.mrb[0].mxu0
        %v897 = vadd.f32 %v476, %v896
        %v898 = vpop.f32.mrb[0].mxu0
        %v899 = vadd.f32 %v480, %v898
        %900 = vmatprep.mubr.bf16.mxu0 0
        %901 = vmatmul.mubr.bf16.gmra.mrb[0].mxu0 %v418
        %v902 = vpop.f32.mrb[0].mxu0
        %v903 = vadd.f32 %v476, %v902
        %v904 = vpop.f32.mrb[0].mxu0
        %v905 = vadd.f32 %v480, %v904
        %v906 = vpop.f32.mrb[0].mxu0
        %v907 = vadd.f32 %v476, %v906
        %v908 = vpop.f32.mrb[0].mxu0
        %v909 = vadd.f32 %v480, %v908
        %910 = vmatprep.mubr.bf16.mxu0 0
        %911 = vmatmul.mubr.bf16.gmra.mrb[0].mxu0 %v419
        %v912 = vpop.f32.mrb[0].mxu0
        %v913 = vadd.f32 %v476, %v912
        %v914 = vpop.f32.mrb[0].mxu0
        %v915 = vadd.f32 %v480, %v914
        %v916 = vpop.f32.mrb[0].mxu0
        %v917 = vadd.f32 %v476, %v916
        %v918 = vpop.f32.mrb[0].mxu0
        %v919 = vadd.f32 %v480, %v918
        %920 = vmatprep.mubr.bf16.mxu0 0
        %921 = vmatmul.mubr.bf16.gmra.mrb[0].mxu0 %v420
        %v922 = vpop.f32.mrb[0].mxu0
        %v923 = vadd.f32 %v476, %v922
        %v924 = vpop.f32.mrb[0].mxu0
        %v925 = vadd.f32 %v480, %v924
        %v926 = vpop.f32.mrb[0].mxu0
        %v927 = vadd.f32 %v476, %v926
        %v928 = vpop.f32.mrb[0].mxu0
        %v929 = vadd.f32 %v480, %v928
        %930 = vmatprep.mubr.bf16.mxu0 0
        %931 = vmatmul.mubr.bf16.gmra.mrb[0].mxu0 %v421
        %v932 = vpop.f32.mrb[0].mxu0
        %v933 = vadd.f32 %v476, %v932
        %v934 = vpop.f32.mrb[0].mxu0
        %v935 = vadd.f32 %v480, %v934
        %v936 = vpop.f32.mrb[0].mxu0
        %v937 = vadd.f32 %v476, %v936
        %v938 = vpop.f32.mrb[0].mxu0
        %v939 = vadd.f32 %v480, %v938
        %940 = vmatprep.mubr.bf16.mxu0 0
        %941 = vmatmul.mubr.bf16.gmra.mrb[0].mxu0 %v422
        %v942 = vpop.f32.mrb[0].mxu0
        %v943 = vadd.f32 %v476, %v942
        %v944 = vpop.f32.mrb[0].mxu0
        %v945 = vadd.f32 %v480, %v944
        %v946 = vpop.f32.mrb[0].mxu0
        %v947 = vadd.f32 %v476, %v946
        %v948 = vpop.f32.mrb[0].mxu0
        %v949 = vadd.f32 %v480, %v948
        %950 = vmatprep.mubr.bf16.mxu0 0
        %951 = vmatmul.mubr.bf16.gmra.mrb[0].mxu0 %v423
        %v952 = vpop.f32.mrb[0].mxu0
        %v953 = vadd.f32 %v476, %v952
        %v954 = vpop.f32.mrb[0].mxu0
        %v955 = vadd.f32 %v480, %v954
        %v956 = vpop.f32.mrb[0].mxu0
        %v957 = vadd.f32 %v476, %v956
        %v958 = vpop.f32.mrb[0].mxu0
        %v959 = vadd.f32 %v480, %v958
        %960 = vmatprep.mubr.bf16.mxu0 0
        %961 = vmatmul.mubr.bf16.gmra.mrb[0].mxu0 %v424
        %v962 = vpop.f32.mrb[0].mxu0
        %v963 = vadd.f32 %v476, %v962
        %v964 = vpop.f32.mrb[0].mxu0
        %v965 = vadd.f32 %v480, %v964
        %v966 = vpop.f32.mrb[0].mxu0
        %v967 = vadd.f32 %v476, %v966
        %v968 = vpop.f32.mrb[0].mxu0
        %v969 = vadd.f32 %v480, %v968
        %970 = vmatprep.mubr.bf16.mxu0 0
        %971 = vmatmul.mubr.bf16.gmra.mrb[0].mxu0 %v425
        %v972 = vpop.f32.mrb[0].mxu0
        %v973 = vadd.f32 %v476, %v972
        %v974 = vpop.f32.mrb[0].mxu0
        %v975 = vadd.f32 %v480, %v974
        %v976 = vpop.f32.mrb[0].mxu0
        %v977 = vadd.f32 %v476, %v976
        %v978 = vpop.f32.mrb[0].mxu0
        %v979 = vadd.f32 %v480, %v978
        %980 = vmatprep.mubr.bf16.mxu0 0
        %981 = vmatmul.mubr.bf16.gmra.mrb[0].mxu0 %v426
        %v982 = vpop.f32.mrb[0].mxu0
        %v983 = vadd.f32 %v476, %v982
        %v984 = vpop.f32.mrb[0].mxu0
        %v985 = vadd.f32 %v480, %v984
        %v986 = vpop.f32.mrb[0].mxu0
        %v987 = vadd.f32 %v476, %v986
        %v988 = vpop.f32.mrb[0].mxu0
        %v989 = vadd.f32 %v480, %v988
        %990 = vmatprep.mubr.bf16.mxu0 0
        %991 = vmatmul.mubr.bf16.gmra.mrb[0].mxu0 %v427
        %v992 = vpop.f32.mrb[0].mxu0
        %v993 = vadd.f32 %v476, %v992
        %v994 = vpop.f32.mrb[0].mxu0
        %v995 = vadd.f32 %v480, %v994
        %v996 = vpop.f32.mrb[0].mxu0
        %v997 = vadd.f32 %v476, %v996
        %v998 = vpop.f32.mrb[0].mxu0
        %v999 = vadd.f32 %v480, %v998
        %1000 = vmatprep.mubr.bf16.mxu0 0
        %1001 = vmatmul.mubr.bf16.gmra.mrb[0].mxu0 %v428
        %v1002 = vpop.f32.mrb[0].mxu0
        %v1003 = vadd.f32 %v476, %v1002
        %v1004 = vpop.f32.mrb[0].mxu0
        %v1005 = vadd.f32 %v480, %v1004
        %v1006 = vpop.f32.mrb[0].mxu0
        %v1007 = vadd.f32 %v476, %v1006
        %v1008 = vpop.f32.mrb[0].mxu0
        %v1009 = vadd.f32 %v480, %v1008
        %1010 = vmatprep.mubr.bf16.mxu0 0
        %1011 = vmatmul.mubr.bf16.gmra.mrb[0].mxu0 %v429
        %v1012 = vpop.f32.mrb[0].mxu0
        %v1013 = vadd.f32 %v476, %v1012
        %v1014 = vpop.f32.mrb[0].mxu0
        %v1015 = vadd.f32 %v480, %v1014
        %v1016 = vpop.f32.mrb[0].mxu0
        %v1017 = vadd.f32 %v476, %v1016
        %v1018 = vpop.f32.mrb[0].mxu0
        %v1019 = vadd.f32 %v480, %v1018
        %1020 = vmatprep.mubr.bf16.mxu0 0
        %1021 = vmatmul.mubr.bf16.gmra.mrb[0].mxu0 %v430
        %v1022 = vpop.f32.mrb[0].mxu0
        %v1023 = vadd.f32 %v476, %v1022
        %v1024 = vpop.f32.mrb[0].mxu0
        %v1025 = vadd.f32 %v480, %v1024
        %v1026 = vpop.f32.mrb[0].mxu0
        %v1027 = vadd.f32 %v476, %v1026
        %v1028 = vpop.f32.mrb[0].mxu0
        %v1029 = vadd.f32 %v480, %v1028
        %1030 = vdwg.mxu0
        %v1031 = vld [vmem:[%s3] sm:$0xf]
        %v1032 = vld [vmem:[%s4] sm:$0xf]
        %v1033 = vadd.f32 %v680, %v682
        %v1034 = vadd.f32 %v1033, %v873
        %v1035 = vadd.f32 %v1034, %v875
        %1036 = vadd.xlane.f32.xlu0 %v1035
        %v1037 = vpop.xlane.xlu0 %1036
        %v1038 = vadd.f32 %v684, %v686
        %v1039 = vadd.f32 %v1038, %v877
        %v1040 = vadd.f32 %v1039, %v879
        %1041 = vadd.xlane.f32.xlu0 %v1040
        %v1042 = vpop.xlane.xlu0 %1041
        %v1043 = vadd.f32 %v690, %v692
        %v1044 = vadd.f32 %v1043, %v883
        %v1045 = vadd.f32 %v1044, %v885
        %1046 = vadd.xlane.f32.xlu0 %v1045
        %v1047 = vpop.xlane.xlu0 %1046
        %v1048 = vadd.f32 %v694, %v696
        %v1049 = vadd.f32 %v1048, %v887
        %v1050 = vadd.f32 %v1049, %v889
        %1051 = vadd.xlane.f32.xlu0 %v1050
        %v1052 = vpop.xlane.xlu0 %1051
        %v1053 = vadd.f32 %v700, %v702
        %v1054 = vadd.f32 %v1053, %v893
        %v1055 = vadd.f32 %v1054, %v895
        %1056 = vadd.xlane.f32.xlu0 %v1055
        %v1057 = vpop.xlane.xlu0 %1056
        %v1058 = vadd.f32 %v704, %v706
        %v1059 = vadd.f32 %v1058, %v897
        %v1060 = vadd.f32 %v1059, %v899
        %1061 = vadd.xlane.f32.xlu0 %v1060
        %v1062 = vpop.xlane.xlu0 %1061
        %v1063 = vadd.f32 %v710, %v712
        %v1064 = vadd.f32 %v1063, %v903
        %v1065 = vadd.f32 %v1064, %v905
        %1066 = vadd.xlane.f32.xlu0 %v1065
        %v1067 = vpop.xlane.xlu0 %1066
        %v1068 = vadd.f32 %v714, %v716
        %v1069 = vadd.f32 %v1068, %v907
        %v1070 = vadd.f32 %v1069, %v909
        %1071 = vadd.xlane.f32.xlu0 %v1070
        %v1072 = vpop.xlane.xlu0 %1071
        %v1073 = vadd.f32 %v720, %v722
        %v1074 = vadd.f32 %v1073, %v913
        %v1075 = vadd.f32 %v1074, %v915
        %1076 = vadd.xlane.f32.xlu0 %v1075
        %v1077 = vpop.xlane.xlu0 %1076
        %v1078 = vadd.f32 %v724, %v726
        %v1079 = vadd.f32 %v1078, %v917
        %v1080 = vadd.f32 %v1079, %v919
        %1081 = vadd.xlane.f32.xlu0 %v1080
        %v1082 = vpop.xlane.xlu0 %1081
        %v1083 = vadd.f32 %v730, %v732
        %v1084 = vadd.f32 %v1083, %v923
        %v1085 = vadd.f32 %v1084, %v925
        %1086 = vadd.xlane.f32.xlu0 %v1085
        %v1087 = vpop.xlane.xlu0 %1086
        %v1088 = vadd.f32 %v734, %v736
        %v1089 = vadd.f32 %v1088, %v927
        %v1090 = vadd.f32 %v1089, %v929
        %1091 = vadd.xlane.f32.xlu0 %v1090
        %v1092 = vpop.xlane.xlu0 %1091
        %v1093 = vadd.f32 %v740, %v742
        %v1094 = vadd.f32 %v1093, %v933
        %v1095 = vadd.f32 %v1094, %v935
        %1096 = vadd.xlane.f32.xlu0 %v1095
        %v1097 = vpop.xlane.xlu0 %1096
        %v1098 = vadd.f32 %v744, %v746
        %v1099 = vadd.f32 %v1098, %v937
        %v1100 = vadd.f32 %v1099, %v939
        %1101 = vadd.xlane.f32.xlu0 %v1100
        %v1102 = vpop.xlane.xlu0 %1101
        %v1103 = vadd.f32 %v750, %v752
        %v1104 = vadd.f32 %v1103, %v943
        %v1105 = vadd.f32 %v1104, %v945
        %1106 = vadd.xlane.f32.xlu0 %v1105
        %v1107 = vpop.xlane.xlu0 %1106
        %v1108 = vadd.f32 %v754, %v756
        %v1109 = vadd.f32 %v1108, %v947
        %v1110 = vadd.f32 %v1109, %v949
        %1111 = vadd.xlane.f32.xlu0 %v1110
        %v1112 = vpop.xlane.xlu0 %1111
        %v1113 = vadd.f32 %v760, %v762
        %v1114 = vadd.f32 %v1113, %v953
        %v1115 = vadd.f32 %v1114, %v955
        %1116 = vadd.xlane.f32.xlu0 %v1115
        %v1117 = vpop.xlane.xlu0 %1116
        %v1118 = vadd.f32 %v764, %v766
        %v1119 = vadd.f32 %v1118, %v957
        %v1120 = vadd.f32 %v1119, %v959
        %1121 = vadd.xlane.f32.xlu0 %v1120
        %v1122 = vpop.xlane.xlu0 %1121
        %v1123 = vadd.f32 %v770, %v772
        %v1124 = vadd.f32 %v1123, %v963
        %v1125 = vadd.f32 %v1124, %v965
        %1126 = vadd.xlane.f32.xlu0 %v1125
        %v1127 = vpop.xlane.xlu0 %1126
        %v1128 = vadd.f32 %v774, %v776
        %v1129 = vadd.f32 %v1128, %v967
        %v1130 = vadd.f32 %v1129, %v969
        %1131 = vadd.xlane.f32.xlu0 %v1130
        %v1132 = vpop.xlane.xlu0 %1131
        %v1133 = vadd.f32 %v780, %v782
        %v1134 = vadd.f32 %v1133, %v973
        %v1135 = vadd.f32 %v1134, %v975
        %1136 = vadd.xlane.f32.xlu0 %v1135
        %v1137 = vpop.xlane.xlu0 %1136
        %v1138 = vadd.f32 %v784, %v786
        %v1139 = vadd.f32 %v1138, %v977
        %v1140 = vadd.f32 %v1139, %v979
        %1141 = vadd.xlane.f32.xlu0 %v1140
        %v1142 = vpop.xlane.xlu0 %1141
        %v1143 = vadd.f32 %v790, %v792
        %v1144 = vadd.f32 %v1143, %v983
        %v1145 = vadd.f32 %v1144, %v985
        %1146 = vadd.xlane.f32.xlu0 %v1145
        %v1147 = vpop.xlane.xlu0 %1146
        %v1148 = vadd.f32 %v794, %v796
        %v1149 = vadd.f32 %v1148, %v987
        %v1150 = vadd.f32 %v1149, %v989
        %1151 = vadd.xlane.f32.xlu0 %v1150
        %v1152 = vpop.xlane.xlu0 %1151
        %v1153 = vadd.f32 %v800, %v802
        %v1154 = vadd.f32 %v1153, %v993
        %v1155 = vadd.f32 %v1154, %v995
        %1156 = vadd.xlane.f32.xlu0 %v1155
        %v1157 = vpop.xlane.xlu0 %1156
        %v1158 = vadd.f32 %v804, %v806
        %v1159 = vadd.f32 %v1158, %v997
        %v1160 = vadd.f32 %v1159, %v999
        %1161 = vadd.xlane.f32.xlu0 %v1160
        %v1162 = vpop.xlane.xlu0 %1161
        %v1163 = vadd.f32 %v810, %v812
        %v1164 = vadd.f32 %v1163, %v1003
        %v1165 = vadd.f32 %v1164, %v1005
        %1166 = vadd.xlane.f32.xlu0 %v1165
        %v1167 = vpop.xlane.xlu0 %1166
        %v1168 = vadd.f32 %v814, %v816
        %v1169 = vadd.f32 %v1168, %v1007
        %v1170 = vadd.f32 %v1169, %v1009
        %1171 = vadd.xlane.f32.xlu0 %v1170
        %v1172 = vpop.xlane.xlu0 %1171
        %v1173 = vadd.f32 %v820, %v822
        %v1174 = vadd.f32 %v1173, %v1013
        %v1175 = vadd.f32 %v1174, %v1015
        %1176 = vadd.xlane.f32.xlu0 %v1175
        %v1177 = vpop.xlane.xlu0 %1176
        %v1178 = vadd.f32 %v824, %v826
        %v1179 = vadd.f32 %v1178, %v1017
        %v1180 = vadd.f32 %v1179, %v1019
        %1181 = vadd.xlane.f32.xlu0 %v1180
        %v1182 = vpop.xlane.xlu0 %1181
        %v1183 = vadd.f32 %v830, %v832
        %v1184 = vadd.f32 %v1183, %v1023
        %v1185 = vadd.f32 %v1184, %v1025
        %1186 = vadd.xlane.f32.xlu0 %v1185
        %v1187 = vpop.xlane.xlu0 %1186
        %v1188 = vadd.f32 %v834, %v836
        %v1189 = vadd.f32 %v1188, %v1027
        %v1190 = vadd.f32 %v1189, %v1029
        %1191 = vadd.xlane.f32.xlu0 %v1190
        %v1192 = vpop.xlane.xlu0 %1191
        %v1193 = vmul.f32 %v1037, 0.001953125
        %v1194 = vmul.f32 %v1042, 0.001953125
        %v1195 = vmul.f32 %v1047, 0.001953125
        %v1196 = vmul.f32 %v1052, 0.001953125
        %v1197 = vmul.f32 %v1057, 0.001953125
        %v1198 = vmul.f32 %v1062, 0.001953125
        %v1199 = vmul.f32 %v1067, 0.001953125
        %v1200 = vmul.f32 %v1072, 0.001953125
        %v1201 = vmul.f32 %v1077, 0.001953125
        %v1202 = vmul.f32 %v1082, 0.001953125
        %v1203 = vmul.f32 %v1087, 0.001953125
        %v1204 = vmul.f32 %v1092, 0.001953125
        %v1205 = vmul.f32 %v1097, 0.001953125
        %v1206 = vmul.f32 %v1102, 0.001953125
        %v1207 = vmul.f32 %v1107, 0.001953125
        %v1208 = vmul.f32 %v1112, 0.001953125
        %v1209 = vmul.f32 %v1117, 0.001953125
        %v1210 = vmul.f32 %v1122, 0.001953125
        %v1211 = vmul.f32 %v1127, 0.001953125
        %v1212 = vmul.f32 %v1132, 0.001953125
        %v1213 = vmul.f32 %v1137, 0.001953125
        %v1214 = vmul.f32 %v1142, 0.001953125
        %v1215 = vmul.f32 %v1147, 0.001953125
        %v1216 = vmul.f32 %v1152, 0.001953125
        %v1217 = vmul.f32 %v1157, 0.001953125
        %v1218 = vmul.f32 %v1162, 0.001953125
        %v1219 = vmul.f32 %v1167, 0.001953125
        %v1220 = vmul.f32 %v1172, 0.001953125
        %v1221 = vmul.f32 %v1177, 0.001953125
        %v1222 = vmul.f32 %v1182, 0.001953125
        %v1223 = vmul.f32 %v1187, 0.001953125
        %v1224 = vmul.f32 %v1192, 0.001953125
        %v1225 = vmul.f32 %v680, %v680
        %v1226 = vmul.f32 %v682, %v682
        %v1227 = vmul.f32 %v873, %v873
        %v1228 = vmul.f32 %v875, %v875
        %v1229 = vmul.f32 %v684, %v684
        %v1230 = vmul.f32 %v686, %v686
        %v1231 = vmul.f32 %v877, %v877
        %v1232 = vmul.f32 %v879, %v879
        %v1233 = vmul.f32 %v690, %v690
        %v1234 = vmul.f32 %v692, %v692
        %v1235 = vmul.f32 %v883, %v883
        %v1236 = vmul.f32 %v885, %v885
        %v1237 = vmul.f32 %v694, %v694
        %v1238 = vmul.f32 %v696, %v696
        %v1239 = vmul.f32 %v887, %v887
        %v1240 = vmul.f32 %v889, %v889
        %v1241 = vmul.f32 %v700, %v700
        %v1242 = vmul.f32 %v702, %v702
        %v1243 = vmul.f32 %v893, %v893
        %v1244 = vmul.f32 %v895, %v895
        %v1245 = vmul.f32 %v704, %v704
        %v1246 = vmul.f32 %v706, %v706
        %v1247 = vmul.f32 %v897, %v897
        %v1248 = vmul.f32 %v899, %v899
        %v1249 = vmul.f32 %v710, %v710
        %v1250 = vmul.f32 %v712, %v712
        %v1251 = vmul.f32 %v903, %v903
        %v1252 = vmul.f32 %v905, %v905
        %v1253 = vmul.f32 %v714, %v714
        %v1254 = vmul.f32 %v716, %v716
        %v1255 = vmul.f32 %v907, %v907
        %v1256 = vmul.f32 %v909, %v909
        %v1257 = vmul.f32 %v720, %v720
        %v1258 = vmul.f32 %v722, %v722
        %v1259 = vmul.f32 %v913, %v913
        %v1260 = vmul.f32 %v915, %v915
        %v1261 = vmul.f32 %v724, %v724
        %v1262 = vmul.f32 %v726, %v726
        %v1263 = vmul.f32 %v917, %v917
        %v1264 = vmul.f32 %v919, %v919
        %v1265 = vmul.f32 %v730, %v730
        %v1266 = vmul.f32 %v732, %v732
        %v1267 = vmul.f32 %v923, %v923
        %v1268 = vmul.f32 %v925, %v925
        %v1269 = vmul.f32 %v734, %v734
        %v1270 = vmul.f32 %v736, %v736
        %v1271 = vmul.f32 %v927, %v927
        %v1272 = vmul.f32 %v929, %v929
        %v1273 = vmul.f32 %v740, %v740
        %v1274 = vmul.f32 %v742, %v742
        %v1275 = vmul.f32 %v933, %v933
        %v1276 = vmul.f32 %v935, %v935
        %v1277 = vmul.f32 %v744, %v744
        %v1278 = vmul.f32 %v746, %v746
        %v1279 = vmul.f32 %v937, %v937
        %v1280 = vmul.f32 %v939, %v939
        %v1281 = vmul.f32 %v750, %v750
        %v1282 = vmul.f32 %v752, %v752
        %v1283 = vmul.f32 %v943, %v943
        %v1284 = vmul.f32 %v945, %v945
        %v1285 = vmul.f32 %v754, %v754
        %v1286 = vmul.f32 %v756, %v756
        %v1287 = vmul.f32 %v947, %v947
        %v1288 = vmul.f32 %v949, %v949
        %v1289 = vmul.f32 %v760, %v760
        %v1290 = vmul.f32 %v762, %v762
        %v1291 = vmul.f32 %v953, %v953
        %v1292 = vmul.f32 %v955, %v955
        %v1293 = vmul.f32 %v764, %v764
        %v1294 = vmul.f32 %v766, %v766
        %v1295 = vmul.f32 %v957, %v957
        %v1296 = vmul.f32 %v959, %v959
        %v1297 = vmul.f32 %v770, %v770
        %v1298 = vmul.f32 %v772, %v772
        %v1299 = vmul.f32 %v963, %v963
        %v1300 = vmul.f32 %v965, %v965
        %v1301 = vmul.f32 %v774, %v774
        %v1302 = vmul.f32 %v776, %v776
        %v1303 = vmul.f32 %v967, %v967
        %v1304 = vmul.f32 %v969, %v969
        %v1305 = vmul.f32 %v780, %v780
        %v1306 = vmul.f32 %v782, %v782
        %v1307 = vmul.f32 %v973, %v973
        %v1308 = vmul.f32 %v975, %v975
        %v1309 = vmul.f32 %v784, %v784
        %v1310 = vmul.f32 %v786, %v786
        %v1311 = vmul.f32 %v977, %v977
        %v1312 = vmul.f32 %v979, %v979
        %v1313 = vmul.f32 %v790, %v790
        %v1314 = vmul.f32 %v792, %v792
        %v1315 = vmul.f32 %v983, %v983
        %v1316 = vmul.f32 %v985, %v985
        %v1317 = vmul.f32 %v794, %v794
        %v1318 = vmul.f32 %v796, %v796
        %v1319 = vmul.f32 %v987, %v987
        %v1320 = vmul.f32 %v989, %v989
        %v1321 = vmul.f32 %v800, %v800
        %v1322 = vmul.f32 %v802, %v802
        %v1323 = vmul.f32 %v993, %v993
        %v1324 = vmul.f32 %v995, %v995
        %v1325 = vmul.f32 %v804, %v804
        %v1326 = vmul.f32 %v806, %v806
        %v1327 = vmul.f32 %v997, %v997
        %v1328 = vmul.f32 %v999, %v999
        %v1329 = vmul.f32 %v810, %v810
        %v1330 = vmul.f32 %v812, %v812
        %v1331 = vmul.f32 %v1003, %v1003
        %v1332 = vmul.f32 %v1005, %v1005
        %v1333 = vmul.f32 %v814, %v814
        %v1334 = vmul.f32 %v816, %v816
        %v1335 = vmul.f32 %v1007, %v1007
        %v1336 = vmul.f32 %v1009, %v1009
        %v1337 = vmul.f32 %v820, %v820
        %v1338 = vmul.f32 %v822, %v822
        %v1339 = vmul.f32 %v1013, %v1013
        %v1340 = vmul.f32 %v1015, %v1015
        %v1341 = vmul.f32 %v824, %v824
        %v1342 = vmul.f32 %v826, %v826
        %v1343 = vmul.f32 %v1017, %v1017
        %v1344 = vmul.f32 %v1019, %v1019
        %v1345 = vmul.f32 %v830, %v830
        %v1346 = vmul.f32 %v832, %v832
        %v1347 = vmul.f32 %v1023, %v1023
        %v1348 = vmul.f32 %v1025, %v1025
        %v1349 = vmul.f32 %v834, %v834
        %v1350 = vmul.f32 %v836, %v836
        %v1351 = vmul.f32 %v1027, %v1027
        %v1352 = vmul.f32 %v1029, %v1029
        %v1353 = vadd.f32 %v1225, %v1226
        %v1354 = vadd.f32 %v1353, %v1227
        %v1355 = vadd.f32 %v1354, %v1228
        %1356 = vadd.xlane.f32.xlu0 %v1355
        %v1357 = vpop.xlane.xlu0 %1356
        %v1358 = vadd.f32 %v1229, %v1230
        %v1359 = vadd.f32 %v1358, %v1231
        %v1360 = vadd.f32 %v1359, %v1232
        %1361 = vadd.xlane.f32.xlu0 %v1360
        %v1362 = vpop.xlane.xlu0 %1361
        %v1363 = vadd.f32 %v1233, %v1234
        %v1364 = vadd.f32 %v1363, %v1235
        %v1365 = vadd.f32 %v1364, %v1236
        %1366 = vadd.xlane.f32.xlu0 %v1365
        %v1367 = vpop.xlane.xlu0 %1366
        %v1368 = vadd.f32 %v1237, %v1238
        %v1369 = vadd.f32 %v1368, %v1239
        %v1370 = vadd.f32 %v1369, %v1240
        %1371 = vadd.xlane.f32.xlu0 %v1370
        %v1372 = vpop.xlane.xlu0 %1371
        %v1373 = vadd.f32 %v1241, %v1242
        %v1374 = vadd.f32 %v1373, %v1243
        %v1375 = vadd.f32 %v1374, %v1244
        %1376 = vadd.xlane.f32.xlu0 %v1375
        %v1377 = vpop.xlane.xlu0 %1376
        %v1378 = vadd.f32 %v1245, %v1246
        %v1379 = vadd.f32 %v1378, %v1247
        %v1380 = vadd.f32 %v1379, %v1248
        %1381 = vadd.xlane.f32.xlu0 %v1380
        %v1382 = vpop.xlane.xlu0 %1381
        %v1383 = vadd.f32 %v1249, %v1250
        %v1384 = vadd.f32 %v1383, %v1251
        %v1385 = vadd.f32 %v1384, %v1252
        %1386 = vadd.xlane.f32.xlu0 %v1385
        %v1387 = vpop.xlane.xlu0 %1386
        %v1388 = vadd.f32 %v1253, %v1254
        %v1389 = vadd.f32 %v1388, %v1255
        %v1390 = vadd.f32 %v1389, %v1256
        %1391 = vadd.xlane.f32.xlu0 %v1390
        %v1392 = vpop.xlane.xlu0 %1391
        %v1393 = vadd.f32 %v1257, %v1258
        %v1394 = vadd.f32 %v1393, %v1259
        %v1395 = vadd.f32 %v1394, %v1260
        %1396 = vadd.xlane.f32.xlu0 %v1395
        %v1397 = vpop.xlane.xlu0 %1396
        %v1398 = vadd.f32 %v1261, %v1262
        %v1399 = vadd.f32 %v1398, %v1263
        %v1400 = vadd.f32 %v1399, %v1264
        %1401 = vadd.xlane.f32.xlu0 %v1400
        %v1402 = vpop.xlane.xlu0 %1401
        %v1403 = vadd.f32 %v1265, %v1266
        %v1404 = vadd.f32 %v1403, %v1267
        %v1405 = vadd.f32 %v1404, %v1268
        %1406 = vadd.xlane.f32.xlu0 %v1405
        %v1407 = vpop.xlane.xlu0 %1406
        %v1408 = vadd.f32 %v1269, %v1270
        %v1409 = vadd.f32 %v1408, %v1271
        %v1410 = vadd.f32 %v1409, %v1272
        %1411 = vadd.xlane.f32.xlu0 %v1410
        %v1412 = vpop.xlane.xlu0 %1411
        %v1413 = vadd.f32 %v1273, %v1274
        %v1414 = vadd.f32 %v1413, %v1275
        %v1415 = vadd.f32 %v1414, %v1276
        %1416 = vadd.xlane.f32.xlu0 %v1415
        %v1417 = vpop.xlane.xlu0 %1416
        %v1418 = vadd.f32 %v1277, %v1278
        %v1419 = vadd.f32 %v1418, %v1279
        %v1420 = vadd.f32 %v1419, %v1280
        %1421 = vadd.xlane.f32.xlu0 %v1420
        %v1422 = vpop.xlane.xlu0 %1421
        %v1423 = vadd.f32 %v1281, %v1282
        %v1424 = vadd.f32 %v1423, %v1283
        %v1425 = vadd.f32 %v1424, %v1284
        %1426 = vadd.xlane.f32.xlu0 %v1425
        %v1427 = vpop.xlane.xlu0 %1426
        %v1428 = vadd.f32 %v1285, %v1286
        %v1429 = vadd.f32 %v1428, %v1287
        %v1430 = vadd.f32 %v1429, %v1288
        %1431 = vadd.xlane.f32.xlu0 %v1430
        %v1432 = vpop.xlane.xlu0 %1431
        %v1433 = vadd.f32 %v1289, %v1290
        %v1434 = vadd.f32 %v1433, %v1291
        %v1435 = vadd.f32 %v1434, %v1292
        %1436 = vadd.xlane.f32.xlu0 %v1435
        %v1437 = vpop.xlane.xlu0 %1436
        %v1438 = vadd.f32 %v1293, %v1294
        %v1439 = vadd.f32 %v1438, %v1295
        %v1440 = vadd.f32 %v1439, %v1296
        %1441 = vadd.xlane.f32.xlu0 %v1440
        %v1442 = vpop.xlane.xlu0 %1441
        %v1443 = vadd.f32 %v1297, %v1298
        %v1444 = vadd.f32 %v1443, %v1299
        %v1445 = vadd.f32 %v1444, %v1300
        %1446 = vadd.xlane.f32.xlu0 %v1445
        %v1447 = vpop.xlane.xlu0 %1446
        %v1448 = vadd.f32 %v1301, %v1302
        %v1449 = vadd.f32 %v1448, %v1303
        %v1450 = vadd.f32 %v1449, %v1304
        %1451 = vadd.xlane.f32.xlu0 %v1450
        %v1452 = vpop.xlane.xlu0 %1451
        %v1453 = vadd.f32 %v1305, %v1306
        %v1454 = vadd.f32 %v1453, %v1307
        %v1455 = vadd.f32 %v1454, %v1308
        %1456 = vadd.xlane.f32.xlu0 %v1455
        %v1457 = vpop.xlane.xlu0 %1456
        %v1458 = vadd.f32 %v1309, %v1310
        %v1459 = vadd.f32 %v1458, %v1311
        %v1460 = vadd.f32 %v1459, %v1312
        %1461 = vadd.xlane.f32.xlu0 %v1460
        %v1462 = vpop.xlane.xlu0 %1461
        %v1463 = vadd.f32 %v1313, %v1314
        %v1464 = vadd.f32 %v1463, %v1315
        %v1465 = vadd.f32 %v1464, %v1316
        %1466 = vadd.xlane.f32.xlu0 %v1465
        %v1467 = vpop.xlane.xlu0 %1466
        %v1468 = vadd.f32 %v1317, %v1318
        %v1469 = vadd.f32 %v1468, %v1319
        %v1470 = vadd.f32 %v1469, %v1320
        %1471 = vadd.xlane.f32.xlu0 %v1470
        %v1472 = vpop.xlane.xlu0 %1471
        %v1473 = vadd.f32 %v1321, %v1322
        %v1474 = vadd.f32 %v1473, %v1323
        %v1475 = vadd.f32 %v1474, %v1324
        %1476 = vadd.xlane.f32.xlu0 %v1475
        %v1477 = vpop.xlane.xlu0 %1476
        %v1478 = vadd.f32 %v1325, %v1326
        %v1479 = vadd.f32 %v1478, %v1327
        %v1480 = vadd.f32 %v1479, %v1328
        %1481 = vadd.xlane.f32.xlu0 %v1480
        %v1482 = vpop.xlane.xlu0 %1481
        %v1483 = vadd.f32 %v1329, %v1330
        %v1484 = vadd.f32 %v1483, %v1331
        %v1485 = vadd.f32 %v1484, %v1332
        %1486 = vadd.xlane.f32.xlu0 %v1485
        %v1487 = vpop.xlane.xlu0 %1486
        %v1488 = vadd.f32 %v1333, %v1334
        %v1489 = vadd.f32 %v1488, %v1335
        %v1490 = vadd.f32 %v1489, %v1336
        %1491 = vadd.xlane.f32.xlu0 %v1490
        %v1492 = vpop.xlane.xlu0 %1491
        %v1493 = vadd.f32 %v1337, %v1338
        %v1494 = vadd.f32 %v1493, %v1339
        %v1495 = vadd.f32 %v1494, %v1340
        %1496 = vadd.xlane.f32.xlu0 %v1495
        %v1497 = vpop.xlane.xlu0 %1496
        %v1498 = vadd.f32 %v1341, %v1342
        %v1499 = vadd.f32 %v1498, %v1343
        %v1500 = vadd.f32 %v1499, %v1344
        %1501 = vadd.xlane.f32.xlu0 %v1500
        %v1502 = vpop.xlane.xlu0 %1501
        %v1503 = vadd.f32 %v1345, %v1346
        %v1504 = vadd.f32 %v1503, %v1347
        %v1505 = vadd.f32 %v1504, %v1348
        %1506 = vadd.xlane.f32.xlu0 %v1505
        %v1507 = vpop.xlane.xlu0 %1506
        %v1508 = vadd.f32 %v1349, %v1350
        %v1509 = vadd.f32 %v1508, %v1351
        %v1510 = vadd.f32 %v1509, %v1352
        %1511 = vadd.xlane.f32.xlu0 %v1510
        %v1512 = vpop.xlane.xlu0 %1511
        %v1513 = vmul.f32 %v1357, 0.001953125
        %v1514 = vmul.f32 %v1362, 0.001953125
        %v1515 = vmul.f32 %v1367, 0.001953125
        %v1516 = vmul.f32 %v1372, 0.001953125
        %v1517 = vmul.f32 %v1377, 0.001953125
        %v1518 = vmul.f32 %v1382, 0.001953125
        %v1519 = vmul.f32 %v1387, 0.001953125
        %v1520 = vmul.f32 %v1392, 0.001953125
        %v1521 = vmul.f32 %v1397, 0.001953125
        %v1522 = vmul.f32 %v1402, 0.001953125
        %v1523 = vmul.f32 %v1407, 0.001953125
        %v1524 = vmul.f32 %v1412, 0.001953125
        %v1525 = vmul.f32 %v1417, 0.001953125
        %v1526 = vmul.f32 %v1422, 0.001953125
        %v1527 = vmul.f32 %v1427, 0.001953125
        %v1528 = vmul.f32 %v1432, 0.001953125
        %v1529 = vmul.f32 %v1437, 0.001953125
        %v1530 = vmul.f32 %v1442, 0.001953125
        %v1531 = vmul.f32 %v1447, 0.001953125
        %v1532 = vmul.f32 %v1452, 0.001953125
        %v1533 = vmul.f32 %v1457, 0.001953125
        %v1534 = vmul.f32 %v1462, 0.001953125
        %v1535 = vmul.f32 %v1467, 0.001953125
        %v1536 = vmul.f32 %v1472, 0.001953125
        %v1537 = vmul.f32 %v1477, 0.001953125
        %v1538 = vmul.f32 %v1482, 0.001953125
        %v1539 = vmul.f32 %v1487, 0.001953125
        %v1540 = vmul.f32 %v1492, 0.001953125
        %v1541 = vmul.f32 %v1497, 0.001953125
        %v1542 = vmul.f32 %v1502, 0.001953125
        %v1543 = vmul.f32 %v1507, 0.001953125
        %v1544 = vmul.f32 %v1512, 0.001953125
        %v1545 = vmul.f32 %v1193, %v1193
        %v1546 = vmul.f32 %v1194, %v1194
        %v1547 = vmul.f32 %v1195, %v1195
        %v1548 = vmul.f32 %v1196, %v1196
        %v1549 = vmul.f32 %v1197, %v1197
        %v1550 = vmul.f32 %v1198, %v1198
        %v1551 = vmul.f32 %v1199, %v1199
        %v1552 = vmul.f32 %v1200, %v1200
        %v1553 = vmul.f32 %v1201, %v1201
        %v1554 = vmul.f32 %v1202, %v1202
        %v1555 = vmul.f32 %v1203, %v1203
        %v1556 = vmul.f32 %v1204, %v1204
        %v1557 = vmul.f32 %v1205, %v1205
        %v1558 = vmul.f32 %v1206, %v1206
        %v1559 = vmul.f32 %v1207, %v1207
        %v1560 = vmul.f32 %v1208, %v1208
        %v1561 = vmul.f32 %v1209, %v1209
        %v1562 = vmul.f32 %v1210, %v1210
        %v1563 = vmul.f32 %v1211, %v1211
        %v1564 = vmul.f32 %v1212, %v1212
        %v1565 = vmul.f32 %v1213, %v1213
        %v1566 = vmul.f32 %v1214, %v1214
        %v1567 = vmul.f32 %v1215, %v1215
        %v1568 = vmul.f32 %v1216, %v1216
        %v1569 = vmul.f32 %v1217, %v1217
        %v1570 = vmul.f32 %v1218, %v1218
        %v1571 = vmul.f32 %v1219, %v1219
        %v1572 = vmul.f32 %v1220, %v1220
        %v1573 = vmul.f32 %v1221, %v1221
        %v1574 = vmul.f32 %v1222, %v1222
        %v1575 = vmul.f32 %v1223, %v1223
        %v1576 = vmul.f32 %v1224, %v1224
        %v1577 = vsub.f32 %v1513, %v1545
        %v1578 = vsub.f32 %v1514, %v1546
        %v1579 = vsub.f32 %v1515, %v1547
        %v1580 = vsub.f32 %v1516, %v1548
        %v1581 = vsub.f32 %v1517, %v1549
        %v1582 = vsub.f32 %v1518, %v1550
        %v1583 = vsub.f32 %v1519, %v1551
        %v1584 = vsub.f32 %v1520, %v1552
        %v1585 = vsub.f32 %v1521, %v1553
        %v1586 = vsub.f32 %v1522, %v1554
        %v1587 = vsub.f32 %v1523, %v1555
        %v1588 = vsub.f32 %v1524, %v1556
        %v1589 = vsub.f32 %v1525, %v1557
        %v1590 = vsub.f32 %v1526, %v1558
        %v1591 = vsub.f32 %v1527, %v1559
        %v1592 = vsub.f32 %v1528, %v1560
        %v1593 = vsub.f32 %v1529, %v1561
        %v1594 = vsub.f32 %v1530, %v1562
        %v1595 = vsub.f32 %v1531, %v1563
        %v1596 = vsub.f32 %v1532, %v1564
        %v1597 = vsub.f32 %v1533, %v1565
        %v1598 = vsub.f32 %v1534, %v1566
        %v1599 = vsub.f32 %v1535, %v1567
        %v1600 = vsub.f32 %v1536, %v1568
        %v1601 = vsub.f32 %v1537, %v1569
        %v1602 = vsub.f32 %v1538, %v1570
        %v1603 = vsub.f32 %v1539, %v1571
        %v1604 = vsub.f32 %v1540, %v1572
        %v1605 = vsub.f32 %v1541, %v1573
        %v1606 = vsub.f32 %v1542, %v1574
        %v1607 = vsub.f32 %v1543, %v1575
        %v1608 = vsub.f32 %v1544, %v1576
        %v1609 = vadd.f32 %v1577, 1e-05
        %v1610 = vadd.f32 %v1578, 1e-05
        %v1611 = vadd.f32 %v1579, 1e-05
        %v1612 = vadd.f32 %v1580, 1e-05
        %v1613 = vadd.f32 %v1581, 1e-05
        %v1614 = vadd.f32 %v1582, 1e-05
        %v1615 = vadd.f32 %v1583, 1e-05
        %v1616 = vadd.f32 %v1584, 1e-05
        %v1617 = vadd.f32 %v1585, 1e-05
        %v1618 = vadd.f32 %v1586, 1e-05
        %v1619 = vadd.f32 %v1587, 1e-05
        %v1620 = vadd.f32 %v1588, 1e-05
        %v1621 = vadd.f32 %v1589, 1e-05
        %v1622 = vadd.f32 %v1590, 1e-05
        %v1623 = vadd.f32 %v1591, 1e-05
        %v1624 = vadd.f32 %v1592, 1e-05
        %v1625 = vadd.f32 %v1593, 1e-05
        %v1626 = vadd.f32 %v1594, 1e-05
        %v1627 = vadd.f32 %v1595, 1e-05
        %v1628 = vadd.f32 %v1596, 1e-05
        %v1629 = vadd.f32 %v1597, 1e-05
        %v1630 = vadd.f32 %v1598, 1e-05
        %v1631 = vadd.f32 %v1599, 1e-05
        %v1632 = vadd.f32 %v1600, 1e-05
        %v1633 = vadd.f32 %v1601, 1e-05
        %v1634 = vadd.f32 %v1602, 1e-05
        %v1635 = vadd.f32 %v1603, 1e-05
        %v1636 = vadd.f32 %v1604, 1e-05
        %v1637 = vadd.f32 %v1605, 1e-05
        %v1638 = vadd.f32 %v1606, 1e-05
        %v1639 = vadd.f32 %v1607, 1e-05
        %v1640 = vadd.f32 %v1608, 1e-05
        %v1641 = vrsqrt.pop %v1609
        %v1642 = vrsqrt.pop %v1610
        %v1643 = vrsqrt.pop %v1611
        %v1644 = vrsqrt.pop %v1612
        %v1645 = vrsqrt.pop %v1613
        %v1646 = vrsqrt.pop %v1614
        %v1647 = vrsqrt.pop %v1615
        %v1648 = vrsqrt.pop %v1616
        %v1649 = vrsqrt.pop %v1617
        %v1650 = vrsqrt.pop %v1618
        %v1651 = vrsqrt.pop %v1619
        %v1652 = vrsqrt.pop %v1620
        %v1653 = vrsqrt.pop %v1621
        %v1654 = vrsqrt.pop %v1622
        %v1655 = vrsqrt.pop %v1623
        %v1656 = vrsqrt.pop %v1624
        %v1657 = vrsqrt.pop %v1625
        %v1658 = vrsqrt.pop %v1626
        %v1659 = vrsqrt.pop %v1627
        %v1660 = vrsqrt.pop %v1628
        %v1661 = vrsqrt.pop %v1629
        %v1662 = vrsqrt.pop %v1630
        %v1663 = vrsqrt.pop %v1631
        %v1664 = vrsqrt.pop %v1632
        %v1665 = vrsqrt.pop %v1633
        %v1666 = vrsqrt.pop %v1634
        %v1667 = vrsqrt.pop %v1635
        %v1668 = vrsqrt.pop %v1636
        %v1669 = vrsqrt.pop %v1637
        %v1670 = vrsqrt.pop %v1638
        %v1671 = vrsqrt.pop %v1639
        %v1672 = vrsqrt.pop %v1640
        %v1674 = vlaneseq
        %v1675 = vshrl.u32 %v1674, 7
        %v1676 = vsub.s32 0, %v1675
        %v1677 = vrot.slane %v1031, %v1676
        %v1678 = vlaneseq
        %v1679 = vshrl.u32 %v1678, 7
        %v1680 = vsub.s32 1, %v1679
        %v1681 = vrot.slane %v1031, %v1680
        %v1682 = vlaneseq
        %v1683 = vshrl.u32 %v1682, 7
        %v1684 = vsub.s32 2, %v1683
        %v1685 = vrot.slane %v1031, %v1684
        %v1686 = vlaneseq
        %v1687 = vshrl.u32 %v1686, 7
        %v1688 = vsub.s32 3, %v1687
        %v1689 = vrot.slane %v1031, %v1688
        %v1694 = vmul.f32 %v1641, %v1677
        %v1695 = vmul.f32 %v1641, %v1681
        %v1696 = vmul.f32 %v1641, %v1685
        %v1697 = vmul.f32 %v1641, %v1689
        %v1698 = vmul.f32 %v1642, %v1677
        %v1699 = vmul.f32 %v1642, %v1681
        %v1700 = vmul.f32 %v1642, %v1685
        %v1701 = vmul.f32 %v1642, %v1689
        %v1702 = vmul.f32 %v1643, %v1677
        %v1703 = vmul.f32 %v1643, %v1681
        %v1704 = vmul.f32 %v1643, %v1685
        %v1705 = vmul.f32 %v1643, %v1689
        %v1706 = vmul.f32 %v1644, %v1677
        %v1707 = vmul.f32 %v1644, %v1681
        %v1708 = vmul.f32 %v1644, %v1685
        %v1709 = vmul.f32 %v1644, %v1689
        %v1710 = vmul.f32 %v1645, %v1677
        %v1711 = vmul.f32 %v1645, %v1681
        %v1712 = vmul.f32 %v1645, %v1685
        %v1713 = vmul.f32 %v1645, %v1689
        %v1714 = vmul.f32 %v1646, %v1677
        %v1715 = vmul.f32 %v1646, %v1681
        %v1716 = vmul.f32 %v1646, %v1685
        %v1717 = vmul.f32 %v1646, %v1689
        %v1718 = vmul.f32 %v1647, %v1677
        %v1719 = vmul.f32 %v1647, %v1681
        %v1720 = vmul.f32 %v1647, %v1685
        %v1721 = vmul.f32 %v1647, %v1689
        %v1722 = vmul.f32 %v1648, %v1677
        %v1723 = vmul.f32 %v1648, %v1681
        %v1724 = vmul.f32 %v1648, %v1685
        %v1725 = vmul.f32 %v1648, %v1689
        %v1726 = vmul.f32 %v1649, %v1677
        %v1727 = vmul.f32 %v1649, %v1681
        %v1728 = vmul.f32 %v1649, %v1685
        %v1729 = vmul.f32 %v1649, %v1689
        %v1730 = vmul.f32 %v1650, %v1677
        %v1731 = vmul.f32 %v1650, %v1681
        %v1732 = vmul.f32 %v1650, %v1685
        %v1733 = vmul.f32 %v1650, %v1689
        %v1734 = vmul.f32 %v1651, %v1677
        %v1735 = vmul.f32 %v1651, %v1681
        %v1736 = vmul.f32 %v1651, %v1685
        %v1737 = vmul.f32 %v1651, %v1689
        %v1738 = vmul.f32 %v1652, %v1677
        %v1739 = vmul.f32 %v1652, %v1681
        %v1740 = vmul.f32 %v1652, %v1685
        %v1741 = vmul.f32 %v1652, %v1689
        %v1742 = vmul.f32 %v1653, %v1677
        %v1743 = vmul.f32 %v1653, %v1681
        %v1744 = vmul.f32 %v1653, %v1685
        %v1745 = vmul.f32 %v1653, %v1689
        %v1746 = vmul.f32 %v1654, %v1677
        %v1747 = vmul.f32 %v1654, %v1681
        %v1748 = vmul.f32 %v1654, %v1685
        %v1749 = vmul.f32 %v1654, %v1689
        %v1750 = vmul.f32 %v1655, %v1677
        %v1751 = vmul.f32 %v1655, %v1681
        %v1752 = vmul.f32 %v1655, %v1685
        %v1753 = vmul.f32 %v1655, %v1689
        %v1754 = vmul.f32 %v1656, %v1677
        %v1755 = vmul.f32 %v1656, %v1681
        %v1756 = vmul.f32 %v1656, %v1685
        %v1757 = vmul.f32 %v1656, %v1689
        %v1758 = vmul.f32 %v1657, %v1677
        %v1759 = vmul.f32 %v1657, %v1681
        %v1760 = vmul.f32 %v1657, %v1685
        %v1761 = vmul.f32 %v1657, %v1689
        %v1762 = vmul.f32 %v1658, %v1677
        %v1763 = vmul.f32 %v1658, %v1681
        %v1764 = vmul.f32 %v1658, %v1685
        %v1765 = vmul.f32 %v1658, %v1689
        %v1766 = vmul.f32 %v1659, %v1677
        %v1767 = vmul.f32 %v1659, %v1681
        %v1768 = vmul.f32 %v1659, %v1685
        %v1769 = vmul.f32 %v1659, %v1689
        %v1770 = vmul.f32 %v1660, %v1677
        %v1771 = vmul.f32 %v1660, %v1681
        %v1772 = vmul.f32 %v1660, %v1685
        %v1773 = vmul.f32 %v1660, %v1689
        %v1774 = vmul.f32 %v1661, %v1677
        %v1775 = vmul.f32 %v1661, %v1681
        %v1776 = vmul.f32 %v1661, %v1685
        %v1777 = vmul.f32 %v1661, %v1689
        %v1778 = vmul.f32 %v1662, %v1677
        %v1779 = vmul.f32 %v1662, %v1681
        %v1780 = vmul.f32 %v1662, %v1685
        %v1781 = vmul.f32 %v1662, %v1689
        %v1782 = vmul.f32 %v1663, %v1677
        %v1783 = vmul.f32 %v1663, %v1681
        %v1784 = vmul.f32 %v1663, %v1685
        %v1785 = vmul.f32 %v1663, %v1689
        %v1786 = vmul.f32 %v1664, %v1677
        %v1787 = vmul.f32 %v1664, %v1681
        %v1788 = vmul.f32 %v1664, %v1685
        %v1789 = vmul.f32 %v1664, %v1689
        %v1790 = vmul.f32 %v1665, %v1677
        %v1791 = vmul.f32 %v1665, %v1681
        %v1792 = vmul.f32 %v1665, %v1685
        %v1793 = vmul.f32 %v1665, %v1689
        %v1794 = vmul.f32 %v1666, %v1677
        %v1795 = vmul.f32 %v1666, %v1681
        %v1796 = vmul.f32 %v1666, %v1685
        %v1797 = vmul.f32 %v1666, %v1689
        %v1798 = vmul.f32 %v1667, %v1677
        %v1799 = vmul.f32 %v1667, %v1681
        %v1800 = vmul.f32 %v1667, %v1685
        %v1801 = vmul.f32 %v1667, %v1689
        %v1802 = vmul.f32 %v1668, %v1677
        %v1803 = vmul.f32 %v1668, %v1681
        %v1804 = vmul.f32 %v1668, %v1685
        %v1805 = vmul.f32 %v1668, %v1689
        %v1806 = vmul.f32 %v1669, %v1677
        %v1807 = vmul.f32 %v1669, %v1681
        %v1808 = vmul.f32 %v1669, %v1685
        %v1809 = vmul.f32 %v1669, %v1689
        %v1810 = vmul.f32 %v1670, %v1677
        %v1811 = vmul.f32 %v1670, %v1681
        %v1812 = vmul.f32 %v1670, %v1685
        %v1813 = vmul.f32 %v1670, %v1689
        %v1814 = vmul.f32 %v1671, %v1677
        %v1815 = vmul.f32 %v1671, %v1681
        %v1816 = vmul.f32 %v1671, %v1685
        %v1817 = vmul.f32 %v1671, %v1689
        %v1818 = vmul.f32 %v1672, %v1677
        %v1819 = vmul.f32 %v1672, %v1681
        %v1820 = vmul.f32 %v1672, %v1685
        %v1821 = vmul.f32 %v1672, %v1689
        %v1822 = vsub.f32 %v680, %v1193
        %v1823 = vsub.f32 %v682, %v1193
        %v1824 = vsub.f32 %v873, %v1193
        %v1825 = vsub.f32 %v875, %v1193
        %v1826 = vsub.f32 %v684, %v1194
        %v1827 = vsub.f32 %v686, %v1194
        %v1828 = vsub.f32 %v877, %v1194
        %v1829 = vsub.f32 %v879, %v1194
        %v1830 = vsub.f32 %v690, %v1195
        %v1831 = vsub.f32 %v692, %v1195
        %v1832 = vsub.f32 %v883, %v1195
        %v1833 = vsub.f32 %v885, %v1195
        %v1834 = vsub.f32 %v694, %v1196
        %v1835 = vsub.f32 %v696, %v1196
        %v1836 = vsub.f32 %v887, %v1196
        %v1837 = vsub.f32 %v889, %v1196
        %v1838 = vsub.f32 %v700, %v1197
        %v1839 = vsub.f32 %v702, %v1197
        %v1840 = vsub.f32 %v893, %v1197
        %v1841 = vsub.f32 %v895, %v1197
        %v1842 = vsub.f32 %v704, %v1198
        %v1843 = vsub.f32 %v706, %v1198
        %v1844 = vsub.f32 %v897, %v1198
        %v1845 = vsub.f32 %v899, %v1198
        %v1846 = vsub.f32 %v710, %v1199
        %v1847 = vsub.f32 %v712, %v1199
        %v1848 = vsub.f32 %v903, %v1199
        %v1849 = vsub.f32 %v905, %v1199
        %v1850 = vsub.f32 %v714, %v1200
        %v1851 = vsub.f32 %v716, %v1200
        %v1852 = vsub.f32 %v907, %v1200
        %v1853 = vsub.f32 %v909, %v1200
        %v1854 = vsub.f32 %v720, %v1201
        %v1855 = vsub.f32 %v722, %v1201
        %v1856 = vsub.f32 %v913, %v1201
        %v1857 = vsub.f32 %v915, %v1201
        %v1858 = vsub.f32 %v724, %v1202
        %v1859 = vsub.f32 %v726, %v1202
        %v1860 = vsub.f32 %v917, %v1202
        %v1861 = vsub.f32 %v919, %v1202
        %v1862 = vsub.f32 %v730, %v1203
        %v1863 = vsub.f32 %v732, %v1203
        %v1864 = vsub.f32 %v923, %v1203
        %v1865 = vsub.f32 %v925, %v1203
        %v1866 = vsub.f32 %v734, %v1204
        %v1867 = vsub.f32 %v736, %v1204
        %v1868 = vsub.f32 %v927, %v1204
        %v1869 = vsub.f32 %v929, %v1204
        %v1870 = vsub.f32 %v740, %v1205
        %v1871 = vsub.f32 %v742, %v1205
        %v1872 = vsub.f32 %v933, %v1205
        %v1873 = vsub.f32 %v935, %v1205
        %v1874 = vsub.f32 %v744, %v1206
        %v1875 = vsub.f32 %v746, %v1206
        %v1876 = vsub.f32 %v937, %v1206
        %v1877 = vsub.f32 %v939, %v1206
        %v1878 = vsub.f32 %v750, %v1207
        %v1879 = vsub.f32 %v752, %v1207
        %v1880 = vsub.f32 %v943, %v1207
        %v1881 = vsub.f32 %v945, %v1207
        %v1882 = vsub.f32 %v754, %v1208
        %v1883 = vsub.f32 %v756, %v1208
        %v1884 = vsub.f32 %v947, %v1208
        %v1885 = vsub.f32 %v949, %v1208
        %v1886 = vsub.f32 %v760, %v1209
        %v1887 = vsub.f32 %v762, %v1209
        %v1888 = vsub.f32 %v953, %v1209
        %v1889 = vsub.f32 %v955, %v1209
        %v1890 = vsub.f32 %v764, %v1210
        %v1891 = vsub.f32 %v766, %v1210
        %v1892 = vsub.f32 %v957, %v1210
        %v1893 = vsub.f32 %v959, %v1210
        %v1894 = vsub.f32 %v770, %v1211
        %v1895 = vsub.f32 %v772, %v1211
        %v1896 = vsub.f32 %v963, %v1211
        %v1897 = vsub.f32 %v965, %v1211
        %v1898 = vsub.f32 %v774, %v1212
        %v1899 = vsub.f32 %v776, %v1212
        %v1900 = vsub.f32 %v967, %v1212
        %v1901 = vsub.f32 %v969, %v1212
        %v1902 = vsub.f32 %v780, %v1213
        %v1903 = vsub.f32 %v782, %v1213
        %v1904 = vsub.f32 %v973, %v1213
        %v1905 = vsub.f32 %v975, %v1213
        %v1906 = vsub.f32 %v784, %v1214
        %v1907 = vsub.f32 %v786, %v1214
        %v1908 = vsub.f32 %v977, %v1214
        %v1909 = vsub.f32 %v979, %v1214
        %v1910 = vsub.f32 %v790, %v1215
        %v1911 = vsub.f32 %v792, %v1215
        %v1912 = vsub.f32 %v983, %v1215
        %v1913 = vsub.f32 %v985, %v1215
        %v1914 = vsub.f32 %v794, %v1216
        %v1915 = vsub.f32 %v796, %v1216
        %v1916 = vsub.f32 %v987, %v1216
        %v1917 = vsub.f32 %v989, %v1216
        %v1918 = vsub.f32 %v800, %v1217
        %v1919 = vsub.f32 %v802, %v1217
        %v1920 = vsub.f32 %v993, %v1217
        %v1921 = vsub.f32 %v995, %v1217
        %v1922 = vsub.f32 %v804, %v1218
        %v1923 = vsub.f32 %v806, %v1218
        %v1924 = vsub.f32 %v997, %v1218
        %v1925 = vsub.f32 %v999, %v1218
        %v1926 = vsub.f32 %v810, %v1219
        %v1927 = vsub.f32 %v812, %v1219
        %v1928 = vsub.f32 %v1003, %v1219
        %v1929 = vsub.f32 %v1005, %v1219
        %v1930 = vsub.f32 %v814, %v1220
        %v1931 = vsub.f32 %v816, %v1220
        %v1932 = vsub.f32 %v1007, %v1220
        %v1933 = vsub.f32 %v1009, %v1220
        %v1934 = vsub.f32 %v820, %v1221
        %v1935 = vsub.f32 %v822, %v1221
        %v1936 = vsub.f32 %v1013, %v1221
        %v1937 = vsub.f32 %v1015, %v1221
        %v1938 = vsub.f32 %v824, %v1222
        %v1939 = vsub.f32 %v826, %v1222
        %v1940 = vsub.f32 %v1017, %v1222
        %v1941 = vsub.f32 %v1019, %v1222
        %v1942 = vsub.f32 %v830, %v1223
        %v1943 = vsub.f32 %v832, %v1223
        %v1944 = vsub.f32 %v1023, %v1223
        %v1945 = vsub.f32 %v1025, %v1223
        %v1946 = vsub.f32 %v834, %v1224
        %v1947 = vsub.f32 %v836, %v1224
        %v1948 = vsub.f32 %v1027, %v1224
        %v1949 = vsub.f32 %v1029, %v1224
        %v1950 = vmul.f32 %v1822, %v1694
        %v1951 = vmul.f32 %v1823, %v1695
        %v1952 = vmul.f32 %v1824, %v1696
        %v1953 = vmul.f32 %v1825, %v1697
        %v1954 = vmul.f32 %v1826, %v1698
        %v1955 = vmul.f32 %v1827, %v1699
        %v1956 = vmul.f32 %v1828, %v1700
        %v1957 = vmul.f32 %v1829, %v1701
        %v1958 = vmul.f32 %v1830, %v1702
        %v1959 = vmul.f32 %v1831, %v1703
        %v1960 = vmul.f32 %v1832, %v1704
        %v1961 = vmul.f32 %v1833, %v1705
        %v1962 = vmul.f32 %v1834, %v1706
        %v1963 = vmul.f32 %v1835, %v1707
        %v1964 = vmul.f32 %v1836, %v1708
        %v1965 = vmul.f32 %v1837, %v1709
        %v1966 = vmul.f32 %v1838, %v1710
        %v1967 = vmul.f32 %v1839, %v1711
        %v1968 = vmul.f32 %v1840, %v1712
        %v1969 = vmul.f32 %v1841, %v1713
        %v1970 = vmul.f32 %v1842, %v1714
        %v1971 = vmul.f32 %v1843, %v1715
        %v1972 = vmul.f32 %v1844, %v1716
        %v1973 = vmul.f32 %v1845, %v1717
        %v1974 = vmul.f32 %v1846, %v1718
        %v1975 = vmul.f32 %v1847, %v1719
        %v1976 = vmul.f32 %v1848, %v1720
        %v1977 = vmul.f32 %v1849, %v1721
        %v1978 = vmul.f32 %v1850, %v1722
        %v1979 = vmul.f32 %v1851, %v1723
        %v1980 = vmul.f32 %v1852, %v1724
        %v1981 = vmul.f32 %v1853, %v1725
        %v1982 = vmul.f32 %v1854, %v1726
        %v1983 = vmul.f32 %v1855, %v1727
        %v1984 = vmul.f32 %v1856, %v1728
        %v1985 = vmul.f32 %v1857, %v1729
        %v1986 = vmul.f32 %v1858, %v1730
        %v1987 = vmul.f32 %v1859, %v1731
        %v1988 = vmul.f32 %v1860, %v1732
        %v1989 = vmul.f32 %v1861, %v1733
        %v1990 = vmul.f32 %v1862, %v1734
        %v1991 = vmul.f32 %v1863, %v1735
        %v1992 = vmul.f32 %v1864, %v1736
        %v1993 = vmul.f32 %v1865, %v1737
        %v1994 = vmul.f32 %v1866, %v1738
        %v1995 = vmul.f32 %v1867, %v1739
        %v1996 = vmul.f32 %v1868, %v1740
        %v1997 = vmul.f32 %v1869, %v1741
        %v1998 = vmul.f32 %v1870, %v1742
        %v1999 = vmul.f32 %v1871, %v1743
        %v2000 = vmul.f32 %v1872, %v1744
        %v2001 = vmul.f32 %v1873, %v1745
        %v2002 = vmul.f32 %v1874, %v1746
        %v2003 = vmul.f32 %v1875, %v1747
        %v2004 = vmul.f32 %v1876, %v1748
        %v2005 = vmul.f32 %v1877, %v1749
        %v2006 = vmul.f32 %v1878, %v1750
        %v2007 = vmul.f32 %v1879, %v1751
        %v2008 = vmul.f32 %v1880, %v1752
        %v2009 = vmul.f32 %v1881, %v1753
        %v2010 = vmul.f32 %v1882, %v1754
        %v2011 = vmul.f32 %v1883, %v1755
        %v2012 = vmul.f32 %v1884, %v1756
        %v2013 = vmul.f32 %v1885, %v1757
        %v2014 = vmul.f32 %v1886, %v1758
        %v2015 = vmul.f32 %v1887, %v1759
        %v2016 = vmul.f32 %v1888, %v1760
        %v2017 = vmul.f32 %v1889, %v1761
        %v2018 = vmul.f32 %v1890, %v1762
        %v2019 = vmul.f32 %v1891, %v1763
        %v2020 = vmul.f32 %v1892, %v1764
        %v2021 = vmul.f32 %v1893, %v1765
        %v2022 = vmul.f32 %v1894, %v1766
        %v2023 = vmul.f32 %v1895, %v1767
        %v2024 = vmul.f32 %v1896, %v1768
        %v2025 = vmul.f32 %v1897, %v1769
        %v2026 = vmul.f32 %v1898, %v1770
        %v2027 = vmul.f32 %v1899, %v1771
        %v2028 = vmul.f32 %v1900, %v1772
        %v2029 = vmul.f32 %v1901, %v1773
        %v2030 = vmul.f32 %v1902, %v1774
        %v2031 = vmul.f32 %v1903, %v1775
        %v2032 = vmul.f32 %v1904, %v1776
        %v2033 = vmul.f32 %v1905, %v1777
        %v2034 = vmul.f32 %v1906, %v1778
        %v2035 = vmul.f32 %v1907, %v1779
        %v2036 = vmul.f32 %v1908, %v1780
        %v2037 = vmul.f32 %v1909, %v1781
        %v2038 = vmul.f32 %v1910, %v1782
        %v2039 = vmul.f32 %v1911, %v1783
        %v2040 = vmul.f32 %v1912, %v1784
        %v2041 = vmul.f32 %v1913, %v1785
        %v2042 = vmul.f32 %v1914, %v1786
        %v2043 = vmul.f32 %v1915, %v1787
        %v2044 = vmul.f32 %v1916, %v1788
        %v2045 = vmul.f32 %v1917, %v1789
        %v2046 = vmul.f32 %v1918, %v1790
        %v2047 = vmul.f32 %v1919, %v1791
        %v2048 = vmul.f32 %v1920, %v1792
        %v2049 = vmul.f32 %v1921, %v1793
        %v2050 = vmul.f32 %v1922, %v1794
        %v2051 = vmul.f32 %v1923, %v1795
        %v2052 = vmul.f32 %v1924, %v1796
        %v2053 = vmul.f32 %v1925, %v1797
        %v2054 = vmul.f32 %v1926, %v1798
        %v2055 = vmul.f32 %v1927, %v1799
        %v2056 = vmul.f32 %v1928, %v1800
        %v2057 = vmul.f32 %v1929, %v1801
        %v2058 = vmul.f32 %v1930, %v1802
        %v2059 = vmul.f32 %v1931, %v1803
        %v2060 = vmul.f32 %v1932, %v1804
        %v2061 = vmul.f32 %v1933, %v1805
        %v2062 = vmul.f32 %v1934, %v1806
        %v2063 = vmul.f32 %v1935, %v1807
        %v2064 = vmul.f32 %v1936, %v1808
        %v2065 = vmul.f32 %v1937, %v1809
        %v2066 = vmul.f32 %v1938, %v1810
        %v2067 = vmul.f32 %v1939, %v1811
        %v2068 = vmul.f32 %v1940, %v1812
        %v2069 = vmul.f32 %v1941, %v1813
        %v2070 = vmul.f32 %v1942, %v1814
        %v2071 = vmul.f32 %v1943, %v1815
        %v2072 = vmul.f32 %v1944, %v1816
        %v2073 = vmul.f32 %v1945, %v1817
        %v2074 = vmul.f32 %v1946, %v1818
        %v2075 = vmul.f32 %v1947, %v1819
        %v2076 = vmul.f32 %v1948, %v1820
        %v2077 = vmul.f32 %v1949, %v1821
        %v2079 = vlaneseq
        %v2080 = vshrl.u32 %v2079, 7
        %v2081 = vsub.s32 0, %v2080
        %v2082 = vrot.slane %v1032, %v2081
        %v2083 = vlaneseq
        %v2084 = vshrl.u32 %v2083, 7
        %v2085 = vsub.s32 1, %v2084
        %v2086 = vrot.slane %v1032, %v2085
        %v2087 = vlaneseq
        %v2088 = vshrl.u32 %v2087, 7
        %v2089 = vsub.s32 2, %v2088
        %v2090 = vrot.slane %v1032, %v2089
        %v2091 = vlaneseq
        %v2092 = vshrl.u32 %v2091, 7
        %v2093 = vsub.s32 3, %v2092
        %v2094 = vrot.slane %v1032, %v2093
        %v2099 = vadd.f32 %v1950, %v2082
        %v2100 = vadd.f32 %v1951, %v2086
        %v2101 = vadd.f32 %v1952, %v2090
        %v2102 = vadd.f32 %v1953, %v2094
        %v2103 = vadd.f32 %v1954, %v2082
        %v2104 = vadd.f32 %v1955, %v2086
        %v2105 = vadd.f32 %v1956, %v2090
        %v2106 = vadd.f32 %v1957, %v2094
        %v2107 = vadd.f32 %v1958, %v2082
        %v2108 = vadd.f32 %v1959, %v2086
        %v2109 = vadd.f32 %v1960, %v2090
        %v2110 = vadd.f32 %v1961, %v2094
        %v2111 = vadd.f32 %v1962, %v2082
        %v2112 = vadd.f32 %v1963, %v2086
        %v2113 = vadd.f32 %v1964, %v2090
        %v2114 = vadd.f32 %v1965, %v2094
        %v2115 = vadd.f32 %v1966, %v2082
        %v2116 = vadd.f32 %v1967, %v2086
        %v2117 = vadd.f32 %v1968, %v2090
        %v2118 = vadd.f32 %v1969, %v2094
        %v2119 = vadd.f32 %v1970, %v2082
        %v2120 = vadd.f32 %v1971, %v2086
        %v2121 = vadd.f32 %v1972, %v2090
        %v2122 = vadd.f32 %v1973, %v2094
        %v2123 = vadd.f32 %v1974, %v2082
        %v2124 = vadd.f32 %v1975, %v2086
        %v2125 = vadd.f32 %v1976, %v2090
        %v2126 = vadd.f32 %v1977, %v2094
        %v2127 = vadd.f32 %v1978, %v2082
        %v2128 = vadd.f32 %v1979, %v2086
        %v2129 = vadd.f32 %v1980, %v2090
        %v2130 = vadd.f32 %v1981, %v2094
        %v2131 = vadd.f32 %v1982, %v2082
        %v2132 = vadd.f32 %v1983, %v2086
        %v2133 = vadd.f32 %v1984, %v2090
        %v2134 = vadd.f32 %v1985, %v2094
        %v2135 = vadd.f32 %v1986, %v2082
        %v2136 = vadd.f32 %v1987, %v2086
        %v2137 = vadd.f32 %v1988, %v2090
        %v2138 = vadd.f32 %v1989, %v2094
        %v2139 = vadd.f32 %v1990, %v2082
        %v2140 = vadd.f32 %v1991, %v2086
        %v2141 = vadd.f32 %v1992, %v2090
        %v2142 = vadd.f32 %v1993, %v2094
        %v2143 = vadd.f32 %v1994, %v2082
        %v2144 = vadd.f32 %v1995, %v2086
        %v2145 = vadd.f32 %v1996, %v2090
        %v2146 = vadd.f32 %v1997, %v2094
        %v2147 = vadd.f32 %v1998, %v2082
        %v2148 = vadd.f32 %v1999, %v2086
        %v2149 = vadd.f32 %v2000, %v2090
        %v2150 = vadd.f32 %v2001, %v2094
        %v2151 = vadd.f32 %v2002, %v2082
        %v2152 = vadd.f32 %v2003, %v2086
        %v2153 = vadd.f32 %v2004, %v2090
        %v2154 = vadd.f32 %v2005, %v2094
        %v2155 = vadd.f32 %v2006, %v2082
        %v2156 = vadd.f32 %v2007, %v2086
        %v2157 = vadd.f32 %v2008, %v2090
        %v2158 = vadd.f32 %v2009, %v2094
        %v2159 = vadd.f32 %v2010, %v2082
        %v2160 = vadd.f32 %v2011, %v2086
        %v2161 = vadd.f32 %v2012, %v2090
        %v2162 = vadd.f32 %v2013, %v2094
        %v2163 = vadd.f32 %v2014, %v2082
        %v2164 = vadd.f32 %v2015, %v2086
        %v2165 = vadd.f32 %v2016, %v2090
        %v2166 = vadd.f32 %v2017, %v2094
        %v2167 = vadd.f32 %v2018, %v2082
        %v2168 = vadd.f32 %v2019, %v2086
        %v2169 = vadd.f32 %v2020, %v2090
        %v2170 = vadd.f32 %v2021, %v2094
        %v2171 = vadd.f32 %v2022, %v2082
        %v2172 = vadd.f32 %v2023, %v2086
        %v2173 = vadd.f32 %v2024, %v2090
        %v2174 = vadd.f32 %v2025, %v2094
        %v2175 = vadd.f32 %v2026, %v2082
        %v2176 = vadd.f32 %v2027, %v2086
        %v2177 = vadd.f32 %v2028, %v2090
        %v2178 = vadd.f32 %v2029, %v2094
        %v2179 = vadd.f32 %v2030, %v2082
        %v2180 = vadd.f32 %v2031, %v2086
        %v2181 = vadd.f32 %v2032, %v2090
        %v2182 = vadd.f32 %v2033, %v2094
        %v2183 = vadd.f32 %v2034, %v2082
        %v2184 = vadd.f32 %v2035, %v2086
        %v2185 = vadd.f32 %v2036, %v2090
        %v2186 = vadd.f32 %v2037, %v2094
        %v2187 = vadd.f32 %v2038, %v2082
        %v2188 = vadd.f32 %v2039, %v2086
        %v2189 = vadd.f32 %v2040, %v2090
        %v2190 = vadd.f32 %v2041, %v2094
        %v2191 = vadd.f32 %v2042, %v2082
        %v2192 = vadd.f32 %v2043, %v2086
        %v2193 = vadd.f32 %v2044, %v2090
        %v2194 = vadd.f32 %v2045, %v2094
        %v2195 = vadd.f32 %v2046, %v2082
        %v2196 = vadd.f32 %v2047, %v2086
        %v2197 = vadd.f32 %v2048, %v2090
        %v2198 = vadd.f32 %v2049, %v2094
        %v2199 = vadd.f32 %v2050, %v2082
        %v2200 = vadd.f32 %v2051, %v2086
        %v2201 = vadd.f32 %v2052, %v2090
        %v2202 = vadd.f32 %v2053, %v2094
        %v2203 = vadd.f32 %v2054, %v2082
        %v2204 = vadd.f32 %v2055, %v2086
        %v2205 = vadd.f32 %v2056, %v2090
        %v2206 = vadd.f32 %v2057, %v2094
        %v2207 = vadd.f32 %v2058, %v2082
        %v2208 = vadd.f32 %v2059, %v2086
        %v2209 = vadd.f32 %v2060, %v2090
        %v2210 = vadd.f32 %v2061, %v2094
        %v2211 = vadd.f32 %v2062, %v2082
        %v2212 = vadd.f32 %v2063, %v2086
        %v2213 = vadd.f32 %v2064, %v2090
        %v2214 = vadd.f32 %v2065, %v2094
        %v2215 = vadd.f32 %v2066, %v2082
        %v2216 = vadd.f32 %v2067, %v2086
        %v2217 = vadd.f32 %v2068, %v2090
        %v2218 = vadd.f32 %v2069, %v2094
        %v2219 = vadd.f32 %v2070, %v2082
        %v2220 = vadd.f32 %v2071, %v2086
        %v2221 = vadd.f32 %v2072, %v2090
        %v2222 = vadd.f32 %v2073, %v2094
        %v2223 = vadd.f32 %v2074, %v2082
        %v2224 = vadd.f32 %v2075, %v2086
        %v2225 = vadd.f32 %v2076, %v2090
        %v2226 = vadd.f32 %v2077, %v2094
        %v2227 = vmax.f32 %v2099, 0.0
        %v2228 = vmax.f32 %v2100, 0.0
        %v2229 = vmax.f32 %v2101, 0.0
        %v2230 = vmax.f32 %v2102, 0.0
        %v2231 = vmax.f32 %v2103, 0.0
        %v2232 = vmax.f32 %v2104, 0.0
        %v2233 = vmax.f32 %v2105, 0.0
        %v2234 = vmax.f32 %v2106, 0.0
        %v2235 = vmax.f32 %v2107, 0.0
        %v2236 = vmax.f32 %v2108, 0.0
        %v2237 = vmax.f32 %v2109, 0.0
        %v2238 = vmax.f32 %v2110, 0.0
        %v2239 = vmax.f32 %v2111, 0.0
        %v2240 = vmax.f32 %v2112, 0.0
        %v2241 = vmax.f32 %v2113, 0.0
        %v2242 = vmax.f32 %v2114, 0.0
        %v2243 = vmax.f32 %v2115, 0.0
        %v2244 = vmax.f32 %v2116, 0.0
        %v2245 = vmax.f32 %v2117, 0.0
        %v2246 = vmax.f32 %v2118, 0.0
        %v2247 = vmax.f32 %v2119, 0.0
        %v2248 = vmax.f32 %v2120, 0.0
        %v2249 = vmax.f32 %v2121, 0.0
        %v2250 = vmax.f32 %v2122, 0.0
        %v2251 = vmax.f32 %v2123, 0.0
        %v2252 = vmax.f32 %v2124, 0.0
        %v2253 = vmax.f32 %v2125, 0.0
        %v2254 = vmax.f32 %v2126, 0.0
        %v2255 = vmax.f32 %v2127, 0.0
        %v2256 = vmax.f32 %v2128, 0.0
        %v2257 = vmax.f32 %v2129, 0.0
        %v2258 = vmax.f32 %v2130, 0.0
        %v2259 = vmax.f32 %v2131, 0.0
        %v2260 = vmax.f32 %v2132, 0.0
        %v2261 = vmax.f32 %v2133, 0.0
        %v2262 = vmax.f32 %v2134, 0.0
        %v2263 = vmax.f32 %v2135, 0.0
        %v2264 = vmax.f32 %v2136, 0.0
        %v2265 = vmax.f32 %v2137, 0.0
        %v2266 = vmax.f32 %v2138, 0.0
        %v2267 = vmax.f32 %v2139, 0.0
        %v2268 = vmax.f32 %v2140, 0.0
        %v2269 = vmax.f32 %v2141, 0.0
        %v2270 = vmax.f32 %v2142, 0.0
        %v2271 = vmax.f32 %v2143, 0.0
        %v2272 = vmax.f32 %v2144, 0.0
        %v2273 = vmax.f32 %v2145, 0.0
        %v2274 = vmax.f32 %v2146, 0.0
        %v2275 = vmax.f32 %v2147, 0.0
        %v2276 = vmax.f32 %v2148, 0.0
        %v2277 = vmax.f32 %v2149, 0.0
        %v2278 = vmax.f32 %v2150, 0.0
        %v2279 = vmax.f32 %v2151, 0.0
        %v2280 = vmax.f32 %v2152, 0.0
        %v2281 = vmax.f32 %v2153, 0.0
        %v2282 = vmax.f32 %v2154, 0.0
        %v2283 = vmax.f32 %v2155, 0.0
        %v2284 = vmax.f32 %v2156, 0.0
        %v2285 = vmax.f32 %v2157, 0.0
        %v2286 = vmax.f32 %v2158, 0.0
        %v2287 = vmax.f32 %v2159, 0.0
        %v2288 = vmax.f32 %v2160, 0.0
        %v2289 = vmax.f32 %v2161, 0.0
        %v2290 = vmax.f32 %v2162, 0.0
        %v2291 = vmax.f32 %v2163, 0.0
        %v2292 = vmax.f32 %v2164, 0.0
        %v2293 = vmax.f32 %v2165, 0.0
        %v2294 = vmax.f32 %v2166, 0.0
        %v2295 = vmax.f32 %v2167, 0.0
        %v2296 = vmax.f32 %v2168, 0.0
        %v2297 = vmax.f32 %v2169, 0.0
        %v2298 = vmax.f32 %v2170, 0.0
        %v2299 = vmax.f32 %v2171, 0.0
        %v2300 = vmax.f32 %v2172, 0.0
        %v2301 = vmax.f32 %v2173, 0.0
        %v2302 = vmax.f32 %v2174, 0.0
        %v2303 = vmax.f32 %v2175, 0.0
        %v2304 = vmax.f32 %v2176, 0.0
        %v2305 = vmax.f32 %v2177, 0.0
        %v2306 = vmax.f32 %v2178, 0.0
        %v2307 = vmax.f32 %v2179, 0.0
        %v2308 = vmax.f32 %v2180, 0.0
        %v2309 = vmax.f32 %v2181, 0.0
        %v2310 = vmax.f32 %v2182, 0.0
        %v2311 = vmax.f32 %v2183, 0.0
        %v2312 = vmax.f32 %v2184, 0.0
        %v2313 = vmax.f32 %v2185, 0.0
        %v2314 = vmax.f32 %v2186, 0.0
        %v2315 = vmax.f32 %v2187, 0.0
        %v2316 = vmax.f32 %v2188, 0.0
        %v2317 = vmax.f32 %v2189, 0.0
        %v2318 = vmax.f32 %v2190, 0.0
        %v2319 = vmax.f32 %v2191, 0.0
        %v2320 = vmax.f32 %v2192, 0.0
        %v2321 = vmax.f32 %v2193, 0.0
        %v2322 = vmax.f32 %v2194, 0.0
        %v2323 = vmax.f32 %v2195, 0.0
        %v2324 = vmax.f32 %v2196, 0.0
        %v2325 = vmax.f32 %v2197, 0.0
        %v2326 = vmax.f32 %v2198, 0.0
        %v2327 = vmax.f32 %v2199, 0.0
        %v2328 = vmax.f32 %v2200, 0.0
        %v2329 = vmax.f32 %v2201, 0.0
        %v2330 = vmax.f32 %v2202, 0.0
        %v2331 = vmax.f32 %v2203, 0.0
        %v2332 = vmax.f32 %v2204, 0.0
        %v2333 = vmax.f32 %v2205, 0.0
        %v2334 = vmax.f32 %v2206, 0.0
        %v2335 = vmax.f32 %v2207, 0.0
        %v2336 = vmax.f32 %v2208, 0.0
        %v2337 = vmax.f32 %v2209, 0.0
        %v2338 = vmax.f32 %v2210, 0.0
        %v2339 = vmax.f32 %v2211, 0.0
        %v2340 = vmax.f32 %v2212, 0.0
        %v2341 = vmax.f32 %v2213, 0.0
        %v2342 = vmax.f32 %v2214, 0.0
        %v2343 = vmax.f32 %v2215, 0.0
        %v2344 = vmax.f32 %v2216, 0.0
        %v2345 = vmax.f32 %v2217, 0.0
        %v2346 = vmax.f32 %v2218, 0.0
        %v2347 = vmax.f32 %v2219, 0.0
        %v2348 = vmax.f32 %v2220, 0.0
        %v2349 = vmax.f32 %v2221, 0.0
        %v2350 = vmax.f32 %v2222, 0.0
        %v2351 = vmax.f32 %v2223, 0.0
        %v2352 = vmax.f32 %v2224, 0.0
        %v2353 = vmax.f32 %v2225, 0.0
        %v2354 = vmax.f32 %v2226, 0.0
        %v2355 = vpack.c.bf16 %v2231, %v2227
        %v2356 = vpack.c.bf16 %v2232, %v2228
        %v2357 = vpack.c.bf16 %v2233, %v2229
        %v2358 = vpack.c.bf16 %v2234, %v2230
        %v2359 = vpack.c.bf16 %v2239, %v2235
        %v2360 = vpack.c.bf16 %v2240, %v2236
        %v2361 = vpack.c.bf16 %v2241, %v2237
        %v2362 = vpack.c.bf16 %v2242, %v2238
        %v2363 = vpack.c.bf16 %v2247, %v2243
        %v2364 = vpack.c.bf16 %v2248, %v2244
        %v2365 = vpack.c.bf16 %v2249, %v2245
        %v2366 = vpack.c.bf16 %v2250, %v2246
        %v2367 = vpack.c.bf16 %v2255, %v2251
        %v2368 = vpack.c.bf16 %v2256, %v2252
        %v2369 = vpack.c.bf16 %v2257, %v2253
        %v2370 = vpack.c.bf16 %v2258, %v2254
        %v2371 = vpack.c.bf16 %v2263, %v2259
        %v2372 = vpack.c.bf16 %v2264, %v2260
        %v2373 = vpack.c.bf16 %v2265, %v2261
        %v2374 = vpack.c.bf16 %v2266, %v2262
        %v2375 = vpack.c.bf16 %v2271, %v2267
        %v2376 = vpack.c.bf16 %v2272, %v2268
        %v2377 = vpack.c.bf16 %v2273, %v2269
        %v2378 = vpack.c.bf16 %v2274, %v2270
        %v2379 = vpack.c.bf16 %v2279, %v2275
        %v2380 = vpack.c.bf16 %v2280, %v2276
        %v2381 = vpack.c.bf16 %v2281, %v2277
        %v2382 = vpack.c.bf16 %v2282, %v2278
        %v2383 = vpack.c.bf16 %v2287, %v2283
        %v2384 = vpack.c.bf16 %v2288, %v2284
        %v2385 = vpack.c.bf16 %v2289, %v2285
        %v2386 = vpack.c.bf16 %v2290, %v2286
        %v2387 = vpack.c.bf16 %v2295, %v2291
        %v2388 = vpack.c.bf16 %v2296, %v2292
        %v2389 = vpack.c.bf16 %v2297, %v2293
        %v2390 = vpack.c.bf16 %v2298, %v2294
        %v2391 = vpack.c.bf16 %v2303, %v2299
        %v2392 = vpack.c.bf16 %v2304, %v2300
        %v2393 = vpack.c.bf16 %v2305, %v2301
        %v2394 = vpack.c.bf16 %v2306, %v2302
        %v2395 = vpack.c.bf16 %v2311, %v2307
        %v2396 = vpack.c.bf16 %v2312, %v2308
        %v2397 = vpack.c.bf16 %v2313, %v2309
        %v2398 = vpack.c.bf16 %v2314, %v2310
        %v2399 = vpack.c.bf16 %v2319, %v2315
        %v2400 = vpack.c.bf16 %v2320, %v2316
        %v2401 = vpack.c.bf16 %v2321, %v2317
        %v2402 = vpack.c.bf16 %v2322, %v2318
        %v2403 = vpack.c.bf16 %v2327, %v2323
        %v2404 = vpack.c.bf16 %v2328, %v2324
        %v2405 = vpack.c.bf16 %v2329, %v2325
        %v2406 = vpack.c.bf16 %v2330, %v2326
        %v2407 = vpack.c.bf16 %v2335, %v2331
        %v2408 = vpack.c.bf16 %v2336, %v2332
        %v2409 = vpack.c.bf16 %v2337, %v2333
        %v2410 = vpack.c.bf16 %v2338, %v2334
        %v2411 = vpack.c.bf16 %v2343, %v2339
        %v2412 = vpack.c.bf16 %v2344, %v2340
        %v2413 = vpack.c.bf16 %v2345, %v2341
        %v2414 = vpack.c.bf16 %v2346, %v2342
        %v2415 = vpack.c.bf16 %v2351, %v2347
        %v2416 = vpack.c.bf16 %v2352, %v2348
        %v2417 = vpack.c.bf16 %v2353, %v2349
        %v2418 = vpack.c.bf16 %v2354, %v2350
        %v2419 = vld [vmem:[#allocation7] sm:$0xf]
        %v2420 = vld [vmem:[#allocation7 + $0x4] sm:$0xf]
        %v2421 = vld [vmem:[#allocation7 + $0x8] sm:$0xf]
        %v2422 = vld [vmem:[#allocation7 + $0xc] sm:$0xf]
        %v2423 = vld [vmem:[#allocation7 + $0x10] sm:$0xf]
        %v2424 = vld [vmem:[#allocation7 + $0x14] sm:$0xf]
        %v2425 = vld [vmem:[#allocation7 + $0x18] sm:$0xf]
        %v2426 = vld [vmem:[#allocation7 + $0x1c] sm:$0xf]
        %v2427 = vld [vmem:[#allocation7 + $0x20] sm:$0xf]
        %v2428 = vld [vmem:[#allocation7 + $0x24] sm:$0xf]
        %v2429 = vld [vmem:[#allocation7 + $0x28] sm:$0xf]
        %v2430 = vld [vmem:[#allocation7 + $0x2c] sm:$0xf]
        %v2431 = vld [vmem:[#allocation7 + $0x30] sm:$0xf]
        %v2432 = vld [vmem:[#allocation7 + $0x34] sm:$0xf]
        %v2433 = vld [vmem:[#allocation7 + $0x38] sm:$0xf]
        %v2434 = vld [vmem:[#allocation7 + $0x3c] sm:$0xf]
        %v2435 = vld [vmem:[#allocation7 + $0x40] sm:$0xf]
        %v2436 = vld [vmem:[#allocation7 + $0x44] sm:$0xf]
        %v2437 = vld [vmem:[#allocation7 + $0x48] sm:$0xf]
        %v2438 = vld [vmem:[#allocation7 + $0x4c] sm:$0xf]
        %v2439 = vld [vmem:[#allocation7 + $0x50] sm:$0xf]
        %v2440 = vld [vmem:[#allocation7 + $0x54] sm:$0xf]
        %v2441 = vld [vmem:[#allocation7 + $0x58] sm:$0xf]
        %v2442 = vld [vmem:[#allocation7 + $0x5c] sm:$0xf]
        %v2443 = vld [vmem:[#allocation7 + $0x60] sm:$0xf]
        %v2444 = vld [vmem:[#allocation7 + $0x64] sm:$0xf]
        %v2445 = vld [vmem:[#allocation7 + $0x68] sm:$0xf]
        %v2446 = vld [vmem:[#allocation7 + $0x6c] sm:$0xf]
        %v2447 = vld [vmem:[#allocation7 + $0x70] sm:$0xf]
        %v2448 = vld [vmem:[#allocation7 + $0x74] sm:$0xf]
        %v2449 = vld [vmem:[#allocation7 + $0x78] sm:$0xf]
        %v2450 = vld [vmem:[#allocation7 + $0x7c] sm:$0xf]
        %v2451 = vld [vmem:[#allocation7 + $0x80] sm:$0xf]
        %v2452 = vld [vmem:[#allocation7 + $0x84] sm:$0xf]
        %v2453 = vld [vmem:[#allocation7 + $0x88] sm:$0xf]
        %v2454 = vld [vmem:[#allocation7 + $0x8c] sm:$0xf]
        %v2455 = vld [vmem:[#allocation7 + $0x90] sm:$0xf]
        %v2456 = vld [vmem:[#allocation7 + $0x94] sm:$0xf]
        %v2457 = vld [vmem:[#allocation7 + $0x98] sm:$0xf]
        %v2458 = vld [vmem:[#allocation7 + $0x9c] sm:$0xf]
        %v2459 = vld [vmem:[#allocation7 + $0xa0] sm:$0xf]
        %v2460 = vld [vmem:[#allocation7 + $0xa4] sm:$0xf]
        %v2461 = vld [vmem:[#allocation7 + $0xa8] sm:$0xf]
        %v2462 = vld [vmem:[#allocation7 + $0xac] sm:$0xf]
        %v2463 = vld [vmem:[#allocation7 + $0xb0] sm:$0xf]
        %v2464 = vld [vmem:[#allocation7 + $0xb4] sm:$0xf]
        %v2465 = vld [vmem:[#allocation7 + $0xb8] sm:$0xf]
        %v2466 = vld [vmem:[#allocation7 + $0xbc] sm:$0xf]
        %v2467 = vld [vmem:[#allocation7 + $0xc0] sm:$0xf]
        %v2468 = vld [vmem:[#allocation7 + $0xc4] sm:$0xf]
        %v2469 = vld [vmem:[#allocation7 + $0xc8] sm:$0xf]
        %v2470 = vld [vmem:[#allocation7 + $0xcc] sm:$0xf]
        %v2471 = vld [vmem:[#allocation7 + $0xd0] sm:$0xf]
        %v2472 = vld [vmem:[#allocation7 + $0xd4] sm:$0xf]
        %v2473 = vld [vmem:[#allocation7 + $0xd8] sm:$0xf]
        %v2474 = vld [vmem:[#allocation7 + $0xdc] sm:$0xf]
        %v2475 = vld [vmem:[#allocation7 + $0xe0] sm:$0xf]
        %v2476 = vld [vmem:[#allocation7 + $0xe4] sm:$0xf]
        %v2477 = vld [vmem:[#allocation7 + $0xe8] sm:$0xf]
        %v2478 = vld [vmem:[#allocation7 + $0xec] sm:$0xf]
        %v2479 = vld [vmem:[#allocation7 + $0xf0] sm:$0xf]
        %v2480 = vld [vmem:[#allocation7 + $0xf4] sm:$0xf]
        %v2481 = vld [vmem:[#allocation7 + $0xf8] sm:$0xf]
        %v2482 = vld [vmem:[#allocation7 + $0xfc] sm:$0xf]
        %v2483 = vld [vmem:[%s6] sm:$0x1]
        %v2485 = vlaneseq
        %v2486 = vshrl.u32 %v2485, 7
        %v2487 = vsub.s32 0, %v2486
        %v2488 = vrot.slane %v2483, %v2487
        %v2554 = vunpack.c.l.b16 %v2419
        %v2555 = vunpack.c.l.b16 %v2420
        %v2556 = vunpack.c.l.b16 %v2421
        %v2557 = vunpack.c.l.b16 %v2422
        %v2558 = vunpack.c.l.b16 %v2423
        %v2559 = vunpack.c.l.b16 %v2424
        %v2560 = vunpack.c.l.b16 %v2425
        %v2561 = vunpack.c.l.b16 %v2426
        %v2562 = vunpack.c.l.b16 %v2427
        %v2563 = vunpack.c.l.b16 %v2428
        %v2564 = vunpack.c.l.b16 %v2429
        %v2565 = vunpack.c.l.b16 %v2430
        %v2566 = vunpack.c.l.b16 %v2431
        %v2567 = vunpack.c.l.b16 %v2432
        %v2568 = vunpack.c.l.b16 %v2433
        %v2569 = vunpack.c.l.b16 %v2434
        %v2570 = vunpack.c.l.b16 %v2435
        %v2571 = vunpack.c.l.b16 %v2436
        %v2572 = vunpack.c.l.b16 %v2437
        %v2573 = vunpack.c.l.b16 %v2438
        %v2574 = vunpack.c.l.b16 %v2439
        %v2575 = vunpack.c.l.b16 %v2440
        %v2576 = vunpack.c.l.b16 %v2441
        %v2577 = vunpack.c.l.b16 %v2442
        %v2578 = vunpack.c.l.b16 %v2443
        %v2579 = vunpack.c.l.b16 %v2444
        %v2580 = vunpack.c.l.b16 %v2445
        %v2581 = vunpack.c.l.b16 %v2446
        %v2582 = vunpack.c.l.b16 %v2447
        %v2583 = vunpack.c.l.b16 %v2448
        %v2584 = vunpack.c.l.b16 %v2449
        %v2585 = vunpack.c.l.b16 %v2450
        %v2586 = vunpack.c.l.b16 %v2451
        %v2587 = vunpack.c.l.b16 %v2452
        %v2588 = vunpack.c.l.b16 %v2453
        %v2589 = vunpack.c.l.b16 %v2454
        %v2590 = vunpack.c.l.b16 %v2455
        %v2591 = vunpack.c.l.b16 %v2456
        %v2592 = vunpack.c.l.b16 %v2457
        %v2593 = vunpack.c.l.b16 %v2458
        %v2594 = vunpack.c.l.b16 %v2459
        %v2595 = vunpack.c.l.b16 %v2460
        %v2596 = vunpack.c.l.b16 %v2461
        %v2597 = vunpack.c.l.b16 %v2462
        %v2598 = vunpack.c.l.b16 %v2463
        %v2599 = vunpack.c.l.b16 %v2464
        %v2600 = vunpack.c.l.b16 %v2465
        %v2601 = vunpack.c.l.b16 %v2466
        %v2602 = vunpack.c.l.b16 %v2467
        %v2603 = vunpack.c.l.b16 %v2468
        %v2604 = vunpack.c.l.b16 %v2469
        %v2605 = vunpack.c.l.b16 %v2470
        %v2606 = vunpack.c.l.b16 %v2471
        %v2607 = vunpack.c.l.b16 %v2472
        %v2608 = vunpack.c.l.b16 %v2473
        %v2609 = vunpack.c.l.b16 %v2474
        %v2610 = vunpack.c.l.b16 %v2475
        %v2611 = vunpack.c.l.b16 %v2476
        %v2612 = vunpack.c.l.b16 %v2477
        %v2613 = vunpack.c.l.b16 %v2478
        %v2614 = vunpack.c.l.b16 %v2479
        %v2615 = vunpack.c.l.b16 %v2480
        %v2616 = vunpack.c.l.b16 %v2481
        %v2617 = vunpack.c.l.b16 %v2482
        %v2618 = vpack.c.b16 %v2555, %v2554
        %v2619 = vpack.c.b16 %v2557, %v2556
        %v2620 = vpack.c.b16 %v2559, %v2558
        %v2621 = vpack.c.b16 %v2561, %v2560
        %v2622 = vpack.c.b16 %v2563, %v2562
        %v2623 = vpack.c.b16 %v2565, %v2564
        %v2624 = vpack.c.b16 %v2567, %v2566
        %v2625 = vpack.c.b16 %v2569, %v2568
        %v2626 = vpack.c.b16 %v2571, %v2570
        %v2627 = vpack.c.b16 %v2573, %v2572
        %v2628 = vpack.c.b16 %v2575, %v2574
        %v2629 = vpack.c.b16 %v2577, %v2576
        %v2630 = vpack.c.b16 %v2579, %v2578
        %v2631 = vpack.c.b16 %v2581, %v2580
        %v2632 = vpack.c.b16 %v2583, %v2582
        %v2633 = vpack.c.b16 %v2585, %v2584
        %v2634 = vpack.c.b16 %v2587, %v2586
        %v2635 = vpack.c.b16 %v2589, %v2588
        %v2636 = vpack.c.b16 %v2591, %v2590
        %v2637 = vpack.c.b16 %v2593, %v2592
        %v2638 = vpack.c.b16 %v2595, %v2594
        %v2639 = vpack.c.b16 %v2597, %v2596
        %v2640 = vpack.c.b16 %v2599, %v2598
        %v2641 = vpack.c.b16 %v2601, %v2600
        %v2642 = vpack.c.b16 %v2603, %v2602
        %v2643 = vpack.c.b16 %v2605, %v2604
        %v2644 = vpack.c.b16 %v2607, %v2606
        %v2645 = vpack.c.b16 %v2609, %v2608
        %v2646 = vpack.c.b16 %v2611, %v2610
        %v2647 = vpack.c.b16 %v2613, %v2612
        %v2648 = vpack.c.b16 %v2615, %v2614
        %v2649 = vpack.c.b16 %v2617, %v2616
        %2682 = vmatprep.subr.bf16.mxu0 0
        %2683 = vmatpush1.bf16.msra.mxu0 %v2618
        %2684 = vmatprep.subr.bf16.mxu0 0
        %2685 = vmatpush1.bf16.msra.mxu0 %v2619
        %2686 = vmatprep.subr.bf16.mxu0 0
        %2687 = vmatpush1.bf16.msra.mxu0 %v2620
        %2688 = vmatprep.subr.bf16.mxu0 0
        %2689 = vmatpush1.bf16.msra.mxu0 %v2621
        %2690 = vmatprep.subr.bf16.mxu0 0
        %2691 = vmatpush1.bf16.msra.mxu0 %v2622
        %2692 = vmatprep.subr.bf16.mxu0 0
        %2693 = vmatpush1.bf16.msra.mxu0 %v2623
        %2694 = vmatprep.subr.bf16.mxu0 0
        %2695 = vmatpush1.bf16.msra.mxu0 %v2624
        %2696 = vmatprep.subr.bf16.mxu0 0
        %2697 = vmatpush1.bf16.msra.mxu0 %v2625
        %2698 = vmatprep.subr.bf16.mxu0 0
        %2699 = vmatpush1.bf16.msra.mxu0 %v2626
        %2700 = vmatprep.subr.bf16.mxu0 0
        %2701 = vmatpush1.bf16.msra.mxu0 %v2627
        %2702 = vmatprep.subr.bf16.mxu0 0
        %2703 = vmatpush1.bf16.msra.mxu0 %v2628
        %2704 = vmatprep.subr.bf16.mxu0 0
        %2705 = vmatpush1.bf16.msra.mxu0 %v2629
        %2706 = vmatprep.subr.bf16.mxu0 0
        %2707 = vmatpush1.bf16.msra.mxu0 %v2630
        %2708 = vmatprep.subr.bf16.mxu0 0
        %2709 = vmatpush1.bf16.msra.mxu0 %v2631
        %2710 = vmatprep.subr.bf16.mxu0 0
        %2711 = vmatpush1.bf16.msra.mxu0 %v2632
        %2712 = vmatprep.subr.bf16.mxu0 0
        %2713 = vmatpush1.bf16.msra.mxu0 %v2633
        %2714 = vmatprep.mubr.bf16.mxu0 %v2356
        %2715 = vmatmul.mubr.bf16.gmra.mrb[0].mxu0 %v2355
        %v2716 = vpop.f32.mrb[0].mxu0
        %v2717 = vadd.f32 %v2488, %v2716
        %v2718 = vpop.f32.mrb[0].mxu0
        %v2719 = vpop.f32.mrb[0].mxu0
        %v2720 = vadd.f32 %v2488, %v2719
        %v2721 = vpop.f32.mrb[0].mxu0
        %2722 = vmatprep.mubr.bf16.mxu0 %v2360
        %2723 = vmatmul.mubr.bf16.gmra.mrb[0].mxu0 %v2359
        %v2724 = vpop.f32.mrb[0].mxu0
        %v2725 = vadd.f32 %v2488, %v2724
        %v2726 = vpop.f32.mrb[0].mxu0
        %v2727 = vpop.f32.mrb[0].mxu0
        %v2728 = vadd.f32 %v2488, %v2727
        %v2729 = vpop.f32.mrb[0].mxu0
        %2730 = vmatprep.mubr.bf16.mxu0 %v2364
        %2731 = vmatmul.mubr.bf16.gmra.mrb[0].mxu0 %v2363
        %v2732 = vpop.f32.mrb[0].mxu0
        %v2733 = vadd.f32 %v2488, %v2732
        %v2734 = vpop.f32.mrb[0].mxu0
        %v2735 = vpop.f32.mrb[0].mxu0
        %v2736 = vadd.f32 %v2488, %v2735
        %v2737 = vpop.f32.mrb[0].mxu0
        %2738 = vmatprep.mubr.bf16.mxu0 %v2368
        %2739 = vmatmul.mubr.bf16.gmra.mrb[0].mxu0 %v2367
        %v2740 = vpop.f32.mrb[0].mxu0
        %v2741 = vadd.f32 %v2488, %v2740
        %v2742 = vpop.f32.mrb[0].mxu0
        %v2743 = vpop.f32.mrb[0].mxu0
        %v2744 = vadd.f32 %v2488, %v2743
        %v2745 = vpop.f32.mrb[0].mxu0
        %2746 = vmatprep.mubr.bf16.mxu0 %v2372
        %2747 = vmatmul.mubr.bf16.gmra.mrb[0].mxu0 %v2371
        %v2748 = vpop.f32.mrb[0].mxu0
        %v2749 = vadd.f32 %v2488, %v2748
        %v2750 = vpop.f32.mrb[0].mxu0
        %v2751 = vpop.f32.mrb[0].mxu0
        %v2752 = vadd.f32 %v2488, %v2751
        %v2753 = vpop.f32.mrb[0].mxu0
        %2754 = vmatprep.mubr.bf16.mxu0 %v2376
        %2755 = vmatmul.mubr.bf16.gmra.mrb[0].mxu0 %v2375
        %v2756 = vpop.f32.mrb[0].mxu0
        %v2757 = vadd.f32 %v2488, %v2756
        %v2758 = vpop.f32.mrb[0].mxu0
        %v2759 = vpop.f32.mrb[0].mxu0
        %v2760 = vadd.f32 %v2488, %v2759
        %v2761 = vpop.f32.mrb[0].mxu0
        %2762 = vmatprep.mubr.bf16.mxu0 %v2380
        %2763 = vmatmul.mubr.bf16.gmra.mrb[0].mxu0 %v2379
        %v2764 = vpop.f32.mrb[0].mxu0
        %v2765 = vadd.f32 %v2488, %v2764
        %v2766 = vpop.f32.mrb[0].mxu0
        %v2767 = vpop.f32.mrb[0].mxu0
        %v2768 = vadd.f32 %v2488, %v2767
        %v2769 = vpop.f32.mrb[0].mxu0
        %2770 = vmatprep.mubr.bf16.mxu0 %v2384
        %2771 = vmatmul.mubr.bf16.gmra.mrb[0].mxu0 %v2383
        %v2772 = vpop.f32.mrb[0].mxu0
        %v2773 = vadd.f32 %v2488, %v2772
        %v2774 = vpop.f32.mrb[0].mxu0
        %v2775 = vpop.f32.mrb[0].mxu0
        %v2776 = vadd.f32 %v2488, %v2775
        %v2777 = vpop.f32.mrb[0].mxu0
        %2778 = vmatprep.mubr.bf16.mxu0 %v2388
        %2779 = vmatmul.mubr.bf16.gmra.mrb[0].mxu0 %v2387
        %v2780 = vpop.f32.mrb[0].mxu0
        %v2781 = vadd.f32 %v2488, %v2780
        %v2782 = vpop.f32.mrb[0].mxu0
        %v2783 = vpop.f32.mrb[0].mxu0
        %v2784 = vadd.f32 %v2488, %v2783
        %v2785 = vpop.f32.mrb[0].mxu0
        %2786 = vmatprep.mubr.bf16.mxu0 %v2392
        %2787 = vmatmul.mubr.bf16.gmra.mrb[0].mxu0 %v2391
        %v2788 = vpop.f32.mrb[0].mxu0
        %v2789 = vadd.f32 %v2488, %v2788
        %v2790 = vpop.f32.mrb[0].mxu0
        %v2791 = vpop.f32.mrb[0].mxu0
        %v2792 = vadd.f32 %v2488, %v2791
        %v2793 = vpop.f32.mrb[0].mxu0
        %2794 = vmatprep.mubr.bf16.mxu0 %v2396
        %2795 = vmatmul.mubr.bf16.gmra.mrb[0].mxu0 %v2395
        %v2796 = vpop.f32.mrb[0].mxu0
        %v2797 = vadd.f32 %v2488, %v2796
        %v2798 = vpop.f32.mrb[0].mxu0
        %v2799 = vpop.f32.mrb[0].mxu0
        %v2800 = vadd.f32 %v2488, %v2799
        %v2801 = vpop.f32.mrb[0].mxu0
        %2802 = vmatprep.mubr.bf16.mxu0 %v2400
        %2803 = vmatmul.mubr.bf16.gmra.mrb[0].mxu0 %v2399
        %v2804 = vpop.f32.mrb[0].mxu0
        %v2805 = vadd.f32 %v2488, %v2804
        %v2806 = vpop.f32.mrb[0].mxu0
        %v2807 = vpop.f32.mrb[0].mxu0
        %v2808 = vadd.f32 %v2488, %v2807
        %v2809 = vpop.f32.mrb[0].mxu0
        %2810 = vmatprep.mubr.bf16.mxu0 %v2404
        %2811 = vmatmul.mubr.bf16.gmra.mrb[0].mxu0 %v2403
        %v2812 = vpop.f32.mrb[0].mxu0
        %v2813 = vadd.f32 %v2488, %v2812
        %v2814 = vpop.f32.mrb[0].mxu0
        %v2815 = vpop.f32.mrb[0].mxu0
        %v2816 = vadd.f32 %v2488, %v2815
        %v2817 = vpop.f32.mrb[0].mxu0
        %2818 = vmatprep.mubr.bf16.mxu0 %v2408
        %2819 = vmatmul.mubr.bf16.gmra.mrb[0].mxu0 %v2407
        %v2820 = vpop.f32.mrb[0].mxu0
        %v2821 = vadd.f32 %v2488, %v2820
        %v2822 = vpop.f32.mrb[0].mxu0
        %v2823 = vpop.f32.mrb[0].mxu0
        %v2824 = vadd.f32 %v2488, %v2823
        %v2825 = vpop.f32.mrb[0].mxu0
        %2826 = vmatprep.mubr.bf16.mxu0 %v2412
        %2827 = vmatmul.mubr.bf16.gmra.mrb[0].mxu0 %v2411
        %v2828 = vpop.f32.mrb[0].mxu0
        %v2829 = vadd.f32 %v2488, %v2828
        %v2830 = vpop.f32.mrb[0].mxu0
        %v2831 = vpop.f32.mrb[0].mxu0
        %v2832 = vadd.f32 %v2488, %v2831
        %v2833 = vpop.f32.mrb[0].mxu0
        %2834 = vmatprep.mubr.bf16.mxu0 %v2416
        %2835 = vmatmul.mubr.bf16.gmra.mrb[0].mxu0 %v2415
        %v2836 = vpop.f32.mrb[0].mxu0
        %v2837 = vadd.f32 %v2488, %v2836
        %v2838 = vpop.f32.mrb[0].mxu0
        %v2839 = vpop.f32.mrb[0].mxu0
        %v2840 = vadd.f32 %v2488, %v2839
        %v2841 = vpop.f32.mrb[0].mxu0
        %2842 = vdwg.mxu0
        %2843 = vmatprep.subr.bf16.mxu0 0
        %2844 = vmatpush1.bf16.msra.mxu0 %v2634
        %2845 = vmatprep.subr.bf16.mxu0 0
        %2846 = vmatpush1.bf16.msra.mxu0 %v2635
        %2847 = vmatprep.subr.bf16.mxu0 0
        %2848 = vmatpush1.bf16.msra.mxu0 %v2636
        %2849 = vmatprep.subr.bf16.mxu0 0
        %2850 = vmatpush1.bf16.msra.mxu0 %v2637
        %2851 = vmatprep.subr.bf16.mxu0 0
        %2852 = vmatpush1.bf16.msra.mxu0 %v2638
        %2853 = vmatprep.subr.bf16.mxu0 0
        %2854 = vmatpush1.bf16.msra.mxu0 %v2639
        %2855 = vmatprep.subr.bf16.mxu0 0
        %2856 = vmatpush1.bf16.msra.mxu0 %v2640
        %2857 = vmatprep.subr.bf16.mxu0 0
        %2858 = vmatpush1.bf16.msra.mxu0 %v2641
        %2859 = vmatprep.subr.bf16.mxu0 0
        %2860 = vmatpush1.bf16.msra.mxu0 %v2642
        %2861 = vmatprep.subr.bf16.mxu0 0
        %2862 = vmatpush1.bf16.msra.mxu0 %v2643
        %2863 = vmatprep.subr.bf16.mxu0 0
        %2864 = vmatpush1.bf16.msra.mxu0 %v2644
        %2865 = vmatprep.subr.bf16.mxu0 0
        %2866 = vmatpush1.bf16.msra.mxu0 %v2645
        %2867 = vmatprep.subr.bf16.mxu0 0
        %2868 = vmatpush1.bf16.msra.mxu0 %v2646
        %2869 = vmatprep.subr.bf16.mxu0 0
        %2870 = vmatpush1.bf16.msra.mxu0 %v2647
        %2871 = vmatprep.subr.bf16.mxu0 0
        %2872 = vmatpush1.bf16.msra.mxu0 %v2648
        %2873 = vmatprep.subr.bf16.mxu0 0
        %2874 = vmatpush1.bf16.msra.mxu0 %v2649
        %2875 = vmatprep.mubr.bf16.mxu0 %v2358
        %2876 = vmatmul.mubr.bf16.gmra.mrb[0].mxu0 %v2357
        %v2877 = vpop.f32.mrb[0].mxu0
        %v2878 = vadd.f32 %v2717, %v2877
        %v2879 = vpop.f32.mrb[0].mxu0
        %v2880 = vpop.f32.mrb[0].mxu0
        %v2881 = vadd.f32 %v2720, %v2880
        %v2882 = vpop.f32.mrb[0].mxu0
        %2883 = vmatprep.mubr.bf16.mxu0 %v2362
        %2884 = vmatmul.mubr.bf16.gmra.mrb[0].mxu0 %v2361
        %v2885 = vpop.f32.mrb[0].mxu0
        %v2886 = vadd.f32 %v2725, %v2885
        %v2887 = vpop.f32.mrb[0].mxu0
        %v2888 = vpop.f32.mrb[0].mxu0
        %v2889 = vadd.f32 %v2728, %v2888
        %v2890 = vpop.f32.mrb[0].mxu0
        %2891 = vmatprep.mubr.bf16.mxu0 %v2366
        %2892 = vmatmul.mubr.bf16.gmra.mrb[0].mxu0 %v2365
        %v2893 = vpop.f32.mrb[0].mxu0
        %v2894 = vadd.f32 %v2733, %v2893
        %v2895 = vpop.f32.mrb[0].mxu0
        %v2896 = vpop.f32.mrb[0].mxu0
        %v2897 = vadd.f32 %v2736, %v2896
        %v2898 = vpop.f32.mrb[0].mxu0
        %2899 = vmatprep.mubr.bf16.mxu0 %v2370
        %2900 = vmatmul.mubr.bf16.gmra.mrb[0].mxu0 %v2369
        %v2901 = vpop.f32.mrb[0].mxu0
        %v2902 = vadd.f32 %v2741, %v2901
        %v2903 = vpop.f32.mrb[0].mxu0
        %v2904 = vpop.f32.mrb[0].mxu0
        %v2905 = vadd.f32 %v2744, %v2904
        %v2906 = vpop.f32.mrb[0].mxu0
        %2907 = vmatprep.mubr.bf16.mxu0 %v2374
        %2908 = vmatmul.mubr.bf16.gmra.mrb[0].mxu0 %v2373
        %v2909 = vpop.f32.mrb[0].mxu0
        %v2910 = vadd.f32 %v2749, %v2909
        %v2911 = vpop.f32.mrb[0].mxu0
        %v2912 = vpop.f32.mrb[0].mxu0
        %v2913 = vadd.f32 %v2752, %v2912
        %v2914 = vpop.f32.mrb[0].mxu0
        %2915 = vmatprep.mubr.bf16.mxu0 %v2378
        %2916 = vmatmul.mubr.bf16.gmra.mrb[0].mxu0 %v2377
        %v2917 = vpop.f32.mrb[0].mxu0
        %v2918 = vadd.f32 %v2757, %v2917
        %v2919 = vpop.f32.mrb[0].mxu0
        %v2920 = vpop.f32.mrb[0].mxu0
        %v2921 = vadd.f32 %v2760, %v2920
        %v2922 = vpop.f32.mrb[0].mxu0
        %2923 = vmatprep.mubr.bf16.mxu0 %v2382
        %2924 = vmatmul.mubr.bf16.gmra.mrb[0].mxu0 %v2381
        %v2925 = vpop.f32.mrb[0].mxu0
        %v2926 = vadd.f32 %v2765, %v2925
        %v2927 = vpop.f32.mrb[0].mxu0
        %v2928 = vpop.f32.mrb[0].mxu0
        %v2929 = vadd.f32 %v2768, %v2928
        %v2930 = vpop.f32.mrb[0].mxu0
        %2931 = vmatprep.mubr.bf16.mxu0 %v2386
        %2932 = vmatmul.mubr.bf16.gmra.mrb[0].mxu0 %v2385
        %v2933 = vpop.f32.mrb[0].mxu0
        %v2934 = vadd.f32 %v2773, %v2933
        %v2935 = vpop.f32.mrb[0].mxu0
        %v2936 = vpop.f32.mrb[0].mxu0
        %v2937 = vadd.f32 %v2776, %v2936
        %v2938 = vpop.f32.mrb[0].mxu0
        %2939 = vmatprep.mubr.bf16.mxu0 %v2390
        %2940 = vmatmul.mubr.bf16.gmra.mrb[0].mxu0 %v2389
        %v2941 = vpop.f32.mrb[0].mxu0
        %v2942 = vadd.f32 %v2781, %v2941
        %v2943 = vpop.f32.mrb[0].mxu0
        %v2944 = vpop.f32.mrb[0].mxu0
        %v2945 = vadd.f32 %v2784, %v2944
        %v2946 = vpop.f32.mrb[0].mxu0
        %2947 = vmatprep.mubr.bf16.mxu0 %v2394
        %2948 = vmatmul.mubr.bf16.gmra.mrb[0].mxu0 %v2393
        %v2949 = vpop.f32.mrb[0].mxu0
        %v2950 = vadd.f32 %v2789, %v2949
        %v2951 = vpop.f32.mrb[0].mxu0
        %v2952 = vpop.f32.mrb[0].mxu0
        %v2953 = vadd.f32 %v2792, %v2952
        %v2954 = vpop.f32.mrb[0].mxu0
        %2955 = vmatprep.mubr.bf16.mxu0 %v2398
        %2956 = vmatmul.mubr.bf16.gmra.mrb[0].mxu0 %v2397
        %v2957 = vpop.f32.mrb[0].mxu0
        %v2958 = vadd.f32 %v2797, %v2957
        %v2959 = vpop.f32.mrb[0].mxu0
        %v2960 = vpop.f32.mrb[0].mxu0
        %v2961 = vadd.f32 %v2800, %v2960
        %v2962 = vpop.f32.mrb[0].mxu0
        %2963 = vmatprep.mubr.bf16.mxu0 %v2402
        %2964 = vmatmul.mubr.bf16.gmra.mrb[0].mxu0 %v2401
        %v2965 = vpop.f32.mrb[0].mxu0
        %v2966 = vadd.f32 %v2805, %v2965
        %v2967 = vpop.f32.mrb[0].mxu0
        %v2968 = vpop.f32.mrb[0].mxu0
        %v2969 = vadd.f32 %v2808, %v2968
        %v2970 = vpop.f32.mrb[0].mxu0
        %2971 = vmatprep.mubr.bf16.mxu0 %v2406
        %2972 = vmatmul.mubr.bf16.gmra.mrb[0].mxu0 %v2405
        %v2973 = vpop.f32.mrb[0].mxu0
        %v2974 = vadd.f32 %v2813, %v2973
        %v2975 = vpop.f32.mrb[0].mxu0
        %v2976 = vpop.f32.mrb[0].mxu0
        %v2977 = vadd.f32 %v2816, %v2976
        %v2978 = vpop.f32.mrb[0].mxu0
        %2979 = vmatprep.mubr.bf16.mxu0 %v2410
        %2980 = vmatmul.mubr.bf16.gmra.mrb[0].mxu0 %v2409
        %v2981 = vpop.f32.mrb[0].mxu0
        %v2982 = vadd.f32 %v2821, %v2981
        %v2983 = vpop.f32.mrb[0].mxu0
        %v2984 = vpop.f32.mrb[0].mxu0
        %v2985 = vadd.f32 %v2824, %v2984
        %v2986 = vpop.f32.mrb[0].mxu0
        %2987 = vmatprep.mubr.bf16.mxu0 %v2414
        %2988 = vmatmul.mubr.bf16.gmra.mrb[0].mxu0 %v2413
        %v2989 = vpop.f32.mrb[0].mxu0
        %v2990 = vadd.f32 %v2829, %v2989
        %v2991 = vpop.f32.mrb[0].mxu0
        %v2992 = vpop.f32.mrb[0].mxu0
        %v2993 = vadd.f32 %v2832, %v2992
        %v2994 = vpop.f32.mrb[0].mxu0
        %2995 = vmatprep.mubr.bf16.mxu0 %v2418
        %2996 = vmatmul.mubr.bf16.gmra.mrb[0].mxu0 %v2417
        %v2997 = vpop.f32.mrb[0].mxu0
        %v2998 = vadd.f32 %v2837, %v2997
        %v2999 = vpop.f32.mrb[0].mxu0
        %v3000 = vpop.f32.mrb[0].mxu0
        %v3001 = vadd.f32 %v2840, %v3000
        %v3002 = vpop.f32.mrb[0].mxu0
        %3003 = vdwg.mxu0
        %v3004 = vld [vmem:[%s7] sm:$0x1]
        %v3005 = vld [vmem:[%s8] sm:$0x1]
        %3006 = vadd.xlane.f32.xlu0 %v2878
        %v3007 = vpop.xlane.xlu0 %3006
        %3008 = vadd.xlane.f32.xlu0 %v2881
        %v3009 = vpop.xlane.xlu0 %3008
        %3010 = vadd.xlane.f32.xlu0 %v2886
        %v3011 = vpop.xlane.xlu0 %3010
        %3012 = vadd.xlane.f32.xlu0 %v2889
        %v3013 = vpop.xlane.xlu0 %3012
        %3014 = vadd.xlane.f32.xlu0 %v2894
        %v3015 = vpop.xlane.xlu0 %3014
        %3016 = vadd.xlane.f32.xlu0 %v2897
        %v3017 = vpop.xlane.xlu0 %3016
        %3018 = vadd.xlane.f32.xlu0 %v2902
        %v3019 = vpop.xlane.xlu0 %3018
        %3020 = vadd.xlane.f32.xlu0 %v2905
        %v3021 = vpop.xlane.xlu0 %3020
        %3022 = vadd.xlane.f32.xlu0 %v2910
        %v3023 = vpop.xlane.xlu0 %3022
        %3024 = vadd.xlane.f32.xlu0 %v2913
        %v3025 = vpop.xlane.xlu0 %3024
        %3026 = vadd.xlane.f32.xlu0 %v2918
        %v3027 = vpop.xlane.xlu0 %3026
        %3028 = vadd.xlane.f32.xlu0 %v2921
        %v3029 = vpop.xlane.xlu0 %3028
        %3030 = vadd.xlane.f32.xlu0 %v2926
        %v3031 = vpop.xlane.xlu0 %3030
        %3032 = vadd.xlane.f32.xlu0 %v2929
        %v3033 = vpop.xlane.xlu0 %3032
        %3034 = vadd.xlane.f32.xlu0 %v2934
        %v3035 = vpop.xlane.xlu0 %3034
        %3036 = vadd.xlane.f32.xlu0 %v2937
        %v3037 = vpop.xlane.xlu0 %3036
        %3038 = vadd.xlane.f32.xlu0 %v2942
        %v3039 = vpop.xlane.xlu0 %3038
        %3040 = vadd.xlane.f32.xlu0 %v2945
        %v3041 = vpop.xlane.xlu0 %3040
        %3042 = vadd.xlane.f32.xlu0 %v2950
        %v3043 = vpop.xlane.xlu0 %3042
        %3044 = vadd.xlane.f32.xlu0 %v2953
        %v3045 = vpop.xlane.xlu0 %3044
        %3046 = vadd.xlane.f32.xlu0 %v2958
        %v3047 = vpop.xlane.xlu0 %3046
        %3048 = vadd.xlane.f32.xlu0 %v2961
        %v3049 = vpop.xlane.xlu0 %3048
        %3050 = vadd.xlane.f32.xlu0 %v2966
        %v3051 = vpop.xlane.xlu0 %3050
        %3052 = vadd.xlane.f32.xlu0 %v2969
        %v3053 = vpop.xlane.xlu0 %3052
        %3054 = vadd.xlane.f32.xlu0 %v2974
        %v3055 = vpop.xlane.xlu0 %3054
        %3056 = vadd.xlane.f32.xlu0 %v2977
        %v3057 = vpop.xlane.xlu0 %3056
        %3058 = vadd.xlane.f32.xlu0 %v2982
        %v3059 = vpop.xlane.xlu0 %3058
        %3060 = vadd.xlane.f32.xlu0 %v2985
        %v3061 = vpop.xlane.xlu0 %3060
        %3062 = vadd.xlane.f32.xlu0 %v2990
        %v3063 = vpop.xlane.xlu0 %3062
        %3064 = vadd.xlane.f32.xlu0 %v2993
        %v3065 = vpop.xlane.xlu0 %3064
        %3066 = vadd.xlane.f32.xlu0 %v2998
        %v3067 = vpop.xlane.xlu0 %3066
        %3068 = vadd.xlane.f32.xlu0 %v3001
        %v3069 = vpop.xlane.xlu0 %3068
        %v3070 = vmul.f32 %v3007, 0.0078125
        %v3071 = vmul.f32 %v3009, 0.0078125
        %v3072 = vmul.f32 %v3011, 0.0078125
        %v3073 = vmul.f32 %v3013, 0.0078125
        %v3074 = vmul.f32 %v3015, 0.0078125
        %v3075 = vmul.f32 %v3017, 0.0078125
        %v3076 = vmul.f32 %v3019, 0.0078125
        %v3077 = vmul.f32 %v3021, 0.0078125
        %v3078 = vmul.f32 %v3023, 0.0078125
        %v3079 = vmul.f32 %v3025, 0.0078125
        %v3080 = vmul.f32 %v3027, 0.0078125
        %v3081 = vmul.f32 %v3029, 0.0078125
        %v3082 = vmul.f32 %v3031, 0.0078125
        %v3083 = vmul.f32 %v3033, 0.0078125
        %v3084 = vmul.f32 %v3035, 0.0078125
        %v3085 = vmul.f32 %v3037, 0.0078125
        %v3086 = vmul.f32 %v3039, 0.0078125
        %v3087 = vmul.f32 %v3041, 0.0078125
        %v3088 = vmul.f32 %v3043, 0.0078125
        %v3089 = vmul.f32 %v3045, 0.0078125
        %v3090 = vmul.f32 %v3047, 0.0078125
        %v3091 = vmul.f32 %v3049, 0.0078125
        %v3092 = vmul.f32 %v3051, 0.0078125
        %v3093 = vmul.f32 %v3053, 0.0078125
        %v3094 = vmul.f32 %v3055, 0.0078125
        %v3095 = vmul.f32 %v3057, 0.0078125
        %v3096 = vmul.f32 %v3059, 0.0078125
        %v3097 = vmul.f32 %v3061, 0.0078125
        %v3098 = vmul.f32 %v3063, 0.0078125
        %v3099 = vmul.f32 %v3065, 0.0078125
        %v3100 = vmul.f32 %v3067, 0.0078125
        %v3101 = vmul.f32 %v3069, 0.0078125
        %v3102 = vmul.f32 %v2878, %v2878
        %v3103 = vmul.f32 %v2881, %v2881
        %v3104 = vmul.f32 %v2886, %v2886
        %v3105 = vmul.f32 %v2889, %v2889
        %v3106 = vmul.f32 %v2894, %v2894
        %v3107 = vmul.f32 %v2897, %v2897
        %v3108 = vmul.f32 %v2902, %v2902
        %v3109 = vmul.f32 %v2905, %v2905
        %v3110 = vmul.f32 %v2910, %v2910
        %v3111 = vmul.f32 %v2913, %v2913
        %v3112 = vmul.f32 %v2918, %v2918
        %v3113 = vmul.f32 %v2921, %v2921
        %v3114 = vmul.f32 %v2926, %v2926
        %v3115 = vmul.f32 %v2929, %v2929
        %v3116 = vmul.f32 %v2934, %v2934
        %v3117 = vmul.f32 %v2937, %v2937
        %v3118 = vmul.f32 %v2942, %v2942
        %v3119 = vmul.f32 %v2945, %v2945
        %v3120 = vmul.f32 %v2950, %v2950
        %v3121 = vmul.f32 %v2953, %v2953
        %v3122 = vmul.f32 %v2958, %v2958
        %v3123 = vmul.f32 %v2961, %v2961
        %v3124 = vmul.f32 %v2966, %v2966
        %v3125 = vmul.f32 %v2969, %v2969
        %v3126 = vmul.f32 %v2974, %v2974
        %v3127 = vmul.f32 %v2977, %v2977
        %v3128 = vmul.f32 %v2982, %v2982
        %v3129 = vmul.f32 %v2985, %v2985
        %v3130 = vmul.f32 %v2990, %v2990
        %v3131 = vmul.f32 %v2993, %v2993
        %v3132 = vmul.f32 %v2998, %v2998
        %v3133 = vmul.f32 %v3001, %v3001
        %3134 = vadd.xlane.f32.xlu0 %v3102
        %v3135 = vpop.xlane.xlu0 %3134
        %3136 = vadd.xlane.f32.xlu0 %v3103
        %v3137 = vpop.xlane.xlu0 %3136
        %3138 = vadd.xlane.f32.xlu0 %v3104
        %v3139 = vpop.xlane.xlu0 %3138
        %3140 = vadd.xlane.f32.xlu0 %v3105
        %v3141 = vpop.xlane.xlu0 %3140
        %3142 = vadd.xlane.f32.xlu0 %v3106
        %v3143 = vpop.xlane.xlu0 %3142
        %3144 = vadd.xlane.f32.xlu0 %v3107
        %v3145 = vpop.xlane.xlu0 %3144
        %3146 = vadd.xlane.f32.xlu0 %v3108
        %v3147 = vpop.xlane.xlu0 %3146
        %3148 = vadd.xlane.f32.xlu0 %v3109
        %v3149 = vpop.xlane.xlu0 %3148
        %3150 = vadd.xlane.f32.xlu0 %v3110
        %v3151 = vpop.xlane.xlu0 %3150
        %3152 = vadd.xlane.f32.xlu0 %v3111
        %v3153 = vpop.xlane.xlu0 %3152
        %3154 = vadd.xlane.f32.xlu0 %v3112
        %v3155 = vpop.xlane.xlu0 %3154
        %3156 = vadd.xlane.f32.xlu0 %v3113
        %v3157 = vpop.xlane.xlu0 %3156
        %3158 = vadd.xlane.f32.xlu0 %v3114
        %v3159 = vpop.xlane.xlu0 %3158
        %3160 = vadd.xlane.f32.xlu0 %v3115
        %v3161 = vpop.xlane.xlu0 %3160
        %3162 = vadd.xlane.f32.xlu0 %v3116
        %v3163 = vpop.xlane.xlu0 %3162
        %3164 = vadd.xlane.f32.xlu0 %v3117
        %v3165 = vpop.xlane.xlu0 %3164
        %3166 = vadd.xlane.f32.xlu0 %v3118
        %v3167 = vpop.xlane.xlu0 %3166
        %3168 = vadd.xlane.f32.xlu0 %v3119
        %v3169 = vpop.xlane.xlu0 %3168
        %3170 = vadd.xlane.f32.xlu0 %v3120
        %v3171 = vpop.xlane.xlu0 %3170
        %3172 = vadd.xlane.f32.xlu0 %v3121
        %v3173 = vpop.xlane.xlu0 %3172
        %3174 = vadd.xlane.f32.xlu0 %v3122
        %v3175 = vpop.xlane.xlu0 %3174
        %3176 = vadd.xlane.f32.xlu0 %v3123
        %v3177 = vpop.xlane.xlu0 %3176
        %3178 = vadd.xlane.f32.xlu0 %v3124
        %v3179 = vpop.xlane.xlu0 %3178
        %3180 = vadd.xlane.f32.xlu0 %v3125
        %v3181 = vpop.xlane.xlu0 %3180
        %3182 = vadd.xlane.f32.xlu0 %v3126
        %v3183 = vpop.xlane.xlu0 %3182
        %3184 = vadd.xlane.f32.xlu0 %v3127
        %v3185 = vpop.xlane.xlu0 %3184
        %3186 = vadd.xlane.f32.xlu0 %v3128
        %v3187 = vpop.xlane.xlu0 %3186
        %3188 = vadd.xlane.f32.xlu0 %v3129
        %v3189 = vpop.xlane.xlu0 %3188
        %3190 = vadd.xlane.f32.xlu0 %v3130
        %v3191 = vpop.xlane.xlu0 %3190
        %3192 = vadd.xlane.f32.xlu0 %v3131
        %v3193 = vpop.xlane.xlu0 %3192
        %3194 = vadd.xlane.f32.xlu0 %v3132
        %v3195 = vpop.xlane.xlu0 %3194
        %3196 = vadd.xlane.f32.xlu0 %v3133
        %v3197 = vpop.xlane.xlu0 %3196
        %v3198 = vmul.f32 %v3135, 0.0078125
        %v3199 = vmul.f32 %v3137, 0.0078125
        %v3200 = vmul.f32 %v3139, 0.0078125
        %v3201 = vmul.f32 %v3141, 0.0078125
        %v3202 = vmul.f32 %v3143, 0.0078125
        %v3203 = vmul.f32 %v3145, 0.0078125
        %v3204 = vmul.f32 %v3147, 0.0078125
        %v3205 = vmul.f32 %v3149, 0.0078125
        %v3206 = vmul.f32 %v3151, 0.0078125
        %v3207 = vmul.f32 %v3153, 0.0078125
        %v3208 = vmul.f32 %v3155, 0.0078125
        %v3209 = vmul.f32 %v3157, 0.0078125
        %v3210 = vmul.f32 %v3159, 0.0078125
        %v3211 = vmul.f32 %v3161, 0.0078125
        %v3212 = vmul.f32 %v3163, 0.0078125
        %v3213 = vmul.f32 %v3165, 0.0078125
        %v3214 = vmul.f32 %v3167, 0.0078125
        %v3215 = vmul.f32 %v3169, 0.0078125
        %v3216 = vmul.f32 %v3171, 0.0078125
        %v3217 = vmul.f32 %v3173, 0.0078125
        %v3218 = vmul.f32 %v3175, 0.0078125
        %v3219 = vmul.f32 %v3177, 0.0078125
        %v3220 = vmul.f32 %v3179, 0.0078125
        %v3221 = vmul.f32 %v3181, 0.0078125
        %v3222 = vmul.f32 %v3183, 0.0078125
        %v3223 = vmul.f32 %v3185, 0.0078125
        %v3224 = vmul.f32 %v3187, 0.0078125
        %v3225 = vmul.f32 %v3189, 0.0078125
        %v3226 = vmul.f32 %v3191, 0.0078125
        %v3227 = vmul.f32 %v3193, 0.0078125
        %v3228 = vmul.f32 %v3195, 0.0078125
        %v3229 = vmul.f32 %v3197, 0.0078125
        %v3230 = vmul.f32 %v3070, %v3070
        %v3231 = vmul.f32 %v3071, %v3071
        %v3232 = vmul.f32 %v3072, %v3072
        %v3233 = vmul.f32 %v3073, %v3073
        %v3234 = vmul.f32 %v3074, %v3074
        %v3235 = vmul.f32 %v3075, %v3075
        %v3236 = vmul.f32 %v3076, %v3076
        %v3237 = vmul.f32 %v3077, %v3077
        %v3238 = vmul.f32 %v3078, %v3078
        %v3239 = vmul.f32 %v3079, %v3079
        %v3240 = vmul.f32 %v3080, %v3080
        %v3241 = vmul.f32 %v3081, %v3081
        %v3242 = vmul.f32 %v3082, %v3082
        %v3243 = vmul.f32 %v3083, %v3083
        %v3244 = vmul.f32 %v3084, %v3084
        %v3245 = vmul.f32 %v3085, %v3085
        %v3246 = vmul.f32 %v3086, %v3086
        %v3247 = vmul.f32 %v3087, %v3087
        %v3248 = vmul.f32 %v3088, %v3088
        %v3249 = vmul.f32 %v3089, %v3089
        %v3250 = vmul.f32 %v3090, %v3090
        %v3251 = vmul.f32 %v3091, %v3091
        %v3252 = vmul.f32 %v3092, %v3092
        %v3253 = vmul.f32 %v3093, %v3093
        %v3254 = vmul.f32 %v3094, %v3094
        %v3255 = vmul.f32 %v3095, %v3095
        %v3256 = vmul.f32 %v3096, %v3096
        %v3257 = vmul.f32 %v3097, %v3097
        %v3258 = vmul.f32 %v3098, %v3098
        %v3259 = vmul.f32 %v3099, %v3099
        %v3260 = vmul.f32 %v3100, %v3100
        %v3261 = vmul.f32 %v3101, %v3101
        %v3262 = vsub.f32 %v3198, %v3230
        %v3263 = vsub.f32 %v3199, %v3231
        %v3264 = vsub.f32 %v3200, %v3232
        %v3265 = vsub.f32 %v3201, %v3233
        %v3266 = vsub.f32 %v3202, %v3234
        %v3267 = vsub.f32 %v3203, %v3235
        %v3268 = vsub.f32 %v3204, %v3236
        %v3269 = vsub.f32 %v3205, %v3237
        %v3270 = vsub.f32 %v3206, %v3238
        %v3271 = vsub.f32 %v3207, %v3239
        %v3272 = vsub.f32 %v3208, %v3240
        %v3273 = vsub.f32 %v3209, %v3241
        %v3274 = vsub.f32 %v3210, %v3242
        %v3275 = vsub.f32 %v3211, %v3243
        %v3276 = vsub.f32 %v3212, %v3244
        %v3277 = vsub.f32 %v3213, %v3245
        %v3278 = vsub.f32 %v3214, %v3246
        %v3279 = vsub.f32 %v3215, %v3247
        %v3280 = vsub.f32 %v3216, %v3248
        %v3281 = vsub.f32 %v3217, %v3249
        %v3282 = vsub.f32 %v3218, %v3250
        %v3283 = vsub.f32 %v3219, %v3251
        %v3284 = vsub.f32 %v3220, %v3252
        %v3285 = vsub.f32 %v3221, %v3253
        %v3286 = vsub.f32 %v3222, %v3254
        %v3287 = vsub.f32 %v3223, %v3255
        %v3288 = vsub.f32 %v3224, %v3256
        %v3289 = vsub.f32 %v3225, %v3257
        %v3290 = vsub.f32 %v3226, %v3258
        %v3291 = vsub.f32 %v3227, %v3259
        %v3292 = vsub.f32 %v3228, %v3260
        %v3293 = vsub.f32 %v3229, %v3261
        %v3294 = vadd.f32 %v3262, 1e-05
        %v3295 = vadd.f32 %v3263, 1e-05
        %v3296 = vadd.f32 %v3264, 1e-05
        %v3297 = vadd.f32 %v3265, 1e-05
        %v3298 = vadd.f32 %v3266, 1e-05
        %v3299 = vadd.f32 %v3267, 1e-05
        %v3300 = vadd.f32 %v3268, 1e-05
        %v3301 = vadd.f32 %v3269, 1e-05
        %v3302 = vadd.f32 %v3270, 1e-05
        %v3303 = vadd.f32 %v3271, 1e-05
        %v3304 = vadd.f32 %v3272, 1e-05
        %v3305 = vadd.f32 %v3273, 1e-05
        %v3306 = vadd.f32 %v3274, 1e-05
        %v3307 = vadd.f32 %v3275, 1e-05
        %v3308 = vadd.f32 %v3276, 1e-05
        %v3309 = vadd.f32 %v3277, 1e-05
        %v3310 = vadd.f32 %v3278, 1e-05
        %v3311 = vadd.f32 %v3279, 1e-05
        %v3312 = vadd.f32 %v3280, 1e-05
        %v3313 = vadd.f32 %v3281, 1e-05
        %v3314 = vadd.f32 %v3282, 1e-05
        %v3315 = vadd.f32 %v3283, 1e-05
        %v3316 = vadd.f32 %v3284, 1e-05
        %v3317 = vadd.f32 %v3285, 1e-05
        %v3318 = vadd.f32 %v3286, 1e-05
        %v3319 = vadd.f32 %v3287, 1e-05
        %v3320 = vadd.f32 %v3288, 1e-05
        %v3321 = vadd.f32 %v3289, 1e-05
        %v3322 = vadd.f32 %v3290, 1e-05
        %v3323 = vadd.f32 %v3291, 1e-05
        %v3324 = vadd.f32 %v3292, 1e-05
        %v3325 = vadd.f32 %v3293, 1e-05
        %v3326 = vrsqrt.pop %v3294
        %v3327 = vrsqrt.pop %v3295
        %v3328 = vrsqrt.pop %v3296
        %v3329 = vrsqrt.pop %v3297
        %v3330 = vrsqrt.pop %v3298
        %v3331 = vrsqrt.pop %v3299
        %v3332 = vrsqrt.pop %v3300
        %v3333 = vrsqrt.pop %v3301
        %v3334 = vrsqrt.pop %v3302
        %v3335 = vrsqrt.pop %v3303
        %v3336 = vrsqrt.pop %v3304
        %v3337 = vrsqrt.pop %v3305
        %v3338 = vrsqrt.pop %v3306
        %v3339 = vrsqrt.pop %v3307
        %v3340 = vrsqrt.pop %v3308
        %v3341 = vrsqrt.pop %v3309
        %v3342 = vrsqrt.pop %v3310
        %v3343 = vrsqrt.pop %v3311
        %v3344 = vrsqrt.pop %v3312
        %v3345 = vrsqrt.pop %v3313
        %v3346 = vrsqrt.pop %v3314
        %v3347 = vrsqrt.pop %v3315
        %v3348 = vrsqrt.pop %v3316
        %v3349 = vrsqrt.pop %v3317
        %v3350 = vrsqrt.pop %v3318
        %v3351 = vrsqrt.pop %v3319
        %v3352 = vrsqrt.pop %v3320
        %v3353 = vrsqrt.pop %v3321
        %v3354 = vrsqrt.pop %v3322
        %v3355 = vrsqrt.pop %v3323
        %v3356 = vrsqrt.pop %v3324
        %v3357 = vrsqrt.pop %v3325
        %v3359 = vlaneseq
        %v3360 = vshrl.u32 %v3359, 7
        %v3361 = vsub.s32 0, %v3360
        %v3362 = vrot.slane %v3004, %v3361
        %v3364 = vmul.f32 %v3326, %v3362
        %v3365 = vmul.f32 %v3327, %v3362
        %v3366 = vmul.f32 %v3328, %v3362
        %v3367 = vmul.f32 %v3329, %v3362
        %v3368 = vmul.f32 %v3330, %v3362
        %v3369 = vmul.f32 %v3331, %v3362
        %v3370 = vmul.f32 %v3332, %v3362
        %v3371 = vmul.f32 %v3333, %v3362
        %v3372 = vmul.f32 %v3334, %v3362
        %v3373 = vmul.f32 %v3335, %v3362
        %v3374 = vmul.f32 %v3336, %v3362
        %v3375 = vmul.f32 %v3337, %v3362
        %v3376 = vmul.f32 %v3338, %v3362
        %v3377 = vmul.f32 %v3339, %v3362
        %v3378 = vmul.f32 %v3340, %v3362
        %v3379 = vmul.f32 %v3341, %v3362
        %v3380 = vmul.f32 %v3342, %v3362
        %v3381 = vmul.f32 %v3343, %v3362
        %v3382 = vmul.f32 %v3344, %v3362
        %v3383 = vmul.f32 %v3345, %v3362
        %v3384 = vmul.f32 %v3346, %v3362
        %v3385 = vmul.f32 %v3347, %v3362
        %v3386 = vmul.f32 %v3348, %v3362
        %v3387 = vmul.f32 %v3349, %v3362
        %v3388 = vmul.f32 %v3350, %v3362
        %v3389 = vmul.f32 %v3351, %v3362
        %v3390 = vmul.f32 %v3352, %v3362
        %v3391 = vmul.f32 %v3353, %v3362
        %v3392 = vmul.f32 %v3354, %v3362
        %v3393 = vmul.f32 %v3355, %v3362
        %v3394 = vmul.f32 %v3356, %v3362
        %v3395 = vmul.f32 %v3357, %v3362
        %v3396 = vsub.f32 %v2878, %v3070
        %v3397 = vsub.f32 %v2881, %v3071
        %v3398 = vsub.f32 %v2886, %v3072
        %v3399 = vsub.f32 %v2889, %v3073
        %v3400 = vsub.f32 %v2894, %v3074
        %v3401 = vsub.f32 %v2897, %v3075
        %v3402 = vsub.f32 %v2902, %v3076
        %v3403 = vsub.f32 %v2905, %v3077
        %v3404 = vsub.f32 %v2910, %v3078
        %v3405 = vsub.f32 %v2913, %v3079
        %v3406 = vsub.f32 %v2918, %v3080
        %v3407 = vsub.f32 %v2921, %v3081
        %v3408 = vsub.f32 %v2926, %v3082
        %v3409 = vsub.f32 %v2929, %v3083
        %v3410 = vsub.f32 %v2934, %v3084
        %v3411 = vsub.f32 %v2937, %v3085
        %v3412 = vsub.f32 %v2942, %v3086
        %v3413 = vsub.f32 %v2945, %v3087
        %v3414 = vsub.f32 %v2950, %v3088
        %v3415 = vsub.f32 %v2953, %v3089
        %v3416 = vsub.f32 %v2958, %v3090
        %v3417 = vsub.f32 %v2961, %v3091
        %v3418 = vsub.f32 %v2966, %v3092
        %v3419 = vsub.f32 %v2969, %v3093
        %v3420 = vsub.f32 %v2974, %v3094
        %v3421 = vsub.f32 %v2977, %v3095
        %v3422 = vsub.f32 %v2982, %v3096
        %v3423 = vsub.f32 %v2985, %v3097
        %v3424 = vsub.f32 %v2990, %v3098
        %v3425 = vsub.f32 %v2993, %v3099
        %v3426 = vsub.f32 %v2998, %v3100
        %v3427 = vsub.f32 %v3001, %v3101
        %v3428 = vmul.f32 %v3396, %v3364
        %v3429 = vmul.f32 %v3397, %v3365
        %v3430 = vmul.f32 %v3398, %v3366
        %v3431 = vmul.f32 %v3399, %v3367
        %v3432 = vmul.f32 %v3400, %v3368
        %v3433 = vmul.f32 %v3401, %v3369
        %v3434 = vmul.f32 %v3402, %v3370
        %v3435 = vmul.f32 %v3403, %v3371
        %v3436 = vmul.f32 %v3404, %v3372
        %v3437 = vmul.f32 %v3405, %v3373
        %v3438 = vmul.f32 %v3406, %v3374
        %v3439 = vmul.f32 %v3407, %v3375
        %v3440 = vmul.f32 %v3408, %v3376
        %v3441 = vmul.f32 %v3409, %v3377
        %v3442 = vmul.f32 %v3410, %v3378
        %v3443 = vmul.f32 %v3411, %v3379
        %v3444 = vmul.f32 %v3412, %v3380
        %v3445 = vmul.f32 %v3413, %v3381
        %v3446 = vmul.f32 %v3414, %v3382
        %v3447 = vmul.f32 %v3415, %v3383
        %v3448 = vmul.f32 %v3416, %v3384
        %v3449 = vmul.f32 %v3417, %v3385
        %v3450 = vmul.f32 %v3418, %v3386
        %v3451 = vmul.f32 %v3419, %v3387
        %v3452 = vmul.f32 %v3420, %v3388
        %v3453 = vmul.f32 %v3421, %v3389
        %v3454 = vmul.f32 %v3422, %v3390
        %v3455 = vmul.f32 %v3423, %v3391
        %v3456 = vmul.f32 %v3424, %v3392
        %v3457 = vmul.f32 %v3425, %v3393
        %v3458 = vmul.f32 %v3426, %v3394
        %v3459 = vmul.f32 %v3427, %v3395
        %v3461 = vlaneseq
        %v3462 = vshrl.u32 %v3461, 7
        %v3463 = vsub.s32 0, %v3462
        %v3464 = vrot.slane %v3005, %v3463
        %v3466 = vadd.f32 %v3428, %v3464
        %v3467 = vadd.f32 %v3429, %v3464
        %v3468 = vadd.f32 %v3430, %v3464
        %v3469 = vadd.f32 %v3431, %v3464
        %v3470 = vadd.f32 %v3432, %v3464
        %v3471 = vadd.f32 %v3433, %v3464
        %v3472 = vadd.f32 %v3434, %v3464
        %v3473 = vadd.f32 %v3435, %v3464
        %v3474 = vadd.f32 %v3436, %v3464
        %v3475 = vadd.f32 %v3437, %v3464
        %v3476 = vadd.f32 %v3438, %v3464
        %v3477 = vadd.f32 %v3439, %v3464
        %v3478 = vadd.f32 %v3440, %v3464
        %v3479 = vadd.f32 %v3441, %v3464
        %v3480 = vadd.f32 %v3442, %v3464
        %v3481 = vadd.f32 %v3443, %v3464
        %v3482 = vadd.f32 %v3444, %v3464
        %v3483 = vadd.f32 %v3445, %v3464
        %v3484 = vadd.f32 %v3446, %v3464
        %v3485 = vadd.f32 %v3447, %v3464
        %v3486 = vadd.f32 %v3448, %v3464
        %v3487 = vadd.f32 %v3449, %v3464
        %v3488 = vadd.f32 %v3450, %v3464
        %v3489 = vadd.f32 %v3451, %v3464
        %v3490 = vadd.f32 %v3452, %v3464
        %v3491 = vadd.f32 %v3453, %v3464
        %v3492 = vadd.f32 %v3454, %v3464
        %v3493 = vadd.f32 %v3455, %v3464
        %v3494 = vadd.f32 %v3456, %v3464
        %v3495 = vadd.f32 %v3457, %v3464
        %v3496 = vadd.f32 %v3458, %v3464
        %v3497 = vadd.f32 %v3459, %v3464
        %v3498 = vmax.f32 %v3466, 0.0
        %v3499 = vmax.f32 %v3467, 0.0
        %v3500 = vmax.f32 %v3468, 0.0
        %v3501 = vmax.f32 %v3469, 0.0
        %v3502 = vmax.f32 %v3470, 0.0
        %v3503 = vmax.f32 %v3471, 0.0
        %v3504 = vmax.f32 %v3472, 0.0
        %v3505 = vmax.f32 %v3473, 0.0
        %v3506 = vmax.f32 %v3474, 0.0
        %v3507 = vmax.f32 %v3475, 0.0
        %v3508 = vmax.f32 %v3476, 0.0
        %v3509 = vmax.f32 %v3477, 0.0
        %v3510 = vmax.f32 %v3478, 0.0
        %v3511 = vmax.f32 %v3479, 0.0
        %v3512 = vmax.f32 %v3480, 0.0
        %v3513 = vmax.f32 %v3481, 0.0
        %v3514 = vmax.f32 %v3482, 0.0
        %v3515 = vmax.f32 %v3483, 0.0
        %v3516 = vmax.f32 %v3484, 0.0
        %v3517 = vmax.f32 %v3485, 0.0
        %v3518 = vmax.f32 %v3486, 0.0
        %v3519 = vmax.f32 %v3487, 0.0
        %v3520 = vmax.f32 %v3488, 0.0
        %v3521 = vmax.f32 %v3489, 0.0
        %v3522 = vmax.f32 %v3490, 0.0
        %v3523 = vmax.f32 %v3491, 0.0
        %v3524 = vmax.f32 %v3492, 0.0
        %v3525 = vmax.f32 %v3493, 0.0
        %v3526 = vmax.f32 %v3494, 0.0
        %v3527 = vmax.f32 %v3495, 0.0
        %v3528 = vmax.f32 %v3496, 0.0
        %v3529 = vmax.f32 %v3497, 0.0
        %v3530 = vadd.f32 %v383, %v3498
        %v3531 = vadd.f32 %v384, %v3499
        %v3532 = vadd.f32 %v385, %v3500
        %v3533 = vadd.f32 %v386, %v3501
        %v3534 = vadd.f32 %v387, %v3502
        %v3535 = vadd.f32 %v388, %v3503
        %v3536 = vadd.f32 %v389, %v3504
        %v3537 = vadd.f32 %v390, %v3505
        %v3538 = vadd.f32 %v391, %v3506
        %v3539 = vadd.f32 %v392, %v3507
        %v3540 = vadd.f32 %v393, %v3508
        %v3541 = vadd.f32 %v394, %v3509
        %v3542 = vadd.f32 %v395, %v3510
        %v3543 = vadd.f32 %v396, %v3511
        %v3544 = vadd.f32 %v397, %v3512
        %v3545 = vadd.f32 %v398, %v3513
        %v3546 = vadd.f32 %v399, %v3514
        %v3547 = vadd.f32 %v400, %v3515
        %v3548 = vadd.f32 %v401, %v3516
        %v3549 = vadd.f32 %v402, %v3517
        %v3550 = vadd.f32 %v403, %v3518
        %v3551 = vadd.f32 %v404, %v3519
        %v3552 = vadd.f32 %v405, %v3520
        %v3553 = vadd.f32 %v406, %v3521
        %v3554 = vadd.f32 %v407, %v3522
        %v3555 = vadd.f32 %v408, %v3523
        %v3556 = vadd.f32 %v409, %v3524
        %v3557 = vadd.f32 %v410, %v3525
        %v3558 = vadd.f32 %v411, %v3526
        %v3559 = vadd.f32 %v412, %v3527
        %v3560 = vadd.f32 %v413, %v3528
        %v3561 = vadd.f32 %v414, %v3529
        %3562 = vst [vmem:[%s379] sm:$0xff] %v3530
        %3563 = vst [vmem:[%s379 + $0x8] sm:$0xff] %v3531
        %3564 = vst [vmem:[%s379 + $0x10] sm:$0xff] %v3532
        %3565 = vst [vmem:[%s379 + $0x18] sm:$0xff] %v3533
        %3566 = vst [vmem:[%s379 + $0x20] sm:$0xff] %v3534
        %3567 = vst [vmem:[%s379 + $0x28] sm:$0xff] %v3535
        %3568 = vst [vmem:[%s379 + $0x30] sm:$0xff] %v3536
        %3569 = vst [vmem:[%s379 + $0x38] sm:$0xff] %v3537
        %3570 = vst [vmem:[%s379 + $0x40] sm:$0xff] %v3538
        %3571 = vst [vmem:[%s379 + $0x48] sm:$0xff] %v3539
        %3572 = vst [vmem:[%s379 + $0x50] sm:$0xff] %v3540
        %3573 = vst [vmem:[%s379 + $0x58] sm:$0xff] %v3541
        %3574 = vst [vmem:[%s379 + $0x60] sm:$0xff] %v3542
        %3575 = vst [vmem:[%s379 + $0x68] sm:$0xff] %v3543
        %3576 = vst [vmem:[%s379 + $0x70] sm:$0xff] %v3544
        %3577 = vst [vmem:[%s379 + $0x78] sm:$0xff] %v3545
        %3578 = vst [vmem:[%s379 + $0x80] sm:$0xff] %v3546
        %3579 = vst [vmem:[%s379 + $0x88] sm:$0xff] %v3547
        %3580 = vst [vmem:[%s379 + $0x90] sm:$0xff] %v3548
        %3581 = vst [vmem:[%s379 + $0x98] sm:$0xff] %v3549
        %3582 = vst [vmem:[%s379 + $0xa0] sm:$0xff] %v3550
        %3583 = vst [vmem:[%s379 + $0xa8] sm:$0xff] %v3551
        %3584 = vst [vmem:[%s379 + $0xb0] sm:$0xff] %v3552
        %3585 = vst [vmem:[%s379 + $0xb8] sm:$0xff] %v3553
        %3586 = vst [vmem:[%s379 + $0xc0] sm:$0xff] %v3554
        %3587 = vst [vmem:[%s379 + $0xc8] sm:$0xff] %v3555
        %3588 = vst [vmem:[%s379 + $0xd0] sm:$0xff] %v3556
        %3589 = vst [vmem:[%s379 + $0xd8] sm:$0xff] %v3557
        %3590 = vst [vmem:[%s379 + $0xe0] sm:$0xff] %v3558
        %3591 = vst [vmem:[%s379 + $0xe8] sm:$0xff] %v3559
        %3592 = vst [vmem:[%s379 + $0xf0] sm:$0xff] %v3560
        %3593 = vst [vmem:[%s379 + $0xf8] sm:$0xff] %v3561
        %s3594 = sand.u32 %s229, 1
        %s3595 = scalar_lea.sflag [#allocation4], %s3594
        %s3596 = sand.u32 %s229, 1
        %s3597 = smul.addr %s3596, 256
        %s3598 = scalar_lea.vmem [#allocation8], %s3597
        // Predicated region
        $region69: #{tpu_custom_call.1} parent=55 // pred_check
          %p3599 = pneg %p239
        $region70: #{tpu_custom_call.1} parent=55 // pred_check_branch
          %3601 = sbr.rel (%p3599) target = $region72
        $region71: #{tpu_custom_call.1} parent=55 // pred_region
          %s3602 = smul.u32 32, %s27
          %s3604 = ssub.s32 4096, 4096
          %3605 = vsyncadd %s3595, %s3604
          %s3606 = smul.addr %s3602, 128
          %s3607 = scalar_lea.hbm %s9, %s3606
          %s3608 = sshll.u32 %s3598, 4
          %s3609 = int_to_ptr.vmem [resolvable:$true] %s3608
          %3614 = dma.vmem_to_hbm [thread:$0]  %s3609, 4096, %s3607, %s3595, 128, 128, 8
        $region72: #{tpu_custom_call.1} parent=55 // pred_fallthru
          _
      $region56: #{tpu_custom_call.1} parent=5 // pred_fallthru
        _
      %p3615 = scmp.le.s32.totalorder 2, %s22
      // Predicated region
      $region73: #{tpu_custom_call.1} parent=5 // pred_check
        %p3616 = pneg %p3615
      $region74: #{tpu_custom_call.1} parent=5 // pred_check_branch
        %3618 = sbr.rel (%p3616) target = $region76
      $region75: #{tpu_custom_call.1} parent=5 // pred_region
        %s3619 = ssub.s32 %s22, 2
        // Predicated region
        $region77: #{tpu_custom_call.1} parent=75 // pred_check
          %p3620 = pneg %p245
        $region78: #{tpu_custom_call.1} parent=75 // pred_check_branch
          %3622 = sbr.rel (%p3620) target = $region80
        $region79: #{tpu_custom_call.1} parent=75 // pred_region
          %s3623 = sand.u32 %s230, 1
          %s3624 = scalar_lea.sflag [#allocation4], %s3623
          %s3625 = sand.u32 %s230, 1
          %s3626 = smul.addr %s3625, 256
          %s3627 = scalar_lea.vmem [#allocation8], %s3626
          %3628 = dma.done %s3624, 4096
        $region80: #{tpu_custom_call.1} parent=75 // pred_fallthru
          _
      $region76: #{tpu_custom_call.1} parent=5 // pred_fallthru
        _
    $region6: #{tpu_custom_call.1} parent=1 // loop_footer
      %s26 = sadd.s32 1, %s22
    $region7: #{tpu_custom_call.1} parent=1 // loop_footer_branch
      %21 = sbr.rel target = $region3
    $region8: #{tpu_custom_call.1} parent=1 // loop_exit
      _
    %3629 = vsyncpa [#allocation3], 1
    %s3630 = scalar_lea.sflag [#allocation3], 1
    %3631 = vsyncpa %s3630, 1
    %3632 = vsyncpa [#allocation6], 1
    %3633 = vsyncpa [#allocation4], 1
    %s3634 = scalar_lea.sflag [#allocation4], 1
    %3635 = vsyncpa %s3634, 1

</llo_original>
